<compile_context>
chip_gen: v6e
topology: v6e:2x2x1
jax: 0.10.0
libtpu: 0.0.40
codegen_flags: <defaults>
</compile_context>

<pallas_src>
import math
from functools import partial

import jax
import jax.numpy as jnp
from jax import lax
from jax.experimental import pallas as pl
from jax.experimental.pallas import tpu as pltpu


# ------------------------------ helpers ---------------------------------------

def _layernorm(x, scale, shift, eps=1e-5):
    # matches the custom LayerNorm: mean / biased variance over last dim
    mean = jnp.mean(x, axis=-1, keepdims=True)
    var = jnp.mean((x - mean) ** 2, axis=-1, keepdims=True)      # unbiased=False
    return (x - mean) * lax.rsqrt(var + eps) * scale + shift


def _gelu(x):
    # tanh-approx GELU (as in the reference GELU module)
    c = math.sqrt(2.0 / math.pi)
    return 0.5 * x * (1.0 + jnp.tanh(c * (x + 0.044715 * x * x * x)))


def _bytes(shape, dtype):
    n = 1
    for d in shape:
        n *= d
    return n * jnp.dtype(dtype).itemsize


def _vmem_limit(est_bytes):
    # never below the 32 MiB default scoped limit, never above 128 MiB physical
    return int(max(32 << 20, min(est_bytes, 128 << 20)))


def _pick_tile(n, prefs):
    for p in prefs:
        if n % p == 0:
            return p
    return n


def _resident_spec(block_shape, index_map):
    """Single-buffered BlockSpec for weights whose block index never changes."""
    try:
        return pl.BlockSpec(block_shape, index_map, pipeline_mode=pl.Buffered(1))
    except (TypeError, ValueError):      # pipeline_mode unsupported -> default
        return pl.BlockSpec(block_shape, index_map)


# --------------------------- kernel A: LN1 + QKV -------------------------------

def ln_qkv_kernel(x_ref, lns_ref, lnb_ref, wqkv_ref, o_ref):
    x = x_ref[0].astype(jnp.float32)                             # (ts, E)
    xn = _layernorm(x, lns_ref[...], lnb_ref[...])               # f32 VPU math
    o_ref[0] = jnp.dot(xn.astype(wqkv_ref.dtype), wqkv_ref[...],
                       preferred_element_type=jnp.float32).astype(o_ref.dtype)


def run_ln_qkv(x, lns, lnb, wqkv):
    B, S, E = x.shape
    E3 = wqkv.shape[1]
    ts = _pick_tile(S, (512, 256, 128))
    est = (2 * _bytes((ts, E), jnp.bfloat16)        # x tiles (double-buffered)
           + 2 * _bytes((ts, E3), jnp.bfloat16)     # out tiles
           + _bytes((E, E3), jnp.bfloat16)          # resident wqkv
           + 4 * _bytes((ts, E3), jnp.float32)      # intermediates headroom
           + (2 << 20))
    return pl.pallas_call(
        ln_qkv_kernel,
        out_shape=jax.ShapeDtypeStruct((B, S, E3), jnp.bfloat16),
        grid=(B, S // ts),
        in_specs=[
            pl.BlockSpec((1, ts, E), lambda b, s: (b, s, 0)),    # x
            pl.BlockSpec((1, E), lambda b, s: (0, 0)),           # ln1 scale
            pl.BlockSpec((1, E), lambda b, s: (0, 0)),           # ln1 shift
            _resident_spec((E, E3), lambda b, s: (0, 0)),        # fused Wq|Wk|Wv
        ],
        out_specs=pl.BlockSpec((1, ts, E3), lambda b, s: (b, s, 0)),
        compiler_params=pltpu.CompilerParams(
            dimension_semantics=("parallel", "parallel"),
            vmem_limit_bytes=_vmem_limit(est)),
    )(x, lns, lnb, wqkv)


# ------------------------ kernel B: causal attention ---------------------------

def _attend_heads(q_all, k_all, v_all, heads, dh, out_dtype):
    """q/k/v: (S, heads*dh) bf16 slabs for one head group -> (S, heads*dh)."""
    S = q_all.shape[0]
    row = lax.broadcasted_iota(jnp.int32, (S, S), 0)             # hoisted once
    col = lax.broadcasted_iota(jnp.int32, (S, S), 1)
    causal = col <= row
    outs = []
    for h in range(heads):                                       # static, tiny
        q = q_all[:, h * dh:(h + 1) * dh]                        # scale folded
        k = k_all[:, h * dh:(h + 1) * dh]                        #   into W_q
        v = v_all[:, h * dh:(h + 1) * dh]
        s = lax.dot_general(q, k, (((1,), (1,)), ((), ())),
                            preferred_element_type=jnp.float32)  # (S, S) f32
        s = jnp.where(causal, s, -jnp.inf)
        s = s - jnp.max(s, axis=-1, keepdims=True)
        p = jnp.exp(s)
        p = p * pl.reciprocal(jnp.sum(p, axis=-1, keepdims=True), approx=True)
        # attention-weight dropout: identity (drop_rate = 0)
        ctx = jnp.dot(p.astype(v.dtype), v, preferred_element_type=jnp.float32)
        outs.append(ctx.astype(out_dtype))
    return jnp.concatenate(outs, axis=-1)                        # lane-dense store


def attention_kernel_grouped(q_ref, k_ref, v_ref, o_ref, *, heads, dh):
    o_ref[0] = _attend_heads(q_ref[0], k_ref[0], v_ref[0], heads, dh, o_ref.dtype)


def attention_kernel_fused(qkv_ref, o_ref, *, heads, dh, emb):
    x = qkv_ref[0]
    o_ref[0] = _attend_heads(x[:, :emb], x[:, emb:2 * emb], x[:, 2 * emb:],
                             heads, dh, o_ref.dtype)


def run_attention(qkv, *, n_heads):
    """Causal MHA reading q|k|v from the fused (B,S,3E) tensor; ctx -> (B,S,E)."""
    B, S, E3 = qkv.shape
    E = E3 // 3
    Dh = E // n_heads

    # smallest head group whose width is a multiple of 128 (lane-dense blocks)
    G = next((g for g in range(1, n_heads + 1)
              if n_heads % g == 0 and (g * Dh) % 128 == 0), None)

    # TODO(synk): flash-style KV tiling (skip fully-masked tiles) for long S.
    if G is not None:
        T = G * Dh
        ngrp = n_heads // G                                      # == E // T

        def gspec(off):
            return pl.BlockSpec((1, S, T), lambda b, g: (b, 0, off + g))

        est = (6 * _bytes((S, T), jnp.bfloat16)                  # q/k/v tiles
               + 2 * _bytes((S, T), jnp.bfloat16)                # out tiles
               + 4 * _bytes((S, S), jnp.float32)                 # scores/probs
               + 2 * _bytes((S, T), jnp.float32) + (2 << 20))
        return pl.pallas_call(
            partial(attention_kernel_grouped, heads=G, dh=Dh),
            out_shape=jax.ShapeDtypeStruct((B, S, E), jnp.bfloat16),
            grid=(B, ngrp),
            in_specs=[gspec(0), gspec(ngrp), gspec(2 * ngrp)],   # q, k, v windows
            out_specs=pl.BlockSpec((1, S, T), lambda b, g: (b, 0, g)),
            compiler_params=pltpu.CompilerParams(
                dimension_semantics=("parallel", "parallel"),
                vmem_limit_bytes=_vmem_limit(est)),
        )(qkv, qkv, qkv)

    # Small-model fallback: head widths cannot be made lane-dense; take the
    # whole (S, 3E) row per batch element and slice q/k/v/heads in-kernel.
    est = (2 * _bytes((S, E3), jnp.bfloat16) + 2 * _bytes((S, E), jnp.bfloat16)
           + 4 * _bytes((S, S), jnp.float32) + 2 * _bytes((S, E), jnp.float32)
           + (2 << 20))
    return pl.pallas_call(
        partial(attention_kernel_fused, heads=n_heads, dh=Dh, emb=E),
        out_shape=jax.ShapeDtypeStruct((B, S, E), jnp.bfloat16),
        grid=(B,),
        in_specs=[pl.BlockSpec((1, S, E3), lambda b: (b, 0, 0))],
        out_specs=pl.BlockSpec((1, S, E), lambda b: (b, 0, 0)),
        compiler_params=pltpu.CompilerParams(
            dimension_semantics=("parallel",),
            vmem_limit_bytes=_vmem_limit(est)),
    )(qkv)


# ------------------ kernel C: out-proj + residual + LN2 + FFN ------------------

def proj_ffn_kernel(x_ref, ctx_ref, wo_ref, bo_ref, ln2s_ref, ln2b_ref,
                    w1_ref, b1_ref, w2_ref, b2_ref, o_ref,
                    xres_ref, xn_ref, acc_ref):
    e = pl.program_id(2)

    @pl.when(e == 0)
    def _():
        # out-proj (full E-wide contraction) + residual + LN2, once per (b,s) tile
        x = x_ref[0].astype(jnp.float32)
        attn = jnp.dot(ctx_ref[0], wo_ref[...],
                       preferred_element_type=jnp.float32) + bo_ref[...]
        xr = x + attn                                            # drop_shortcut: id
        xres_ref[...] = xr
        xn_ref[...] = _layernorm(xr, ln2s_ref[...],
                                 ln2b_ref[...]).astype(xn_ref.dtype)
        acc_ref[...] = jnp.zeros_like(acc_ref)

    # FFN streamed over Eh tiles: acc += gelu(xn @ W1_e + b1_e) @ W2_e
    h = _gelu(jnp.dot(xn_ref[...], w1_ref[...],
                      preferred_element_type=jnp.float32) + b1_ref[...])
    acc_ref[...] += jnp.dot(h.astype(w2_ref.dtype), w2_ref[...],
                            preferred_element_type=jnp.float32)

    @pl.when(e == pl.num_programs(2) - 1)
    def _():
        o_ref[0] = (xres_ref[...] + acc_ref[...] + b2_ref[...]).astype(o_ref.dtype)


def run_proj_ffn(x, ctx, blk):
    B, S, E = x.shape
    Eh = blk["w1"].shape[1]
    ts = _pick_tile(S, (512, 256, 128))

    # Tile the FFN hidden dim only when the per-block weights cannot stay
    # VMEM-resident (v7x: 64 MiB); otherwise keep them resident + single-buffered.
    weight_bytes = _bytes((E, E), jnp.bfloat16) + 2 * _bytes((E, Eh), jnp.bfloat16)
    te = Eh if weight_bytes <= (28 << 20) else _pick_tile(Eh, (1280, 1024, 512, 256))
    ne = Eh // te
    resident = ne == 1

    wo_spec = _resident_spec((E, E), lambda b, s, e: (0, 0))
    if resident:
        w1_spec = _resident_spec((E, te), lambda b, s, e: (0, e))
        w2_spec = _resident_spec((te, E), lambda b, s, e: (e, 0))
    else:                                   # streamed -> keep double-buffered
        w1_spec = pl.BlockSpec((E, te), lambda b, s, e: (0, e))
        w2_spec = pl.BlockSpec((te, E), lambda b, s, e: (e, 0))

    est = (_bytes((E, E), jnp.bfloat16)
           + (1 if resident else 2) * (_bytes((E, te), jnp.bfloat16)
                                       + _bytes((te, E), jnp.bfloat16))
           + 6 * _bytes((ts, E), jnp.bfloat16)        # x/ctx/out tiles
           + 2 * _bytes((ts, E), jnp.float32)         # xres + acc scratch
           + _bytes((ts, E), jnp.bfloat16)            # xn scratch
           + 3 * _bytes((ts, te), jnp.float32)        # GELU intermediate
           + (4 << 20))

    return pl.pallas_call(
        proj_ffn_kernel,
        out_shape=jax.ShapeDtypeStruct((B, S, E), x.dtype),
        grid=(B, S // ts, ne),
        in_specs=[
            pl.BlockSpec((1, ts, E), lambda b, s, e: (b, s, 0)),   # residual x
            pl.BlockSpec((1, ts, E), lambda b, s, e: (b, s, 0)),   # attention ctx
            wo_spec,                                               # Wo
            pl.BlockSpec((1, E), lambda b, s, e: (0, 0)),          # bo
            pl.BlockSpec((1, E), lambda b, s, e: (0, 0)),          # ln2 scale
            pl.BlockSpec((1, E), lambda b, s, e: (0, 0)),          # ln2 shift
            w1_spec,                                               # FF W1 tile
            pl.BlockSpec((1, te), lambda b, s, e: (0, e)),         # b1 tile
            w2_spec,                                               # FF W2 tile
            pl.BlockSpec((1, E), lambda b, s, e: (0, 0)),          # b2
        ],
        out_specs=pl.BlockSpec((1, ts, E), lambda b, s, e: (b, s, 0)),
        scratch_shapes=[pltpu.VMEM((ts, E), jnp.float32),    # post-attn residual
                        pltpu.VMEM((ts, E), jnp.bfloat16),   # LN2(x) for the FFN
                        pltpu.VMEM((ts, E), jnp.float32)],   # W2 accumulator
        compiler_params=pltpu.CompilerParams(
            dimension_semantics=("parallel", "parallel", "arbitrary"),
            vmem_limit_bytes=_vmem_limit(est)),
    )(x, ctx, blk["wo"], blk["bo"], blk["ln2_s"], blk["ln2_b"],
      blk["w1"], blk["b1"], blk["w2"], blk["b2"])


# ---------------- kernel D: final LayerNorm + vocab-tiled LM head --------------

def lm_head_kernel(x_ref, lns_ref, lnb_ref, wout_ref, o_ref, xn_ref):
    # LayerNorm once per (b, s) tile (vocab tile 0), reuse from VMEM scratch.
    @pl.when(pl.program_id(2) == 0)
    def _():
        x = x_ref[0].astype(jnp.float32)
        xn_ref[...] = _layernorm(x, lns_ref[...], lnb_ref[...]).astype(xn_ref.dtype)

    o_ref[0] = jnp.dot(xn_ref[...], wout_ref[...],
                       preferred_element_type=jnp.float32).astype(o_ref.dtype)


def run_lm_head(x, lns, lnb, wout, *, tile_v=1024, logits_dtype=jnp.bfloat16):
    B, S, E = x.shape
    V = wout.shape[1]
    ts = _pick_tile(S, (512, 256, 128))
    tile_v = min(tile_v, -(-V // 128) * 128)          # don't over-tile small vocabs
    Vp = -(-V // tile_v) * tile_v
    if Vp != V:                                       # pad vocab to a tile multiple
        wout = jnp.pad(wout, ((0, 0), (0, Vp - V)))
    nv = Vp // tile_v

    est = (2 * _bytes((ts, E), jnp.bfloat16)
           + 2 * _bytes((E, tile_v), jnp.bfloat16)    # streamed vocab tiles
           + 2 * _bytes((ts, tile_v), logits_dtype)
           + _bytes((ts, E), jnp.bfloat16)            # xn scratch
           + 2 * _bytes((ts, tile_v), jnp.float32)    # matmul f32 intermediate
           + (2 << 20))

    logits = pl.pallas_call(
        lm_head_kernel,
        out_shape=jax.ShapeDtypeStruct((B, S, Vp), logits_dtype),
        grid=(B, S // ts, nv),
        in_specs=[
            pl.BlockSpec((1, ts, E), lambda b, s, j: (b, s, 0)),
            pl.BlockSpec((1, E), lambda b, s, j: (0, 0)),
            pl.BlockSpec((1, E), lambda b, s, j: (0, 0)),
            pl.BlockSpec((E, tile_v), lambda b, s, j: (0, j)),   # streamed vocab tile
        ],
        out_specs=pl.BlockSpec((1, ts, tile_v), lambda b, s, j: (b, s, j)),
        scratch_shapes=[pltpu.VMEM((ts, E), jnp.bfloat16)],
        compiler_params=pltpu.CompilerParams(
            dimension_semantics=("parallel", "parallel", "arbitrary"),
            vmem_limit_bytes=_vmem_limit(est)),
    )(x, lns, lnb, wout)
    return logits if Vp == V else logits[..., :V]


# -------------------------------- full model -----------------------------------

def transformer_block(x, blk, n_heads):
    qkv = run_ln_qkv(x, blk["ln1_s"], blk["ln1_b"], blk["wqkv"])     # (B,S,3E)
    ctx = run_attention(qkv, n_heads=n_heads)                        # (B,S,E)
    return run_proj_ffn(x, ctx, blk)


def gpt_forward(in_idx, params, cfg):
    B, S = in_idx.shape
    tok = jnp.take(params["tok_emb"], in_idx, axis=0)                # (B, S, E)
    pos = params["pos_emb"][:S]                                      # (S, E)
    x = (tok + pos[None, :, :]).astype(jnp.bfloat16)
    # drop_emb: identity (drop_rate = 0.0)
    for blk in params["blocks"]:
        x = transformer_block(x, blk, cfg["n_heads"])
    return run_lm_head(x, params["fn_s"], params["fn_b"], params["out_head"])


def init_params(cfg, key):
    E, V, C = cfg["emb_dim"], cfg["vocab_size"], cfg["context_length"]
    H = cfg["n_heads"]
    Dh = E // H
    Eh = 4 * E
    n_keys = 2 + cfg["n_layers"] * 4 + 1
    keys = iter(jax.random.split(key, n_keys))
    std = 0.02

    def nrm(k, shape):   # f32 init; bf16 storage (f32 accumulation inside kernels)
        return std * jax.random.normal(k, shape, jnp.float32)

    params = {
        "tok_emb": nrm(next(keys), (V, E)).astype(jnp.bfloat16),
        "pos_emb": nrm(next(keys), (C, E)).astype(jnp.bfloat16),
        "blocks": [],
    }
    for _ in range(cfg["n_layers"]):
        wqkv = nrm(next(keys), (E, 3 * E))
        # fold attention's 1/sqrt(Dh) into the Q columns (in f32, then cast)
        wqkv = wqkv.at[:, :E].multiply(1.0 / math.sqrt(Dh))
        params["blocks"].append({
            "wqkv": wqkv.astype(jnp.bfloat16),       # fused Wq|Wk|Wv, [in, out]
            "wo": nrm(next(keys), (E, E)).astype(jnp.bfloat16),
            "bo": jnp.zeros((1, E), jnp.float32),
            "ln1_s": jnp.ones((1, E), jnp.float32),
            "ln1_b": jnp.zeros((1, E), jnp.float32),
            "ln2_s": jnp.ones((1, E), jnp.float32),
            "ln2_b": jnp.zeros((1, E), jnp.float32),
            "w1": nrm(next(keys), (E, Eh)).astype(jnp.bfloat16),
            "b1": jnp.zeros((1, Eh), jnp.float32),
            "w2": nrm(next(keys), (Eh, E)).astype(jnp.bfloat16),
            "b2": jnp.zeros((1, E), jnp.float32),
        })
    params["fn_s"] = jnp.ones((1, E), jnp.float32)
    params["fn_b"] = jnp.zeros((1, E), jnp.float32)
    params["out_head"] = nrm(next(keys), (E, V)).astype(jnp.bfloat16)
    return params


if __name__ == "__main__":
    cfg = dict(vocab_size=256, context_length=16, emb_dim=64, n_heads=4,
               n_layers=2, drop_rate=0.0, qkv_bias=False)
    key = jax.random.PRNGKey(0)
    pkey, ikey = jax.random.split(key)
    params = init_params(cfg, pkey)

    in_idx = jax.random.randint(ikey, (2, cfg["context_length"]),
                                0, cfg["vocab_size"], dtype=jnp.int32)

    fwd = jax.jit(partial(gpt_forward, cfg=cfg))
    logits = jax.block_until_ready(fwd(in_idx, params))

    assert logits.shape == (2, cfg["context_length"], cfg["vocab_size"])
    assert bool(jnp.all(jnp.isfinite(logits)))
    print("KERNEL_OK")
</pallas_src>

<mosaic_0001>
module attributes {stable_mosaic.version = 11 : i64} {
  func.func @attention_kernel_fused(%arg0: i32, %arg1: memref<1x16x192xbf16, #tpu.memory_space<vmem>>, %arg2: memref<1x16x64xbf16, #tpu.memory_space<vmem>>) attributes {dimension_semantics = [#tpu.dimension_semantics<parallel>], iteration_bounds = array<i64: 2>, scalar_prefetch = 0 : i64, scratch_operands = 0 : i64, tpu.core_type = #tpu.core_type<tc>, window_params = [{transform_indices = @transform_0, window_bounds = array<i64: 1, 16, 192>}, {transform_indices = @transform_1, window_bounds = array<i64: 1, 16, 64>}]} {
    %c0 = arith.constant 0 : index
    %c0_0 = arith.constant 0 : index
    %c0_1 = arith.constant 0 : index
    %0 = vector.load %arg1[%c0, %c0_0, %c0_1] : memref<1x16x192xbf16, #tpu.memory_space<vmem>>, vector<1x16x192xbf16>
    %1 = vector.shape_cast %0 : vector<1x16x192xbf16> to vector<16x192xbf16>
    %2 = vector.extract_strided_slice %1 {offsets = [0, 0], sizes = [16, 64], strides = [1, 1]} : vector<16x192xbf16> to vector<16x64xbf16>
    %3 = vector.extract_strided_slice %1 {offsets = [0, 64], sizes = [16, 64], strides = [1, 1]} : vector<16x192xbf16> to vector<16x64xbf16>
    %4 = vector.extract_strided_slice %1 {offsets = [0, 128], sizes = [16, 64], strides = [1, 1]} : vector<16x192xbf16> to vector<16x64xbf16>
    %5 = tpu.iota {dimensions = array<i32: 0>} : vector<16x16xi32>
    %6 = tpu.iota {dimensions = array<i32: 1>} : vector<16x16xi32>
    %7 = arith.cmpi sle, %6, %5 : vector<16x16xi32>
    %8 = vector.extract_strided_slice %2 {offsets = [0, 0], sizes = [16, 16], strides = [1, 1]} : vector<16x64xbf16> to vector<16x16xbf16>
    %9 = vector.extract_strided_slice %3 {offsets = [0, 0], sizes = [16, 16], strides = [1, 1]} : vector<16x64xbf16> to vector<16x16xbf16>
    %10 = vector.extract_strided_slice %4 {offsets = [0, 0], sizes = [16, 16], strides = [1, 1]} : vector<16x64xbf16> to vector<16x16xbf16>
    %cst = arith.constant dense<0.000000e+00> : vector<16x16xf32>
    %11 = tpu.matmul %8, %9, %cst {dimension_numbers = #tpu.dot_dimension_numbers<[1], [1], [0], [0], [0, 0, 1, 0], [], []>} : vector<16x16xbf16>, vector<16x16xbf16>, vector<16x16xf32> -> vector<16x16xf32>
    %cst_2 = arith.constant 0xFF800000 : f32
    %12 = vector.broadcast %cst_2 : f32 to vector<16x16xf32>
    %13 = arith.select %7, %11, %12 : vector<16x16xi1>, vector<16x16xf32>
    %cst_3 = arith.constant dense<0xFF800000> : vector<16xf32>
    %14 = vector.multi_reduction <maximumf>, %13, %cst_3 [1] : vector<16x16xf32> to vector<16xf32>
    %15 = vector.shape_cast %14 : vector<16xf32> to vector<16x1xf32>
    %16 = vector.broadcast %15 : vector<16x1xf32> to vector<16x16xf32>
    %17 = arith.subf %13, %16 : vector<16x16xf32>
    %18 = math.exp %17 : vector<16x16xf32>
    %cst_4 = arith.constant dense<0.000000e+00> : vector<16xf32>
    %19 = vector.multi_reduction <add>, %18, %cst_4 [1] : vector<16x16xf32> to vector<16xf32>
    %20 = vector.shape_cast %19 : vector<16xf32> to vector<16x1xf32>
    %21 = tpu.reciprocal %20 {approx = true} : vector<16x1xf32> -> vector<16x1xf32>
    %22 = vector.broadcast %21 : vector<16x1xf32> to vector<16x16xf32>
    %23 = arith.mulf %18, %22 : vector<16x16xf32>
    %24 = arith.truncf %23 : vector<16x16xf32> to vector<16x16xbf16>
    %cst_5 = arith.constant dense<0.000000e+00> : vector<16x16xf32>
    %25 = tpu.matmul %24, %10, %cst_5 {dimension_numbers = #tpu.dot_dimension_numbers<[1], [0], [0], [1], [0, 0, 1, 1], [], []>} : vector<16x16xbf16>, vector<16x16xbf16>, vector<16x16xf32> -> vector<16x16xf32>
    %26 = arith.truncf %25 : vector<16x16xf32> to vector<16x16xbf16>
    %27 = vector.extract_strided_slice %2 {offsets = [0, 16], sizes = [16, 16], strides = [1, 1]} : vector<16x64xbf16> to vector<16x16xbf16>
    %28 = vector.extract_strided_slice %3 {offsets = [0, 16], sizes = [16, 16], strides = [1, 1]} : vector<16x64xbf16> to vector<16x16xbf16>
    %29 = vector.extract_strided_slice %4 {offsets = [0, 16], sizes = [16, 16], strides = [1, 1]} : vector<16x64xbf16> to vector<16x16xbf16>
    %cst_6 = arith.constant dense<0.000000e+00> : vector<16x16xf32>
    %30 = tpu.matmul %27, %28, %cst_6 {dimension_numbers = #tpu.dot_dimension_numbers<[1], [1], [0], [0], [0, 0, 1, 0], [], []>} : vector<16x16xbf16>, vector<16x16xbf16>, vector<16x16xf32> -> vector<16x16xf32>
    %cst_7 = arith.constant 0xFF800000 : f32
    %31 = vector.broadcast %cst_7 : f32 to vector<16x16xf32>
    %32 = arith.select %7, %30, %31 : vector<16x16xi1>, vector<16x16xf32>
    %cst_8 = arith.constant dense<0xFF800000> : vector<16xf32>
    %33 = vector.multi_reduction <maximumf>, %32, %cst_8 [1] : vector<16x16xf32> to vector<16xf32>
    %34 = vector.shape_cast %33 : vector<16xf32> to vector<16x1xf32>
    %35 = vector.broadcast %34 : vector<16x1xf32> to vector<16x16xf32>
    %36 = arith.subf %32, %35 : vector<16x16xf32>
    %37 = math.exp %36 : vector<16x16xf32>
    %cst_9 = arith.constant dense<0.000000e+00> : vector<16xf32>
    %38 = vector.multi_reduction <add>, %37, %cst_9 [1] : vector<16x16xf32> to vector<16xf32>
    %39 = vector.shape_cast %38 : vector<16xf32> to vector<16x1xf32>
    %40 = tpu.reciprocal %39 {approx = true} : vector<16x1xf32> -> vector<16x1xf32>
    %41 = vector.broadcast %40 : vector<16x1xf32> to vector<16x16xf32>
    %42 = arith.mulf %37, %41 : vector<16x16xf32>
    %43 = arith.truncf %42 : vector<16x16xf32> to vector<16x16xbf16>
    %cst_10 = arith.constant dense<0.000000e+00> : vector<16x16xf32>
    %44 = tpu.matmul %43, %29, %cst_10 {dimension_numbers = #tpu.dot_dimension_numbers<[1], [0], [0], [1], [0, 0, 1, 1], [], []>} : vector<16x16xbf16>, vector<16x16xbf16>, vector<16x16xf32> -> vector<16x16xf32>
    %45 = arith.truncf %44 : vector<16x16xf32> to vector<16x16xbf16>
    %46 = vector.extract_strided_slice %2 {offsets = [0, 32], sizes = [16, 16], strides = [1, 1]} : vector<16x64xbf16> to vector<16x16xbf16>
    %47 = vector.extract_strided_slice %3 {offsets = [0, 32], sizes = [16, 16], strides = [1, 1]} : vector<16x64xbf16> to vector<16x16xbf16>
    %48 = vector.extract_strided_slice %4 {offsets = [0, 32], sizes = [16, 16], strides = [1, 1]} : vector<16x64xbf16> to vector<16x16xbf16>
    %cst_11 = arith.constant dense<0.000000e+00> : vector<16x16xf32>
    %49 = tpu.matmul %46, %47, %cst_11 {dimension_numbers = #tpu.dot_dimension_numbers<[1], [1], [0], [0], [0, 0, 1, 0], [], []>} : vector<16x16xbf16>, vector<16x16xbf16>, vector<16x16xf32> -> vector<16x16xf32>
    %cst_12 = arith.constant 0xFF800000 : f32
    %50 = vector.broadcast %cst_12 : f32 to vector<16x16xf32>
    %51 = arith.select %7, %49, %50 : vector<16x16xi1>, vector<16x16xf32>
    %cst_13 = arith.constant dense<0xFF800000> : vector<16xf32>
    %52 = vector.multi_reduction <maximumf>, %51, %cst_13 [1] : vector<16x16xf32> to vector<16xf32>
    %53 = vector.shape_cast %52 : vector<16xf32> to vector<16x1xf32>
    %54 = vector.broadcast %53 : vector<16x1xf32> to vector<16x16xf32>
    %55 = arith.subf %51, %54 : vector<16x16xf32>
    %56 = math.exp %55 : vector<16x16xf32>
    %cst_14 = arith.constant dense<0.000000e+00> : vector<16xf32>
    %57 = vector.multi_reduction <add>, %56, %cst_14 [1] : vector<16x16xf32> to vector<16xf32>
    %58 = vector.shape_cast %57 : vector<16xf32> to vector<16x1xf32>
    %59 = tpu.reciprocal %58 {approx = true} : vector<16x1xf32> -> vector<16x1xf32>
    %60 = vector.broadcast %59 : vector<16x1xf32> to vector<16x16xf32>
    %61 = arith.mulf %56, %60 : vector<16x16xf32>
    %62 = arith.truncf %61 : vector<16x16xf32> to vector<16x16xbf16>
    %cst_15 = arith.constant dense<0.000000e+00> : vector<16x16xf32>
    %63 = tpu.matmul %62, %48, %cst_15 {dimension_numbers = #tpu.dot_dimension_numbers<[1], [0], [0], [1], [0, 0, 1, 1], [], []>} : vector<16x16xbf16>, vector<16x16xbf16>, vector<16x16xf32> -> vector<16x16xf32>
    %64 = arith.truncf %63 : vector<16x16xf32> to vector<16x16xbf16>
    %65 = vector.extract_strided_slice %2 {offsets = [0, 48], sizes = [16, 16], strides = [1, 1]} : vector<16x64xbf16> to vector<16x16xbf16>
    %66 = vector.extract_strided_slice %3 {offsets = [0, 48], sizes = [16, 16], strides = [1, 1]} : vector<16x64xbf16> to vector<16x16xbf16>
    %67 = vector.extract_strided_slice %4 {offsets = [0, 48], sizes = [16, 16], strides = [1, 1]} : vector<16x64xbf16> to vector<16x16xbf16>
    %cst_16 = arith.constant dense<0.000000e+00> : vector<16x16xf32>
    %68 = tpu.matmul %65, %66, %cst_16 {dimension_numbers = #tpu.dot_dimension_numbers<[1], [1], [0], [0], [0, 0, 1, 0], [], []>} : vector<16x16xbf16>, vector<16x16xbf16>, vector<16x16xf32> -> vector<16x16xf32>
    %cst_17 = arith.constant 0xFF800000 : f32
    %69 = vector.broadcast %cst_17 : f32 to vector<16x16xf32>
    %70 = arith.select %7, %68, %69 : vector<16x16xi1>, vector<16x16xf32>
    %cst_18 = arith.constant dense<0xFF800000> : vector<16xf32>
    %71 = vector.multi_reduction <maximumf>, %70, %cst_18 [1] : vector<16x16xf32> to vector<16xf32>
    %72 = vector.shape_cast %71 : vector<16xf32> to vector<16x1xf32>
    %73 = vector.broadcast %72 : vector<16x1xf32> to vector<16x16xf32>
    %74 = arith.subf %70, %73 : vector<16x16xf32>
    %75 = math.exp %74 : vector<16x16xf32>
    %cst_19 = arith.constant dense<0.000000e+00> : vector<16xf32>
    %76 = vector.multi_reduction <add>, %75, %cst_19 [1] : vector<16x16xf32> to vector<16xf32>
    %77 = vector.shape_cast %76 : vector<16xf32> to vector<16x1xf32>
    %78 = tpu.reciprocal %77 {approx = true} : vector<16x1xf32> -> vector<16x1xf32>
    %79 = vector.broadcast %78 : vector<16x1xf32> to vector<16x16xf32>
    %80 = arith.mulf %75, %79 : vector<16x16xf32>
    %81 = arith.truncf %80 : vector<16x16xf32> to vector<16x16xbf16>
    %cst_20 = arith.constant dense<0.000000e+00> : vector<16x16xf32>
    %82 = tpu.matmul %81, %67, %cst_20 {dimension_numbers = #tpu.dot_dimension_numbers<[1], [0], [0], [1], [0, 0, 1, 1], [], []>} : vector<16x16xbf16>, vector<16x16xbf16>, vector<16x16xf32> -> vector<16x16xf32>
    %83 = arith.truncf %82 : vector<16x16xf32> to vector<16x16xbf16>
    %84 = tpu.concatenate %26, %45, %64, %83 in 1 : vector<16x16xbf16>, vector<16x16xbf16>, vector<16x16xbf16>, vector<16x16xbf16> -> vector<16x64xbf16>
    %c0_21 = arith.constant 0 : index
    %c0_22 = arith.constant 0 : index
    %c0_23 = arith.constant 0 : index
    %85 = vector.load %arg2[%c0_21, %c0_22, %c0_23] : memref<1x16x64xbf16, #tpu.memory_space<vmem>>, vector<1x16x64xbf16>
    %86 = vector.shape_cast %85 : vector<1x16x64xbf16> to vector<16x64xbf16>
    %87 = vector.shape_cast %84 : vector<16x64xbf16> to vector<1x16x64xbf16>
    tpu.vector_store %arg2[%c0_21, %c0_22, %c0_23], %87 {strides = array<i32>} : memref<1x16x64xbf16, #tpu.memory_space<vmem>>, vector<1x16x64xbf16>,
    return
  }
  func.func @transform_0(%arg0: i32) -> (i32, i32, i32) {
    %c0_i32 = arith.constant 0 : i32
    %c0_i32_0 = arith.constant 0 : i32
    %c0_i32_1 = arith.constant 0 : i32
    return %arg0, %c0_i32, %c0_i32_0 : i32, i32, i32
  }
  func.func @transform_1(%arg0: i32) -> (i32, i32, i32) {
    %c0_i32 = arith.constant 0 : i32
    %c0_i32_0 = arith.constant 0 : i32
    %c0_i32_1 = arith.constant 0 : i32
    return %arg0, %c0_i32, %c0_i32_0 : i32, i32, i32
  }
}

module attributes {stable_mosaic.version = 11 : i64} {
  func.func @ln_qkv_kernel(%arg0: i32, %arg1: i32, %arg2: memref<1x16x64xbf16, #tpu.memory_space<vmem>>, %arg3: memref<1x64xf32, #tpu.memory_space<vmem>>, %arg4: memref<1x64xf32, #tpu.memory_space<vmem>>, %arg5: memref<64x192xbf16, #tpu.memory_space<vmem>>, %arg6: memref<1x16x192xbf16, #tpu.memory_space<vmem>>) attributes {dimension_semantics = [#tpu.dimension_semantics<parallel>, #tpu.dimension_semantics<parallel>], iteration_bounds = array<i64: 2, 1>, scalar_prefetch = 0 : i64, scratch_operands = 0 : i64, tpu.core_type = #tpu.core_type<tc>, window_params = [{transform_indices = @transform_0, window_bounds = array<i64: 1, 16, 64>}, {pipeline_mode = #tpu.pipeline_mode<synchronous>, transform_indices = @transform_1, window_bounds = array<i64: 1, 64>}, {pipeline_mode = #tpu.pipeline_mode<synchronous>, transform_indices = @transform_2, window_bounds = array<i64: 1, 64>}, {pipeline_mode = #tpu.pipeline_mode<synchronous>, transform_indices = @transform_3, window_bounds = array<i64: 64, 192>}, {transform_indices = @transform_4, window_bounds = array<i64: 1, 16, 192>}]} {
    %c0 = arith.constant 0 : index
    %c0_0 = arith.constant 0 : index
    %c0_1 = arith.constant 0 : index
    %0 = vector.load %arg2[%c0, %c0_0, %c0_1] : memref<1x16x64xbf16, #tpu.memory_space<vmem>>, vector<1x16x64xbf16>
    %1 = vector.shape_cast %0 : vector<1x16x64xbf16> to vector<16x64xbf16>
    %2 = arith.extf %1 : vector<16x64xbf16> to vector<16x64xf32>
    %c0_2 = arith.constant 0 : index
    %c0_3 = arith.constant 0 : index
    %3 = vector.load %arg3[%c0_2, %c0_3] : memref<1x64xf32, #tpu.memory_space<vmem>>, vector<1x64xf32>
    %c0_4 = arith.constant 0 : index
    %c0_5 = arith.constant 0 : index
    %4 = vector.load %arg4[%c0_4, %c0_5] : memref<1x64xf32, #tpu.memory_space<vmem>>, vector<1x64xf32>
    %cst = arith.constant dense<0.000000e+00> : vector<16xf32>
    %5 = vector.multi_reduction <add>, %2, %cst [1] : vector<16x64xf32> to vector<16xf32>
    %6 = vector.shape_cast %5 : vector<16xf32> to vector<16x1xf32>
    %cst_6 = arith.constant 6.400000e+01 : f32
    %7 = vector.broadcast %cst_6 : f32 to vector<16x1xf32>
    %8 = arith.divf %6, %7 : vector<16x1xf32>
    %9 = vector.broadcast %8 : vector<16x1xf32> to vector<16x64xf32>
    %10 = arith.subf %2, %9 : vector<16x64xf32>
    %11 = arith.mulf %10, %10 : vector<16x64xf32>
    %cst_7 = arith.constant dense<0.000000e+00> : vector<16xf32>
    %12 = vector.multi_reduction <add>, %11, %cst_7 [1] : vector<16x64xf32> to vector<16xf32>
    %13 = vector.shape_cast %12 : vector<16xf32> to vector<16x1xf32>
    %cst_8 = arith.constant 6.400000e+01 : f32
    %14 = vector.broadcast %cst_8 : f32 to vector<16x1xf32>
    %15 = arith.divf %13, %14 : vector<16x1xf32>
    %16 = vector.broadcast %8 : vector<16x1xf32> to vector<16x64xf32>
    %17 = arith.subf %2, %16 : vector<16x64xf32>
    %cst_9 = arith.constant 9.99999974E-6 : f32
    %18 = vector.broadcast %cst_9 : f32 to vector<16x1xf32>
    %19 = arith.addf %15, %18 : vector<16x1xf32>
    %20 = math.rsqrt %19 : vector<16x1xf32>
    %21 = vector.broadcast %20 : vector<16x1xf32> to vector<16x64xf32>
    %22 = arith.mulf %17, %21 : vector<16x64xf32>
    %23 = vector.broadcast %3 : vector<1x64xf32> to vector<16x64xf32>
    %24 = arith.mulf %22, %23 : vector<16x64xf32>
    %25 = vector.broadcast %4 : vector<1x64xf32> to vector<16x64xf32>
    %26 = arith.addf %24, %25 : vector<16x64xf32>
    %27 = arith.truncf %26 : vector<16x64xf32> to vector<16x64xbf16>
    %c0_10 = arith.constant 0 : index
    %c0_11 = arith.constant 0 : index
    %28 = vector.load %arg5[%c0_10, %c0_11] : memref<64x192xbf16, #tpu.memory_space<vmem>>, vector<64x192xbf16>
    %cst_12 = arith.constant dense<0.000000e+00> : vector<16x192xf32>
    %29 = tpu.matmul %27, %28, %cst_12 {dimension_numbers = #tpu.dot_dimension_numbers<[1], [0], [0], [1], [0, 0, 1, 1], [], []>} : vector<16x64xbf16>, vector<64x192xbf16>, vector<16x192xf32> -> vector<16x192xf32>
    %30 = arith.truncf %29 : vector<16x192xf32> to vector<16x192xbf16>
    %c0_13 = arith.constant 0 : index
    %c0_14 = arith.constant 0 : index
    %c0_15 = arith.constant 0 : index
    %31 = vector.load %arg6[%c0_13, %c0_14, %c0_15] : memref<1x16x192xbf16, #tpu.memory_space<vmem>>, vector<1x16x192xbf16>
    %32 = vector.shape_cast %31 : vector<1x16x192xbf16> to vector<16x192xbf16>
    %33 = vector.shape_cast %30 : vector<16x192xbf16> to vector<1x16x192xbf16>
    tpu.vector_store %arg6[%c0_13, %c0_14, %c0_15], %33 {strides = array<i32>} : memref<1x16x192xbf16, #tpu.memory_space<vmem>>, vector<1x16x192xbf16>,
    return
  }
  func.func @transform_0(%arg0: i32, %arg1: i32) -> (i32, i32, i32) {
    %c0_i32 = arith.constant 0 : i32
    %c0_i32_0 = arith.constant 0 : i32
    return %arg0, %arg1, %c0_i32 : i32, i32, i32
  }
  func.func @transform_1(%arg0: i32, %arg1: i32) -> (i32, i32) {
    %c0_i32 = arith.constant 0 : i32
    %c0_i32_0 = arith.constant 0 : i32
    %c0_i32_1 = arith.constant 0 : i32
    return %c0_i32, %c0_i32_0 : i32, i32
  }
  func.func @transform_2(%arg0: i32, %arg1: i32) -> (i32, i32) {
    %c0_i32 = arith.constant 0 : i32
    %c0_i32_0 = arith.constant 0 : i32
    %c0_i32_1 = arith.constant 0 : i32
    return %c0_i32, %c0_i32_0 : i32, i32
  }
  func.func @transform_3(%arg0: i32, %arg1: i32) -> (i32, i32) {
    %c0_i32 = arith.constant 0 : i32
    %c0_i32_0 = arith.constant 0 : i32
    %c0_i32_1 = arith.constant 0 : i32
    return %c0_i32, %c0_i32_0 : i32, i32
  }
  func.func @transform_4(%arg0: i32, %arg1: i32) -> (i32, i32, i32) {
    %c0_i32 = arith.constant 0 : i32
    %c0_i32_0 = arith.constant 0 : i32
    return %arg0, %arg1, %c0_i32 : i32, i32, i32
  }
}

module attributes {stable_mosaic.version = 11 : i64} {
  func.func @proj_ffn_kernel(%arg0: i32, %arg1: i32, %arg2: i32, %arg3: memref<1x16x64xbf16, #tpu.memory_space<vmem>>, %arg4: memref<1x16x64xbf16, #tpu.memory_space<vmem>>, %arg5: memref<64x64xbf16, #tpu.memory_space<vmem>>, %arg6: memref<1x64xf32, #tpu.memory_space<vmem>>, %arg7: memref<1x64xf32, #tpu.memory_space<vmem>>, %arg8: memref<1x64xf32, #tpu.memory_space<vmem>>, %arg9: memref<64x256xbf16, #tpu.memory_space<vmem>>, %arg10: memref<1x256xf32, #tpu.memory_space<vmem>>, %arg11: memref<256x64xbf16, #tpu.memory_space<vmem>>, %arg12: memref<1x64xf32, #tpu.memory_space<vmem>>, %arg13: memref<1x16x64xbf16, #tpu.memory_space<vmem>>, %arg14: memref<16x64xf32, #tpu.memory_space<vmem>>, %arg15: memref<16x64xbf16, #tpu.memory_space<vmem>>, %arg16: memref<16x64xf32, #tpu.memory_space<vmem>>) attributes {dimension_semantics = [#tpu.dimension_semantics<parallel>, #tpu.dimension_semantics<parallel>, #tpu.dimension_semantics<arbitrary>], iteration_bounds = array<i64: 2, 1, 1>, scalar_prefetch = 0 : i64, scratch_operands = 3 : i64, tpu.core_type = #tpu.core_type<tc>, window_params = [{transform_indices = @transform_0, window_bounds = array<i64: 1, 16, 64>}, {transform_indices = @transform_1, window_bounds = array<i64: 1, 16, 64>}, {pipeline_mode = #tpu.pipeline_mode<synchronous>, transform_indices = @transform_2, window_bounds = array<i64: 64, 64>}, {pipeline_mode = #tpu.pipeline_mode<synchronous>, transform_indices = @transform_3, window_bounds = array<i64: 1, 64>}, {pipeline_mode = #tpu.pipeline_mode<synchronous>, transform_indices = @transform_4, window_bounds = array<i64: 1, 64>}, {pipeline_mode = #tpu.pipeline_mode<synchronous>, transform_indices = @transform_5, window_bounds = array<i64: 1, 64>}, {pipeline_mode = #tpu.pipeline_mode<synchronous>, transform_indices = @transform_6, window_bounds = array<i64: 64, 256>}, {transform_indices = @transform_7, window_bounds = array<i64: 1, 256>}, {pipeline_mode = #tpu.pipeline_mode<synchronous>, transform_indices = @transform_8, window_bounds = array<i64: 256, 64>}, {pipeline_mode = #tpu.pipeline_mode<synchronous>, transform_indices = @transform_9, window_bounds = array<i64: 1, 64>}, {transform_indices = @transform_10, window_bounds = array<i64: 1, 16, 64>}]} {
    %c0_i32 = arith.constant 0 : i32
    %0 = arith.cmpi eq, %arg2, %c0_i32 : i32
    %1 = arith.extui %0 : i1 to i32
    %c0_i32_0 = arith.constant 0 : i32
    %2 = arith.cmpi ne, %1, %c0_i32_0 : i32
    scf.if %2 {
      %c0_19 = arith.constant 0 : index
      %c0_20 = arith.constant 0 : index
      %c0_21 = arith.constant 0 : index
      %31 = vector.load %arg3[%c0_19, %c0_20, %c0_21] : memref<1x16x64xbf16, #tpu.memory_space<vmem>>, vector<1x16x64xbf16>
      %32 = vector.shape_cast %31 : vector<1x16x64xbf16> to vector<16x64xbf16>
      %33 = arith.extf %32 : vector<16x64xbf16> to vector<16x64xf32>
      %c0_22 = arith.constant 0 : index
      %c0_23 = arith.constant 0 : index
      %c0_24 = arith.constant 0 : index
      %34 = vector.load %arg4[%c0_22, %c0_23, %c0_24] : memref<1x16x64xbf16, #tpu.memory_space<vmem>>, vector<1x16x64xbf16>
      %35 = vector.shape_cast %34 : vector<1x16x64xbf16> to vector<16x64xbf16>
      %c0_25 = arith.constant 0 : index
      %c0_26 = arith.constant 0 : index
      %36 = vector.load %arg5[%c0_25, %c0_26] : memref<64x64xbf16, #tpu.memory_space<vmem>>, vector<64x64xbf16>
      %cst_27 = arith.constant dense<0.000000e+00> : vector<16x64xf32>
      %37 = tpu.matmul %35, %36, %cst_27 {dimension_numbers = #tpu.dot_dimension_numbers<[1], [0], [0], [1], [0, 0, 1, 1], [], []>} : vector<16x64xbf16>, vector<64x64xbf16>, vector<16x64xf32> -> vector<16x64xf32>
      %c0_28 = arith.constant 0 : index
      %c0_29 = arith.constant 0 : index
      %38 = vector.load %arg6[%c0_28, %c0_29] : memref<1x64xf32, #tpu.memory_space<vmem>>, vector<1x64xf32>
      %39 = vector.broadcast %38 : vector<1x64xf32> to vector<16x64xf32>
      %40 = arith.addf %37, %39 : vector<16x64xf32>
      %41 = arith.addf %33, %40 : vector<16x64xf32>
      %c0_30 = arith.constant 0 : index
      %c0_31 = arith.constant 0 : index
      %42 = vector.load %arg14[%c0_30, %c0_31] : memref<16x64xf32, #tpu.memory_space<vmem>>, vector<16x64xf32>
      tpu.vector_store %arg14[%c0_30, %c0_31], %41 {strides = array<i32>} : memref<16x64xf32, #tpu.memory_space<vmem>>, vector<16x64xf32>,
      %c0_32 = arith.constant 0 : index
      %c0_33 = arith.constant 0 : index
      %43 = vector.load %arg7[%c0_32, %c0_33] : memref<1x64xf32, #tpu.memory_space<vmem>>, vector<1x64xf32>
      %c0_34 = arith.constant 0 : index
      %c0_35 = arith.constant 0 : index
      %44 = vector.load %arg8[%c0_34, %c0_35] : memref<1x64xf32, #tpu.memory_space<vmem>>, vector<1x64xf32>
      %cst_36 = arith.constant dense<0.000000e+00> : vector<16xf32>
      %45 = vector.multi_reduction <add>, %41, %cst_36 [1] : vector<16x64xf32> to vector<16xf32>
      %46 = vector.shape_cast %45 : vector<16xf32> to vector<16x1xf32>
      %cst_37 = arith.constant 6.400000e+01 : f32
      %47 = vector.broadcast %cst_37 : f32 to vector<16x1xf32>
      %48 = arith.divf %46, %47 : vector<16x1xf32>
      %49 = vector.broadcast %48 : vector<16x1xf32> to vector<16x64xf32>
      %50 = arith.subf %41, %49 : vector<16x64xf32>
      %51 = arith.mulf %50, %50 : vector<16x64xf32>
      %cst_38 = arith.constant dense<0.000000e+00> : vector<16xf32>
      %52 = vector.multi_reduction <add>, %51, %cst_38 [1] : vector<16x64xf32> to vector<16xf32>
      %53 = vector.shape_cast %52 : vector<16xf32> to vector<16x1xf32>
      %cst_39 = arith.constant 6.400000e+01 : f32
      %54 = vector.broadcast %cst_39 : f32 to vector<16x1xf32>
      %55 = arith.divf %53, %54 : vector<16x1xf32>
      %56 = vector.broadcast %48 : vector<16x1xf32> to vector<16x64xf32>
      %57 = arith.subf %41, %56 : vector<16x64xf32>
      %cst_40 = arith.constant 9.99999974E-6 : f32
      %58 = vector.broadcast %cst_40 : f32 to vector<16x1xf32>
      %59 = arith.addf %55, %58 : vector<16x1xf32>
      %60 = math.rsqrt %59 : vector<16x1xf32>
      %61 = vector.broadcast %60 : vector<16x1xf32> to vector<16x64xf32>
      %62 = arith.mulf %57, %61 : vector<16x64xf32>
      %63 = vector.broadcast %43 : vector<1x64xf32> to vector<16x64xf32>
      %64 = arith.mulf %62, %63 : vector<16x64xf32>
      %65 = vector.broadcast %44 : vector<1x64xf32> to vector<16x64xf32>
      %66 = arith.addf %64, %65 : vector<16x64xf32>
      %67 = arith.truncf %66 : vector<16x64xf32> to vector<16x64xbf16>
      %c0_41 = arith.constant 0 : index
      %c0_42 = arith.constant 0 : index
      %68 = vector.load %arg15[%c0_41, %c0_42] : memref<16x64xbf16, #tpu.memory_space<vmem>>, vector<16x64xbf16>
      tpu.vector_store %arg15[%c0_41, %c0_42], %67 {strides = array<i32>} : memref<16x64xbf16, #tpu.memory_space<vmem>>, vector<16x64xbf16>,
      %cst_43 = arith.constant 0.000000e+00 : f32
      %69 = vector.broadcast %cst_43 : f32 to vector<16x64xf32>
      %c0_44 = arith.constant 0 : index
      %c0_45 = arith.constant 0 : index
      %70 = vector.load %arg16[%c0_44, %c0_45] : memref<16x64xf32, #tpu.memory_space<vmem>>, vector<16x64xf32>
      tpu.vector_store %arg16[%c0_44, %c0_45], %69 {strides = array<i32>} : memref<16x64xf32, #tpu.memory_space<vmem>>, vector<16x64xf32>,
    } else {
    }
    %c0 = arith.constant 0 : index
    %c0_1 = arith.constant 0 : index
    %3 = vector.load %arg15[%c0, %c0_1] : memref<16x64xbf16, #tpu.memory_space<vmem>>, vector<16x64xbf16>
    %c0_2 = arith.constant 0 : index
    %c0_3 = arith.constant 0 : index
    %4 = vector.load %arg9[%c0_2, %c0_3] : memref<64x256xbf16, #tpu.memory_space<vmem>>, vector<64x256xbf16>
    %cst = arith.constant dense<0.000000e+00> : vector<16x256xf32>
    %5 = tpu.matmul %3, %4, %cst {dimension_numbers = #tpu.dot_dimension_numbers<[1], [0], [0], [1], [0, 0, 1, 1], [], []>} : vector<16x64xbf16>, vector<64x256xbf16>, vector<16x256xf32> -> vector<16x256xf32>
    %c0_4 = arith.constant 0 : index
    %c0_5 = arith.constant 0 : index
    %6 = vector.load %arg10[%c0_4, %c0_5] : memref<1x256xf32, #tpu.memory_space<vmem>>, vector<1x256xf32>
    %7 = vector.broadcast %6 : vector<1x256xf32> to vector<16x256xf32>
    %8 = arith.addf %5, %7 : vector<16x256xf32>
    %cst_6 = arith.constant 5.000000e-01 : f32
    %9 = vector.broadcast %cst_6 : f32 to vector<16x256xf32>
    %10 = arith.mulf %9, %8 : vector<16x256xf32>
    %cst_7 = arith.constant 4.471500e-02 : f32
    %11 = vector.broadcast %cst_7 : f32 to vector<16x256xf32>
    %12 = arith.mulf %11, %8 : vector<16x256xf32>
    %13 = arith.mulf %12, %8 : vector<16x256xf32>
    %14 = arith.mulf %13, %8 : vector<16x256xf32>
    %15 = arith.addf %8, %14 : vector<16x256xf32>
    %cst_8 = arith.constant 0.797884583 : f32
    %16 = vector.broadcast %cst_8 : f32 to vector<16x256xf32>
    %17 = arith.mulf %16, %15 : vector<16x256xf32>
    %18 = math.tanh %17 : vector<16x256xf32>
    %cst_9 = arith.constant 1.000000e+00 : f32
    %19 = vector.broadcast %cst_9 : f32 to vector<16x256xf32>
    %20 = arith.addf %19, %18 : vector<16x256xf32>
    %21 = arith.mulf %10, %20 : vector<16x256xf32>
    %c0_10 = arith.constant 0 : index
    %c0_11 = arith.constant 0 : index
    %22 = vector.load %arg16[%c0_10, %c0_11] : memref<16x64xf32, #tpu.memory_space<vmem>>, vector<16x64xf32>
    %23 = arith.truncf %21 : vector<16x256xf32> to vector<16x256xbf16>
    %c0_12 = arith.constant 0 : index
    %c0_13 = arith.constant 0 : index
    %24 = vector.load %arg11[%c0_12, %c0_13] : memref<256x64xbf16, #tpu.memory_space<vmem>>, vector<256x64xbf16>
    %cst_14 = arith.constant dense<0.000000e+00> : vector<16x64xf32>
    %25 = tpu.matmul %23, %24, %cst_14 {dimension_numbers = #tpu.dot_dimension_numbers<[1], [0], [0], [1], [0, 0, 1, 1], [], []>} : vector<16x256xbf16>, vector<256x64xbf16>, vector<16x64xf32> -> vector<16x64xf32>
    %26 = arith.addf %22, %25 : vector<16x64xf32>
    %c0_15 = arith.constant 0 : index
    %c0_16 = arith.constant 0 : index
    %27 = vector.load %arg16[%c0_15, %c0_16] : memref<16x64xf32, #tpu.memory_space<vmem>>, vector<16x64xf32>
    tpu.vector_store %arg16[%c0_15, %c0_16], %26 {strides = array<i32>} : memref<16x64xf32, #tpu.memory_space<vmem>>, vector<16x64xf32>,
    %c0_i32_17 = arith.constant 0 : i32
    %28 = arith.cmpi eq, %arg2, %c0_i32_17 : i32
    %29 = arith.extui %28 : i1 to i32
    %c0_i32_18 = arith.constant 0 : i32
    %30 = arith.cmpi ne, %29, %c0_i32_18 : i32
    scf.if %30 {
      %c0_19 = arith.constant 0 : index
      %c0_20 = arith.constant 0 : index
      %31 = vector.load %arg14[%c0_19, %c0_20] : memref<16x64xf32, #tpu.memory_space<vmem>>, vector<16x64xf32>
      %c0_21 = arith.constant 0 : index
      %c0_22 = arith.constant 0 : index
      %32 = vector.load %arg16[%c0_21, %c0_22] : memref<16x64xf32, #tpu.memory_space<vmem>>, vector<16x64xf32>
      %33 = arith.addf %31, %32 : vector<16x64xf32>
      %c0_23 = arith.constant 0 : index
      %c0_24 = arith.constant 0 : index
      %34 = vector.load %arg12[%c0_23, %c0_24] : memref<1x64xf32, #tpu.memory_space<vmem>>, vector<1x64xf32>
      %35 = vector.broadcast %34 : vector<1x64xf32> to vector<16x64xf32>
      %36 = arith.addf %33, %35 : vector<16x64xf32>
      %37 = arith.truncf %36 : vector<16x64xf32> to vector<16x64xbf16>
      %c0_25 = arith.constant 0 : index
      %c0_26 = arith.constant 0 : index
      %c0_27 = arith.constant 0 : index
      %38 = vector.load %arg13[%c0_25, %c0_26, %c0_27] : memref<1x16x64xbf16, #tpu.memory_space<vmem>>, vector<1x16x64xbf16>
      %39 = vector.shape_cast %38 : vector<1x16x64xbf16> to vector<16x64xbf16>
      %40 = vector.shape_cast %37 : vector<16x64xbf16> to vector<1x16x64xbf16>
      tpu.vector_store %arg13[%c0_25, %c0_26, %c0_27], %40 {strides = array<i32>} : memref<1x16x64xbf16, #tpu.memory_space<vmem>>, vector<1x16x64xbf16>,
    } else {
    }
    return
  }
  func.func @transform_0(%arg0: i32, %arg1: i32, %arg2: i32) -> (i32, i32, i32) {
    %c0_i32 = arith.constant 0 : i32
    %c0_i32_0 = arith.constant 0 : i32
    return %arg0, %arg1, %c0_i32 : i32, i32, i32
  }
  func.func @transform_1(%arg0: i32, %arg1: i32, %arg2: i32) -> (i32, i32, i32) {
    %c0_i32 = arith.constant 0 : i32
    %c0_i32_0 = arith.constant 0 : i32
    return %arg0, %arg1, %c0_i32 : i32, i32, i32
  }
  func.func @transform_2(%arg0: i32, %arg1: i32, %arg2: i32) -> (i32, i32) {
    %c0_i32 = arith.constant 0 : i32
    %c0_i32_0 = arith.constant 0 : i32
    %c0_i32_1 = arith.constant 0 : i32
    return %c0_i32, %c0_i32_0 : i32, i32
  }
  func.func @transform_3(%arg0: i32, %arg1: i32, %arg2: i32) -> (i32, i32) {
    %c0_i32 = arith.constant 0 : i32
    %c0_i32_0 = arith.constant 0 : i32
    %c0_i32_1 = arith.constant 0 : i32
    return %c0_i32, %c0_i32_0 : i32, i32
  }
  func.func @transform_4(%arg0: i32, %arg1: i32, %arg2: i32) -> (i32, i32) {
    %c0_i32 = arith.constant 0 : i32
    %c0_i32_0 = arith.constant 0 : i32
    %c0_i32_1 = arith.constant 0 : i32
    return %c0_i32, %c0_i32_0 : i32, i32
  }
  func.func @transform_5(%arg0: i32, %arg1: i32, %arg2: i32) -> (i32, i32) {
    %c0_i32 = arith.constant 0 : i32
    %c0_i32_0 = arith.constant 0 : i32
    %c0_i32_1 = arith.constant 0 : i32
    return %c0_i32, %c0_i32_0 : i32, i32
  }
  func.func @transform_6(%arg0: i32, %arg1: i32, %arg2: i32) -> (i32, i32) {
    %c0_i32 = arith.constant 0 : i32
    %c0_i32_0 = arith.constant 0 : i32
    return %c0_i32, %arg2 : i32, i32
  }
  func.func @transform_7(%arg0: i32, %arg1: i32, %arg2: i32) -> (i32, i32) {
    %c0_i32 = arith.constant 0 : i32
    %c0_i32_0 = arith.constant 0 : i32
    return %c0_i32, %arg2 : i32, i32
  }
  func.func @transform_8(%arg0: i32, %arg1: i32, %arg2: i32) -> (i32, i32) {
    %c0_i32 = arith.constant 0 : i32
    %c0_i32_0 = arith.constant 0 : i32
    return %arg2, %c0_i32 : i32, i32
  }
  func.func @transform_9(%arg0: i32, %arg1: i32, %arg2: i32) -> (i32, i32) {
    %c0_i32 = arith.constant 0 : i32
    %c0_i32_0 = arith.constant 0 : i32
    %c0_i32_1 = arith.constant 0 : i32
    return %c0_i32, %c0_i32_0 : i32, i32
  }
  func.func @transform_10(%arg0: i32, %arg1: i32, %arg2: i32) -> (i32, i32, i32) {
    %c0_i32 = arith.constant 0 : i32
    %c0_i32_0 = arith.constant 0 : i32
    return %arg0, %arg1, %c0_i32 : i32, i32, i32
  }
}

module attributes {stable_mosaic.version = 11 : i64} {
  func.func @lm_head_kernel(%arg0: i32, %arg1: i32, %arg2: i32, %arg3: memref<1x16x64xbf16, #tpu.memory_space<vmem>>, %arg4: memref<1x64xf32, #tpu.memory_space<vmem>>, %arg5: memref<1x64xf32, #tpu.memory_space<vmem>>, %arg6: memref<64x256xbf16, #tpu.memory_space<vmem>>, %arg7: memref<1x16x256xbf16, #tpu.memory_space<vmem>>, %arg8: memref<16x64xbf16, #tpu.memory_space<vmem>>) attributes {dimension_semantics = [#tpu.dimension_semantics<parallel>, #tpu.dimension_semantics<parallel>, #tpu.dimension_semantics<arbitrary>], iteration_bounds = array<i64: 2, 1, 1>, scalar_prefetch = 0 : i64, scratch_operands = 1 : i64, tpu.core_type = #tpu.core_type<tc>, window_params = [{transform_indices = @transform_0, window_bounds = array<i64: 1, 16, 64>}, {pipeline_mode = #tpu.pipeline_mode<synchronous>, transform_indices = @transform_1, window_bounds = array<i64: 1, 64>}, {pipeline_mode = #tpu.pipeline_mode<synchronous>, transform_indices = @transform_2, window_bounds = array<i64: 1, 64>}, {transform_indices = @transform_3, window_bounds = array<i64: 64, 256>}, {transform_indices = @transform_4, window_bounds = array<i64: 1, 16, 256>}]} {
    %c0_i32 = arith.constant 0 : i32
    %0 = arith.cmpi eq, %arg2, %c0_i32 : i32
    %1 = arith.extui %0 : i1 to i32
    %c0_i32_0 = arith.constant 0 : i32
    %2 = arith.cmpi ne, %1, %c0_i32_0 : i32
    scf.if %2 {
      %c0_7 = arith.constant 0 : index
      %c0_8 = arith.constant 0 : index
      %c0_9 = arith.constant 0 : index
      %10 = vector.load %arg3[%c0_7, %c0_8, %c0_9] : memref<1x16x64xbf16, #tpu.memory_space<vmem>>, vector<1x16x64xbf16>
      %11 = vector.shape_cast %10 : vector<1x16x64xbf16> to vector<16x64xbf16>
      %12 = arith.extf %11 : vector<16x64xbf16> to vector<16x64xf32>
      %c0_10 = arith.constant 0 : index
      %c0_11 = arith.constant 0 : index
      %13 = vector.load %arg4[%c0_10, %c0_11] : memref<1x64xf32, #tpu.memory_space<vmem>>, vector<1x64xf32>
      %c0_12 = arith.constant 0 : index
      %c0_13 = arith.constant 0 : index
      %14 = vector.load %arg5[%c0_12, %c0_13] : memref<1x64xf32, #tpu.memory_space<vmem>>, vector<1x64xf32>
      %cst_14 = arith.constant dense<0.000000e+00> : vector<16xf32>
      %15 = vector.multi_reduction <add>, %12, %cst_14 [1] : vector<16x64xf32> to vector<16xf32>
      %16 = vector.shape_cast %15 : vector<16xf32> to vector<16x1xf32>
      %cst_15 = arith.constant 6.400000e+01 : f32
      %17 = vector.broadcast %cst_15 : f32 to vector<16x1xf32>
      %18 = arith.divf %16, %17 : vector<16x1xf32>
      %19 = vector.broadcast %18 : vector<16x1xf32> to vector<16x64xf32>
      %20 = arith.subf %12, %19 : vector<16x64xf32>
      %21 = arith.mulf %20, %20 : vector<16x64xf32>
      %cst_16 = arith.constant dense<0.000000e+00> : vector<16xf32>
      %22 = vector.multi_reduction <add>, %21, %cst_16 [1] : vector<16x64xf32> to vector<16xf32>
      %23 = vector.shape_cast %22 : vector<16xf32> to vector<16x1xf32>
      %cst_17 = arith.constant 6.400000e+01 : f32
      %24 = vector.broadcast %cst_17 : f32 to vector<16x1xf32>
      %25 = arith.divf %23, %24 : vector<16x1xf32>
      %26 = vector.broadcast %18 : vector<16x1xf32> to vector<16x64xf32>
      %27 = arith.subf %12, %26 : vector<16x64xf32>
      %cst_18 = arith.constant 9.99999974E-6 : f32
      %28 = vector.broadcast %cst_18 : f32 to vector<16x1xf32>
      %29 = arith.addf %25, %28 : vector<16x1xf32>
      %30 = math.rsqrt %29 : vector<16x1xf32>
      %31 = vector.broadcast %30 : vector<16x1xf32> to vector<16x64xf32>
      %32 = arith.mulf %27, %31 : vector<16x64xf32>
      %33 = vector.broadcast %13 : vector<1x64xf32> to vector<16x64xf32>
      %34 = arith.mulf %32, %33 : vector<16x64xf32>
      %35 = vector.broadcast %14 : vector<1x64xf32> to vector<16x64xf32>
      %36 = arith.addf %34, %35 : vector<16x64xf32>
      %37 = arith.truncf %36 : vector<16x64xf32> to vector<16x64xbf16>
      %c0_19 = arith.constant 0 : index
      %c0_20 = arith.constant 0 : index
      %38 = vector.load %arg8[%c0_19, %c0_20] : memref<16x64xbf16, #tpu.memory_space<vmem>>, vector<16x64xbf16>
      tpu.vector_store %arg8[%c0_19, %c0_20], %37 {strides = array<i32>} : memref<16x64xbf16, #tpu.memory_space<vmem>>, vector<16x64xbf16>,
    } else {
    }
    %c0 = arith.constant 0 : index
    %c0_1 = arith.constant 0 : index
    %3 = vector.load %arg8[%c0, %c0_1] : memref<16x64xbf16, #tpu.memory_space<vmem>>, vector<16x64xbf16>
    %c0_2 = arith.constant 0 : index
    %c0_3 = arith.constant 0 : index
    %4 = vector.load %arg6[%c0_2, %c0_3] : memref<64x256xbf16, #tpu.memory_space<vmem>>, vector<64x256xbf16>
    %cst = arith.constant dense<0.000000e+00> : vector<16x256xf32>
    %5 = tpu.matmul %3, %4, %cst {dimension_numbers = #tpu.dot_dimension_numbers<[1], [0], [0], [1], [0, 0, 1, 1], [], []>} : vector<16x64xbf16>, vector<64x256xbf16>, vector<16x256xf32> -> vector<16x256xf32>
    %6 = arith.truncf %5 : vector<16x256xf32> to vector<16x256xbf16>
    %c0_4 = arith.constant 0 : index
    %c0_5 = arith.constant 0 : index
    %c0_6 = arith.constant 0 : index
    %7 = vector.load %arg7[%c0_4, %c0_5, %c0_6] : memref<1x16x256xbf16, #tpu.memory_space<vmem>>, vector<1x16x256xbf16>
    %8 = vector.shape_cast %7 : vector<1x16x256xbf16> to vector<16x256xbf16>
    %9 = vector.shape_cast %6 : vector<16x256xbf16> to vector<1x16x256xbf16>
    tpu.vector_store %arg7[%c0_4, %c0_5, %c0_6], %9 {strides = array<i32>} : memref<1x16x256xbf16, #tpu.memory_space<vmem>>, vector<1x16x256xbf16>,
    return
  }
  func.func @transform_0(%arg0: i32, %arg1: i32, %arg2: i32) -> (i32, i32, i32) {
    %c0_i32 = arith.constant 0 : i32
    %c0_i32_0 = arith.constant 0 : i32
    return %arg0, %arg1, %c0_i32 : i32, i32, i32
  }
  func.func @transform_1(%arg0: i32, %arg1: i32, %arg2: i32) -> (i32, i32) {
    %c0_i32 = arith.constant 0 : i32
    %c0_i32_0 = arith.constant 0 : i32
    %c0_i32_1 = arith.constant 0 : i32
    return %c0_i32, %c0_i32_0 : i32, i32
  }
  func.func @transform_2(%arg0: i32, %arg1: i32, %arg2: i32) -> (i32, i32) {
    %c0_i32 = arith.constant 0 : i32
    %c0_i32_0 = arith.constant 0 : i32
    %c0_i32_1 = arith.constant 0 : i32
    return %c0_i32, %c0_i32_0 : i32, i32
  }
  func.func @transform_3(%arg0: i32, %arg1: i32, %arg2: i32) -> (i32, i32) {
    %c0_i32 = arith.constant 0 : i32
    %c0_i32_0 = arith.constant 0 : i32
    return %c0_i32, %arg2 : i32, i32
  }
  func.func @transform_4(%arg0: i32, %arg1: i32, %arg2: i32) -> (i32, i32, i32) {
    %c0_i32 = arith.constant 0 : i32
    return %arg0, %arg1, %arg2 : i32, i32, i32
  }
}

</mosaic_0001>

<llo_original>
// kernel: gpt_forward.7
$region0: #{gpt_forward.7}
  #allocation0 [shape = 'u32[]', space=smem, size = 0x4, offset = 0x4, fixed_abs, tag = 'smem constant byte address 0x4 - core index']
  #allocation1 [shape = 'u32[144,128]{1,0:T(1,128)}', space=vmem, size = 0x12000, scoped, tag = 'internal scratch']
  %s0 = inlined_call_operand.vmem [shape: bf16[2,16,64], index: 0, kind: input, shape index: {}]
  %s1 = inlined_call_operand.vmem [shape: f32[1,64], index: 1, kind: input, shape index: {}]
  %s2 = inlined_call_operand.vmem [shape: f32[1,64], index: 2, kind: input, shape index: {}]
  %s3 = inlined_call_operand.vmem [shape: bf16[64,192], index: 3, kind: input, shape index: {}]
  %s4 = inlined_call_operand.vmem [shape: bf16[2,16,192], index: 4, kind: output, shape index: {}]
  %s5 = sld [smem:[#allocation0]]
  $region49: #{gpt_forward.7} parent=0
    _
  %s7 = ssub.s32 1, %s5
  %s8 = scalar_select 0, %s7, %s5
  loop: start=0, step=1, limit=4
  $region2: #{gpt_forward.7} parent=0 // loop_pre_header
    _
  $region3: #{gpt_forward.7} parent=0 // loop_header
    %s10 = sphi 0, %s14
    %p11 = scmp.ge.s32.totalorder %s10, 4
    %s17 = sphi 0, %s29
    %s18 = sphi 0, %s25
    %s19 = sphi 0, %s17
    %s20 = sphi 0, %s18
    %s21 = sphi 0, %s19
    %s22 = sphi 0, %s20
    %s34 = sphi 0, %s36
    %s37 = sphi 0, %s34
    %s38 = sphi 0, %s37
    %s54 = sphi 0, %s38
    %s58 = sphi 0, %s58
    %s60 = sphi 0, %s58
    %s61 = sphi 0, %s60
    %s75 = sphi 0, %s61
    %s79 = sphi 0, %s79
    %s81 = sphi 0, %s79
    %s82 = sphi 0, %s81
    %s96 = sphi 0, %s82
    %s100 = sphi 0, %s100
    %s102 = sphi 0, %s100
    %s103 = sphi 0, %s102
    %s117 = sphi 0, %s103
    %s125 = sphi 0, %s127
    %s128 = sphi 0, %s125
    %s129 = sphi 0, %s128
    %s145 = sphi 0, %s129
  $region4: #{gpt_forward.7} parent=0 // loop_header_branch
    %13 = sbr.rel (%p11) target = $region8
  $region5: #{gpt_forward.7} parent=0 // loop_body
    %s15 = ssub.s32 %s10, 1
    %s16 = ssub.s32 %s10, 2
    %s23 = sadd.s32 1, %s18
    %p24 = scmp.ge.s32.totalorder %s23, 1
    %s25 = scalar_select %p24, 0, %s23
    %s26 = sadd.s32 1, %s17
    %s27 = scalar_select %p24, %s26, %s17
    %p28 = scmp.ge.s32.totalorder %s27, 2
    %s29 = scalar_select %p28, 0, %s27
    %s30 = ssub.s32 %s17, %s29
    %s31 = ssub.s32 %s18, %s25
    %s32 = sor.u32 %s30, %s31
    %p33 = scmp.eq.s32.totalorder %s32, 0
    %s35 = sadd.s32 %s34, 1
    %s36 = scalar_select %p33, %s34, %s35
    %p39 = pneg %p33
    %p40 = scmp.eq.s32.totalorder %s10, 1
    %p41 = por %p39, %p40
    %p42 = scmp.ne.s32.totalorder %s34, %s37
    %p43 = scmp.eq.s32.totalorder %s10, 0
    %p44 = por %p42, %p43
    %p45 = scmp.ne.s32.totalorder %s34, %s37
    %p46 = scmp.eq.s32.totalorder %s15, 1
    %p47 = por %p45, %p46
    %p48 = scmp.ne.s32.totalorder %s37, %s38
    %p49 = scmp.eq.s32.totalorder %s15, 0
    %p50 = por %p48, %p49
    %p51 = scmp.ne.s32.totalorder %s37, %s38
    %p52 = scmp.eq.s32.totalorder %s16, 1
    %p53 = por %p51, %p52
    %p55 = scmp.ne.s32.totalorder %s38, %s54
    %p56 = scmp.eq.s32.totalorder %s16, 0
    %p57 = por %p55, %p56
    %s59 = sadd.s32 %s58, 1
    %p62 = scmp.eq.s32.totalorder %s10, 1
    %p63 = scmp.ne.s32.totalorder %s58, %s60
    %p64 = scmp.eq.s32.totalorder %s10, 0
    %p65 = por %p63, %p64
    %p66 = scmp.ne.s32.totalorder %s58, %s60
    %p67 = scmp.eq.s32.totalorder %s15, 1
    %p68 = por %p66, %p67
    %p69 = scmp.ne.s32.totalorder %s60, %s61
    %p70 = scmp.eq.s32.totalorder %s15, 0
    %p71 = por %p69, %p70
    %p72 = scmp.ne.s32.totalorder %s60, %s61
    %p73 = scmp.eq.s32.totalorder %s16, 1
    %p74 = por %p72, %p73
    %p76 = scmp.ne.s32.totalorder %s61, %s75
    %p77 = scmp.eq.s32.totalorder %s16, 0
    %p78 = por %p76, %p77
    %s80 = sadd.s32 %s79, 1
    %p83 = scmp.eq.s32.totalorder %s10, 1
    %p84 = scmp.ne.s32.totalorder %s79, %s81
    %p85 = scmp.eq.s32.totalorder %s10, 0
    %p86 = por %p84, %p85
    %p87 = scmp.ne.s32.totalorder %s79, %s81
    %p88 = scmp.eq.s32.totalorder %s15, 1
    %p89 = por %p87, %p88
    %p90 = scmp.ne.s32.totalorder %s81, %s82
    %p91 = scmp.eq.s32.totalorder %s15, 0
    %p92 = por %p90, %p91
    %p93 = scmp.ne.s32.totalorder %s81, %s82
    %p94 = scmp.eq.s32.totalorder %s16, 1
    %p95 = por %p93, %p94
    %p97 = scmp.ne.s32.totalorder %s82, %s96
    %p98 = scmp.eq.s32.totalorder %s16, 0
    %p99 = por %p97, %p98
    %s101 = sadd.s32 %s100, 1
    %p104 = scmp.eq.s32.totalorder %s10, 1
    %p105 = scmp.ne.s32.totalorder %s100, %s102
    %p106 = scmp.eq.s32.totalorder %s10, 0
    %p107 = por %p105, %p106
    %p108 = scmp.ne.s32.totalorder %s100, %s102
    %p109 = scmp.eq.s32.totalorder %s15, 1
    %p110 = por %p108, %p109
    %p111 = scmp.ne.s32.totalorder %s102, %s103
    %p112 = scmp.eq.s32.totalorder %s15, 0
    %p113 = por %p111, %p112
    %p114 = scmp.ne.s32.totalorder %s102, %s103
    %p115 = scmp.eq.s32.totalorder %s16, 1
    %p116 = por %p114, %p115
    %p118 = scmp.ne.s32.totalorder %s103, %s117
    %p119 = scmp.eq.s32.totalorder %s16, 0
    %p120 = por %p118, %p119
    %s121 = ssub.s32 %s17, %s29
    %s122 = ssub.s32 %s18, %s25
    %s123 = sor.u32 %s121, %s122
    %p124 = scmp.eq.s32.totalorder %s123, 0
    %s126 = sadd.s32 %s125, 1
    %s127 = scalar_select %p124, %s125, %s126
    %p130 = pneg %p124
    %p131 = scmp.eq.s32.totalorder %s10, 1
    %p132 = por %p130, %p131
    %p133 = scmp.ne.s32.totalorder %s125, %s128
    %p134 = scmp.eq.s32.totalorder %s10, 0
    %p135 = por %p133, %p134
    %p136 = scmp.ne.s32.totalorder %s125, %s128
    %p137 = scmp.eq.s32.totalorder %s15, 1
    %p138 = por %p136, %p137
    %p139 = scmp.ne.s32.totalorder %s128, %s129
    %p140 = scmp.eq.s32.totalorder %s15, 0
    %p141 = por %p139, %p140
    %p142 = scmp.ne.s32.totalorder %s128, %s129
    %p143 = scmp.eq.s32.totalorder %s16, 1
    %p144 = por %p142, %p143
    %p146 = scmp.ne.s32.totalorder %s129, %s145
    %p147 = scmp.eq.s32.totalorder %s16, 0
    %p148 = por %p146, %p147
    %p149 = scmp.le.s32.totalorder 1, %s10
    %p150 = scmp.lt.s32.totalorder %s10, 3
    %p151 = pnand %p149, %p150
    %p152 = pneg %p151
    // Predicated region
    $region9: #{gpt_forward.7} parent=5 // pred_check
      _
    $region10: #{gpt_forward.7} parent=5 // pred_check_branch
      %154 = sbr.rel (%p151) target = $region12
    $region11: #{gpt_forward.7} parent=5 // pred_region
      %s155 = ssub.s32 %s10, 1
      // Predicated region
      $region13: #{gpt_forward.7} parent=11 // pred_check
        %p156 = pneg %p71
      $region14: #{gpt_forward.7} parent=11 // pred_check_branch
        %158 = sbr.rel (%p156) target = $region16
      $region15: #{gpt_forward.7} parent=11 // pred_region
        _
      $region16: #{gpt_forward.7} parent=11 // pred_fallthru
        _
      // Predicated region
      $region17: #{gpt_forward.7} parent=11 // pred_check
        %p159 = pneg %p92
      $region18: #{gpt_forward.7} parent=11 // pred_check_branch
        %161 = sbr.rel (%p159) target = $region20
      $region19: #{gpt_forward.7} parent=11 // pred_region
        _
      $region20: #{gpt_forward.7} parent=11 // pred_fallthru
        _
      // Predicated region
      $region21: #{gpt_forward.7} parent=11 // pred_check
        %p162 = pneg %p113
      $region22: #{gpt_forward.7} parent=11 // pred_check_branch
        %164 = sbr.rel (%p162) target = $region24
      $region23: #{gpt_forward.7} parent=11 // pred_region
        _
      $region24: #{gpt_forward.7} parent=11 // pred_fallthru
        _
    $region12: #{gpt_forward.7} parent=5 // pred_fallthru
      _
    %p165 = scmp.lt.s32.totalorder %s10, 2
    // Predicated region
    $region25: #{gpt_forward.7} parent=5 // pred_check
      %p166 = pneg %p165
    $region26: #{gpt_forward.7} parent=5 // pred_check_branch
      %168 = sbr.rel (%p166) target = $region28
    $region27: #{gpt_forward.7} parent=5 // pred_region
      // Predicated region
      $region29: #{gpt_forward.7} parent=27 // pred_check
        %p169 = pneg %p44
      $region30: #{gpt_forward.7} parent=27 // pred_check_branch
        %171 = sbr.rel (%p169) target = $region32
      $region31: #{gpt_forward.7} parent=27 // pred_region
        %s172 = smul.u32 2, %s18
        %p173 = scmp.lt.s32.totalorder %s17, 1
        %s174 = scalar_select %p173, %s17, 1
        %p175 = scmp.lt.s32.totalorder %s172, 1
        %s176 = scalar_select %p175, %s172, 1
        %s177 = smul.addr %s174, 2
        %s178 = sadd.s32 %s176, %s177
        %s179 = smul.addr %s178, 4
        %s180 = scalar_lea.vmem %s0, %s179
        %s181 = smul.u32 2, %s18
      $region32: #{gpt_forward.7} parent=27 // pred_fallthru
        _
    $region28: #{gpt_forward.7} parent=5 // pred_fallthru
      _
    %p182 = scmp.le.s32.totalorder 1, %s10
    %p183 = scmp.lt.s32.totalorder %s10, 3
    %p184 = pnand %p182, %p183
    %p185 = pneg %p184
    // Predicated region
    $region33: #{gpt_forward.7} parent=5 // pred_check
      _
    $region34: #{gpt_forward.7} parent=5 // pred_check_branch
      %187 = sbr.rel (%p184) target = $region36
    $region35: #{gpt_forward.7} parent=5 // pred_region
      %s188 = ssub.s32 %s10, 1
      %s189 = smul.u32 2, %s20
      %p190 = scmp.lt.s32.totalorder %s19, 1
      %s191 = scalar_select %p190, %s19, 1
      %p192 = scmp.lt.s32.totalorder %s189, 1
      %s193 = scalar_select %p192, %s189, 1
      %s194 = smul.addr %s191, 2
      %s195 = sadd.s32 %s193, %s194
      %s196 = smul.addr %s195, 4
      %s197 = scalar_lea.vmem %s0, %s196
      %p198 = pneg %p50
      %p199 = pneg %p47
      %p200 = pneg %p71
      %p201 = pneg %p68
      %p202 = pneg %p92
      %p203 = pneg %p89
      %p204 = pneg %p113
      %p205 = pneg %p110
      %p206 = pneg %p141
      %p207 = pneg %p138
      %s208 = smul.u32 2, %s20
      %p209 = scmp.lt.s32.totalorder %s19, 1
      %s210 = scalar_select %p209, %s19, 1
      %p211 = scmp.lt.s32.totalorder %s208, 1
      %s212 = scalar_select %p211, %s208, 1
      %s213 = smul.addr %s212, 2
      %s214 = smul.addr %s210, 4
      %s215 = sadd.s32 %s213, %s214
      %s216 = smul.addr %s215, 4
      %s217 = scalar_lea.vmem %s4, %s216
      %s218 = smul.u32 2, %s20
      %p219 = scmp.lt.s32.totalorder %s19, 1
      %s220 = scalar_select %p219, %s19, 1
      %p221 = scmp.lt.s32.totalorder %s218, 1
      %s222 = scalar_select %p221, %s218, 1
      %s223 = smul.addr %s220, 2
      %s224 = sadd.s32 %s222, %s223
      %s225 = smul.addr %s224, 4
      %s226 = scalar_lea.vmem %s0, %s225
      %s227 = smul.u32 2, %s20
      %s228 = smul.u32 2, %s20
      %p229 = scmp.lt.s32.totalorder %s19, 1
      %s230 = scalar_select %p229, %s19, 1
      %p231 = scmp.lt.s32.totalorder %s228, 1
      %s232 = scalar_select %p231, %s228, 1
      %s233 = smul.addr %s232, 2
      %s234 = smul.addr %s230, 4
      %s235 = sadd.s32 %s233, %s234
      %s236 = smul.addr %s235, 4
      %s237 = scalar_lea.vmem %s4, %s236
      %s238 = smul.u32 2, %s20
      %v240 = vld [vmem:[%s226] sm:$0xf]
      %v241 = vld [vmem:[%s226 + $0x4] sm:$0xf]
      %v242 = vunpack.c.l.bf16 %v240
      %v243 = vunpack.c.l.bf16 %v241
      %v244 = vld [vmem:[%s1] sm:$0x1]
      %v245 = vld [vmem:[%s2] sm:$0x1]
      %vm246 = vcmask 523264
      %v247 = vsel %vm246, %v242, 0.0
      %248 = vadd.xlane.f32.xlu0 %v247
      %v249 = vpop.xlane.xlu0 %248
      %v250 = vsel %vm246, %v243, 0.0
      %251 = vadd.xlane.f32.xlu0 %v250
      %v252 = vpop.xlane.xlu0 %251
      %v253 = vrcp.pop 64.0
      %v254 = vmul.f32 %v249, %v253
      %v255 = vmul.f32 %v252, %v253
      %v256 = vsub.f32 %v242, %v254
      %v257 = vsub.f32 %v243, %v255
      %v258 = vmul.f32 %v256, %v256
      %v259 = vmul.f32 %v257, %v257
      %v260 = vsel %vm246, %v258, 0.0
      %261 = vadd.xlane.f32.xlu0 %v260
      %v262 = vpop.xlane.xlu0 %261
      %v263 = vsel %vm246, %v259, 0.0
      %264 = vadd.xlane.f32.xlu0 %v263
      %v265 = vpop.xlane.xlu0 %264
      %v266 = vmul.f32 %v262, %v253
      %v267 = vmul.f32 %v265, %v253
      %v268 = vadd.f32 %v266, 1e-05
      %v269 = vadd.f32 %v267, 1e-05
      %v270 = vrsqrt.pop %v268
      %v271 = vrsqrt.pop %v269
      %v272 = vmul.f32 %v256, %v270
      %v273 = vmul.f32 %v257, %v271
      %v275 = vlaneseq
      %v276 = vshrl.u32 %v275, 7
      %v277 = vsub.s32 0, %v276
      %v278 = vrot.slane %v244, %v277
      %v280 = vmul.f32 %v272, %v278
      %v281 = vmul.f32 %v273, %v278
      %v283 = vlaneseq
      %v284 = vshrl.u32 %v283, 7
      %v285 = vsub.s32 0, %v284
      %v286 = vrot.slane %v245, %v285
      %v288 = vadd.f32 %v280, %v286
      %v289 = vadd.f32 %v281, %v286
      %v290 = vpack.c.bf16 %v289, %v288
      %v291 = vld [vmem:[%s3] sm:$0xff]
      %v292 = vld [vmem:[%s3 + $0x8] sm:$0xff]
      %v293 = vld [vmem:[%s3 + $0x10] sm:$0xff]
      %v294 = vld [vmem:[%s3 + $0x18] sm:$0xff]
      %v295 = vld [vmem:[%s3 + $0x20] sm:$0xff]
      %v296 = vld [vmem:[%s3 + $0x28] sm:$0xff]
      %v297 = vld [vmem:[%s3 + $0x30] sm:$0xff]
      %v298 = vld [vmem:[%s3 + $0x38] sm:$0xff]
      %v307 = vunpack.c.l.b16 %v291
      %v308 = vunpack.c.h.b16 %v291
      %v309 = vunpack.c.l.b16 %v292
      %v310 = vunpack.c.h.b16 %v292
      %v311 = vunpack.c.l.b16 %v293
      %v312 = vunpack.c.h.b16 %v293
      %v313 = vunpack.c.l.b16 %v294
      %v314 = vunpack.c.h.b16 %v294
      %v315 = vunpack.c.l.b16 %v295
      %v316 = vunpack.c.h.b16 %v295
      %v317 = vunpack.c.l.b16 %v296
      %v318 = vunpack.c.h.b16 %v296
      %v319 = vunpack.c.l.b16 %v297
      %v320 = vunpack.c.h.b16 %v297
      %v321 = vunpack.c.l.b16 %v298
      %v322 = vunpack.c.h.b16 %v298
      %v323 = vpack.c.b16 %v309, %v307
      %v324 = vpack.c.b16 %v310, %v308
      %v325 = vpack.c.b16 %v313, %v311
      %v326 = vpack.c.b16 %v314, %v312
      %v327 = vpack.c.b16 %v317, %v315
      %v328 = vpack.c.b16 %v318, %v316
      %v329 = vpack.c.b16 %v321, %v319
      %v330 = vpack.c.b16 %v322, %v320
      %v340 = vsel %vm246, %v290, 0
      %342 = vmatprep.subr.bf16.mxu0 0
      %343 = vmatpush1.bf16.msra.mxu0 0
      %344 = vmatprep.subr.bf16.mxu0 0
      %345 = vmatpush1.bf16.msra.mxu0 0
      %346 = vmatprep.subr.bf16.mxu0 0
      %347 = vmatpush1.bf16.msra.mxu0 0
      %348 = vmatprep.subr.bf16.mxu0 0
      %349 = vmatpush1.bf16.msra.mxu0 0
      %350 = vmatprep.subr.bf16.mxu0 %v330
      %351 = vmatpush1.bf16.msra.mxu0 %v329
      %352 = vmatprep.subr.bf16.mxu0 %v328
      %353 = vmatpush1.bf16.msra.mxu0 %v327
      %354 = vmatprep.subr.bf16.mxu0 %v326
      %355 = vmatpush1.bf16.msra.mxu0 %v325
      %356 = vmatprep.subr.bf16.mxu0 %v324
      %357 = vmatpush1.bf16.msra.mxu0 %v323
      %358 = vmatprep.subr.bf16.mxu0 0
      %359 = vmatpush2.bf16.msra.mxu0 0
      %360 = vmatprep.subr.bf16.mxu0 0
      %361 = vmatpush2.bf16.msra.mxu0 0
      %362 = vmatprep.subr.bf16.mxu0 0
      %363 = vmatpush2.bf16.msra.mxu0 0
      %364 = vmatprep.subr.bf16.mxu0 0
      %365 = vmatpush2.bf16.msra.mxu0 0
      %366 = vmatprep.subr.bf16.mxu0 0
      %367 = vmatpush2.bf16.msra.mxu0 0
      %368 = vmatprep.subr.bf16.mxu0 0
      %369 = vmatpush2.bf16.msra.mxu0 0
      %370 = vmatprep.subr.bf16.mxu0 0
      %371 = vmatpush2.bf16.msra.mxu0 0
      %372 = vmatprep.subr.bf16.mxu0 0
      %373 = vmatpush2.bf16.msra.mxu0 0
      %374 = vmatprep.mubr.bf16.mxu0 0
      %375 = vmatmul.mubr.bf16.gmra.mxu0 %v340
      %v376 = vpop.f32.mrf.mxu0
      %v377 = vadd.f32 0.0, %v376
      %v378 = vpop.f32.mrf.mxu0
      %v379 = vadd.f32 0.0, %v378
      %v380 = vpop.f32.mrf.mxu0
      %v381 = vadd.f32 0.0, %v380
      %v382 = vpop.f32.mrf.mxu0
      %v383 = vadd.f32 0.0, %v382
      %384 = vdwg.mxu0
      %v385 = vpack.c.bf16 %v381, %v377
      %v386 = vpack.c.bf16 %v383, %v379
      %v389 = vunpack.c.l.b16 %v385
      %v390 = vunpack.c.l.b16 %v386
      %v391 = vunpack.c.h.b16 %v385
      %v392 = vunpack.c.h.b16 %v386
      %v393 = vpack.c.b16 %v390, %v389
      %v394 = vpack.c.b16 %v392, %v391
      %vm397 = vcmask 1043456
      %vm398 = vcmask 523268
      %vm399 = vmor %vm398, %vm397
      %400 = vst.msk [vmem:[%s237] sm:$0xff] %vm399, %v393
      %401 = vst.msk [vmem:[%s237 + $0x8] sm:$0xff] %vm399, %v394
      %s402 = smul.u32 2, %s20
      %p403 = scmp.lt.s32.totalorder %s19, 1
      %s404 = scalar_select %p403, %s19, 1
      %p405 = scmp.lt.s32.totalorder %s402, 1
      %s406 = scalar_select %p405, %s402, 1
      %s407 = smul.addr %s406, 2
      %s408 = smul.addr %s404, 4
      %s409 = sadd.s32 %s407, %s408
      %s410 = smul.addr %s409, 4
      %s411 = scalar_lea.vmem %s4, %s410
      // Predicated region
      $region37: #{gpt_forward.7} parent=35 // pred_check
        %p412 = pneg %p138
      $region38: #{gpt_forward.7} parent=35 // pred_check_branch
        %414 = sbr.rel (%p412) target = $region40
      $region39: #{gpt_forward.7} parent=35 // pred_region
        %s415 = smul.u32 2, %s20
      $region40: #{gpt_forward.7} parent=35 // pred_fallthru
        _
    $region36: #{gpt_forward.7} parent=5 // pred_fallthru
      _
    %p416 = scmp.le.s32.totalorder 2, %s10
    // Predicated region
    $region41: #{gpt_forward.7} parent=5 // pred_check
      %p417 = pneg %p416
    $region42: #{gpt_forward.7} parent=5 // pred_check_branch
      %419 = sbr.rel (%p417) target = $region44
    $region43: #{gpt_forward.7} parent=5 // pred_region
      %s420 = ssub.s32 %s10, 2
      // Predicated region
      $region45: #{gpt_forward.7} parent=43 // pred_check
        %p421 = pneg %p144
      $region46: #{gpt_forward.7} parent=43 // pred_check_branch
        %423 = sbr.rel (%p421) target = $region48
      $region47: #{gpt_forward.7} parent=43 // pred_region
        %s424 = smul.u32 2, %s22
        %p425 = scmp.lt.s32.totalorder %s21, 1
        %s426 = scalar_select %p425, %s21, 1
        %p427 = scmp.lt.s32.totalorder %s424, 1
        %s428 = scalar_select %p427, %s424, 1
        %s429 = smul.addr %s428, 2
        %s430 = smul.addr %s426, 4
        %s431 = sadd.s32 %s429, %s430
        %s432 = smul.addr %s431, 4
        %s433 = scalar_lea.vmem %s4, %s432
      $region48: #{gpt_forward.7} parent=43 // pred_fallthru
        _
    $region44: #{gpt_forward.7} parent=5 // pred_fallthru
      _
  $region6: #{gpt_forward.7} parent=0 // loop_footer
    %s14 = sadd.s32 1, %s10
  $region7: #{gpt_forward.7} parent=0 // loop_footer_branch
    %9 = sbr.rel target = $region3
  $region8: #{gpt_forward.7} parent=0 // loop_exit
    _

// kernel: gpt_forward.13
$region0: #{gpt_forward.13}
  #allocation0 [shape = 'u32[]', space=smem, size = 0x4, offset = 0x4, fixed_abs, tag = 'smem constant byte address 0x4 - core index']
  #allocation1 [shape = 'u32[144,128]{1,0:T(1,128)}', space=vmem, size = 0x12000, scoped, tag = 'internal scratch']
  #allocation2 [shape = 'bf16[16,64]{1,0:T(8,128)(2,1)}', space=vmem, size = 0x1000, scoped, tag = 'scratch operand']
  %s0 = inlined_call_operand.vmem [shape: bf16[2,16,64], index: 0, kind: input, shape index: {}]
  %s1 = inlined_call_operand.vmem [shape: f32[1,64], index: 1, kind: input, shape index: {}]
  %s2 = inlined_call_operand.vmem [shape: f32[1,64], index: 2, kind: input, shape index: {}]
  %s3 = inlined_call_operand.vmem [shape: bf16[64,256], index: 3, kind: input, shape index: {}]
  %s4 = inlined_call_operand.hbm [shape: bf16[2,16,256], index: 4, kind: output, shape index: {}]
  %s5 = sld [smem:[#allocation0]]
  $region53: #{gpt_forward.13} parent=0
    _
  %s7 = ssub.s32 1, %s5
  %s8 = scalar_select 0, %s7, %s5
  $region1: #{gpt_forward.13} parent=0
    #allocation3 [shape = 'u8[16384]{0}', space=vmem, size = 0x4000, scoped, tag = 'output window, operand 0']
    #allocation4 [shape = 's32[2]{0}', space=sflag, size = 0x8, scoped, tag = 'scoped memory for gpt_forward.13']
    %9 = vsyncpa [#allocation4], 0
    %s10 = scalar_lea.sflag [#allocation4], 1
    %11 = vsyncpa %s10, 0
    loop: start=0, step=1, limit=4
    $region2: #{gpt_forward.13} parent=1 // loop_pre_header
      _
    $region3: #{gpt_forward.13} parent=1 // loop_header
      %s13 = sphi 0, %s17
      %p14 = scmp.ge.s32.totalorder %s13, 4
      %s20 = sphi 0, %s39
      %s21 = sphi 0, %s35
      %s22 = sphi 0, %s31
      %s23 = sphi 0, %s20
      %s24 = sphi 0, %s21
      %s25 = sphi 0, %s22
      %s26 = sphi 0, %s23
      %s27 = sphi 0, %s24
      %s28 = sphi 0, %s25
      %s44 = sphi 0, %s46
      %s47 = sphi 0, %s44
      %s48 = sphi 0, %s47
      %s64 = sphi 0, %s48
      %s68 = sphi 0, %s68
      %s70 = sphi 0, %s68
      %s71 = sphi 0, %s70
      %s85 = sphi 0, %s71
      %s89 = sphi 0, %s89
      %s91 = sphi 0, %s89
      %s92 = sphi 0, %s91
      %s106 = sphi 0, %s92
      %s112 = sphi 0, %s114
      %s115 = sphi 0, %s112
      %s116 = sphi 0, %s115
      %s132 = sphi 0, %s116
      %s142 = sphi 0, %s144
      %s145 = sphi 0, %s142
      %s146 = sphi 0, %s145
      %s162 = sphi 0, %s146
    $region4: #{gpt_forward.13} parent=1 // loop_header_branch
      %16 = sbr.rel (%p14) target = $region8
    $region5: #{gpt_forward.13} parent=1 // loop_body
      %s18 = ssub.s32 %s13, 1
      %s19 = ssub.s32 %s13, 2
      %s29 = sadd.s32 1, %s22
      %p30 = scmp.ge.s32.totalorder %s29, 1
      %s31 = scalar_select %p30, 0, %s29
      %s32 = sadd.s32 1, %s21
      %s33 = scalar_select %p30, %s32, %s21
      %p34 = scmp.ge.s32.totalorder %s33, 1
      %s35 = scalar_select %p34, 0, %s33
      %s36 = sadd.s32 1, %s20
      %s37 = scalar_select %p34, %s36, %s20
      %p38 = scmp.ge.s32.totalorder %s37, 2
      %s39 = scalar_select %p38, 0, %s37
      %s40 = ssub.s32 %s20, %s39
      %s41 = ssub.s32 %s21, %s35
      %s42 = sor.u32 %s40, %s41
      %p43 = scmp.eq.s32.totalorder %s42, 0
      %s45 = sadd.s32 %s44, 1
      %s46 = scalar_select %p43, %s44, %s45
      %p49 = pneg %p43
      %p50 = scmp.eq.s32.totalorder %s13, 1
      %p51 = por %p49, %p50
      %p52 = scmp.ne.s32.totalorder %s44, %s47
      %p53 = scmp.eq.s32.totalorder %s13, 0
      %p54 = por %p52, %p53
      %p55 = scmp.ne.s32.totalorder %s44, %s47
      %p56 = scmp.eq.s32.totalorder %s18, 1
      %p57 = por %p55, %p56
      %p58 = scmp.ne.s32.totalorder %s47, %s48
      %p59 = scmp.eq.s32.totalorder %s18, 0
      %p60 = por %p58, %p59
      %p61 = scmp.ne.s32.totalorder %s47, %s48
      %p62 = scmp.eq.s32.totalorder %s19, 1
      %p63 = por %p61, %p62
      %p65 = scmp.ne.s32.totalorder %s48, %s64
      %p66 = scmp.eq.s32.totalorder %s19, 0
      %p67 = por %p65, %p66
      %s69 = sadd.s32 %s68, 1
      %p72 = scmp.eq.s32.totalorder %s13, 1
      %p73 = scmp.ne.s32.totalorder %s68, %s70
      %p74 = scmp.eq.s32.totalorder %s13, 0
      %p75 = por %p73, %p74
      %p76 = scmp.ne.s32.totalorder %s68, %s70
      %p77 = scmp.eq.s32.totalorder %s18, 1
      %p78 = por %p76, %p77
      %p79 = scmp.ne.s32.totalorder %s70, %s71
      %p80 = scmp.eq.s32.totalorder %s18, 0
      %p81 = por %p79, %p80
      %p82 = scmp.ne.s32.totalorder %s70, %s71
      %p83 = scmp.eq.s32.totalorder %s19, 1
      %p84 = por %p82, %p83
      %p86 = scmp.ne.s32.totalorder %s71, %s85
      %p87 = scmp.eq.s32.totalorder %s19, 0
      %p88 = por %p86, %p87
      %s90 = sadd.s32 %s89, 1
      %p93 = scmp.eq.s32.totalorder %s13, 1
      %p94 = scmp.ne.s32.totalorder %s89, %s91
      %p95 = scmp.eq.s32.totalorder %s13, 0
      %p96 = por %p94, %p95
      %p97 = scmp.ne.s32.totalorder %s89, %s91
      %p98 = scmp.eq.s32.totalorder %s18, 1
      %p99 = por %p97, %p98
      %p100 = scmp.ne.s32.totalorder %s91, %s92
      %p101 = scmp.eq.s32.totalorder %s18, 0
      %p102 = por %p100, %p101
      %p103 = scmp.ne.s32.totalorder %s91, %s92
      %p104 = scmp.eq.s32.totalorder %s19, 1
      %p105 = por %p103, %p104
      %p107 = scmp.ne.s32.totalorder %s92, %s106
      %p108 = scmp.eq.s32.totalorder %s19, 0
      %p109 = por %p107, %p108
      %s110 = ssub.s32 %s22, %s31
      %p111 = scmp.eq.s32.totalorder %s110, 0
      %s113 = sadd.s32 %s112, 1
      %s114 = scalar_select %p111, %s112, %s113
      %p117 = pneg %p111
      %p118 = scmp.eq.s32.totalorder %s13, 1
      %p119 = por %p117, %p118
      %p120 = scmp.ne.s32.totalorder %s112, %s115
      %p121 = scmp.eq.s32.totalorder %s13, 0
      %p122 = por %p120, %p121
      %p123 = scmp.ne.s32.totalorder %s112, %s115
      %p124 = scmp.eq.s32.totalorder %s18, 1
      %p125 = por %p123, %p124
      %p126 = scmp.ne.s32.totalorder %s115, %s116
      %p127 = scmp.eq.s32.totalorder %s18, 0
      %p128 = por %p126, %p127
      %p129 = scmp.ne.s32.totalorder %s115, %s116
      %p130 = scmp.eq.s32.totalorder %s19, 1
      %p131 = por %p129, %p130
      %p133 = scmp.ne.s32.totalorder %s116, %s132
      %p134 = scmp.eq.s32.totalorder %s19, 0
      %p135 = por %p133, %p134
      %s136 = ssub.s32 %s20, %s39
      %s137 = ssub.s32 %s21, %s35
      %s138 = sor.u32 %s136, %s137
      %s139 = ssub.s32 %s22, %s31
      %s140 = sor.u32 %s138, %s139
      %p141 = scmp.eq.s32.totalorder %s140, 0
      %s143 = sadd.s32 %s142, 1
      %s144 = scalar_select %p141, %s142, %s143
      %p147 = pneg %p141
      %p148 = scmp.eq.s32.totalorder %s13, 1
      %p149 = por %p147, %p148
      %p150 = scmp.ne.s32.totalorder %s142, %s145
      %p151 = scmp.eq.s32.totalorder %s13, 0
      %p152 = por %p150, %p151
      %p153 = scmp.ne.s32.totalorder %s142, %s145
      %p154 = scmp.eq.s32.totalorder %s18, 1
      %p155 = por %p153, %p154
      %p156 = scmp.ne.s32.totalorder %s145, %s146
      %p157 = scmp.eq.s32.totalorder %s18, 0
      %p158 = por %p156, %p157
      %p159 = scmp.ne.s32.totalorder %s145, %s146
      %p160 = scmp.eq.s32.totalorder %s19, 1
      %p161 = por %p159, %p160
      %p163 = scmp.ne.s32.totalorder %s146, %s162
      %p164 = scmp.eq.s32.totalorder %s19, 0
      %p165 = por %p163, %p164
      %p166 = scmp.le.s32.totalorder 1, %s13
      %p167 = scmp.lt.s32.totalorder %s13, 3
      %p168 = pnand %p166, %p167
      %p169 = pneg %p168
      // Predicated region
      $region9: #{gpt_forward.13} parent=5 // pred_check
        _
      $region10: #{gpt_forward.13} parent=5 // pred_check_branch
        %171 = sbr.rel (%p168) target = $region12
      $region11: #{gpt_forward.13} parent=5 // pred_region
        %s172 = ssub.s32 %s13, 1
        // Predicated region
        $region13: #{gpt_forward.13} parent=11 // pred_check
          %p173 = pneg %p81
        $region14: #{gpt_forward.13} parent=11 // pred_check_branch
          %175 = sbr.rel (%p173) target = $region16
        $region15: #{gpt_forward.13} parent=11 // pred_region
          _
        $region16: #{gpt_forward.13} parent=11 // pred_fallthru
          _
        // Predicated region
        $region17: #{gpt_forward.13} parent=11 // pred_check
          %p176 = pneg %p102
        $region18: #{gpt_forward.13} parent=11 // pred_check_branch
          %178 = sbr.rel (%p176) target = $region20
        $region19: #{gpt_forward.13} parent=11 // pred_region
          _
        $region20: #{gpt_forward.13} parent=11 // pred_fallthru
          _
        // Predicated region
        $region21: #{gpt_forward.13} parent=11 // pred_check
          %p179 = pneg %p128
        $region22: #{gpt_forward.13} parent=11 // pred_check_branch
          %181 = sbr.rel (%p179) target = $region24
        $region23: #{gpt_forward.13} parent=11 // pred_region
          %s182 = smul.u32 2, %s25
          %p183 = scmp.lt.s32.totalorder %s182, 1
          %s184 = scalar_select %p183, %s182, 1
          %s185 = smul.addr %s184, 4
          %s186 = scalar_lea.vmem %s3, %s185
          %s187 = smul.u32 2, %s25
        $region24: #{gpt_forward.13} parent=11 // pred_fallthru
          _
      $region12: #{gpt_forward.13} parent=5 // pred_fallthru
        _
      %p188 = scmp.lt.s32.totalorder %s13, 2
      // Predicated region
      $region25: #{gpt_forward.13} parent=5 // pred_check
        %p189 = pneg %p188
      $region26: #{gpt_forward.13} parent=5 // pred_check_branch
        %191 = sbr.rel (%p189) target = $region28
      $region27: #{gpt_forward.13} parent=5 // pred_region
        // Predicated region
        $region29: #{gpt_forward.13} parent=27 // pred_check
          %p192 = pneg %p54
        $region30: #{gpt_forward.13} parent=27 // pred_check_branch
          %194 = sbr.rel (%p192) target = $region32
        $region31: #{gpt_forward.13} parent=27 // pred_region
          %s195 = smul.u32 2, %s21
          %p196 = scmp.lt.s32.totalorder %s20, 1
          %s197 = scalar_select %p196, %s20, 1
          %p198 = scmp.lt.s32.totalorder %s195, 1
          %s199 = scalar_select %p198, %s195, 1
          %s200 = smul.addr %s197, 2
          %s201 = sadd.s32 %s199, %s200
          %s202 = smul.addr %s201, 4
          %s203 = scalar_lea.vmem %s0, %s202
          %s204 = smul.u32 2, %s21
        $region32: #{gpt_forward.13} parent=27 // pred_fallthru
          _
      $region28: #{gpt_forward.13} parent=5 // pred_fallthru
        _
      %p205 = scmp.le.s32.totalorder 1, %s13
      %p206 = scmp.lt.s32.totalorder %s13, 3
      %p207 = pnand %p205, %p206
      %p208 = pneg %p207
      // Predicated region
      $region33: #{gpt_forward.13} parent=5 // pred_check
        _
      $region34: #{gpt_forward.13} parent=5 // pred_check_branch
        %210 = sbr.rel (%p207) target = $region36
      $region35: #{gpt_forward.13} parent=5 // pred_region
        %s211 = ssub.s32 %s13, 1
        %s212 = smul.u32 2, %s24
        %p213 = scmp.lt.s32.totalorder %s23, 1
        %s214 = scalar_select %p213, %s23, 1
        %p215 = scmp.lt.s32.totalorder %s212, 1
        %s216 = scalar_select %p215, %s212, 1
        %s217 = smul.addr %s214, 2
        %s218 = sadd.s32 %s216, %s217
        %s219 = smul.addr %s218, 4
        %s220 = scalar_lea.vmem %s0, %s219
        %p221 = pneg %p60
        %p222 = pneg %p57
        %p223 = pneg %p81
        %p224 = pneg %p78
        %p225 = pneg %p102
        %p226 = pneg %p99
        %s227 = smul.u32 2, %s25
        %p228 = scmp.lt.s32.totalorder %s227, 1
        %s229 = scalar_select %p228, %s227, 1
        %s230 = smul.addr %s229, 4
        %s231 = scalar_lea.vmem %s3, %s230
        %p232 = pneg %p128
        %p233 = pneg %p125
        %p234 = pneg %p158
        %p235 = pneg %p155
        %s236 = sand.u32 %s145, 1
        %s237 = scalar_lea.sflag [#allocation4], %s236
        %s238 = sand.u32 %s145, 1
        %s239 = smul.addr %s238, 16
        %s240 = scalar_lea.vmem [#allocation3], %s239
        %s241 = smul.u32 2, %s24
        %p242 = scmp.lt.s32.totalorder %s23, 1
        %s243 = scalar_select %p242, %s23, 1
        %p244 = scmp.lt.s32.totalorder %s241, 1
        %s245 = scalar_select %p244, %s241, 1
        %s246 = smul.addr %s243, 2
        %s247 = sadd.s32 %s245, %s246
        %s248 = smul.addr %s247, 4
        %s249 = scalar_lea.vmem %s0, %s248
        %s250 = smul.u32 2, %s24
        %s251 = smul.u32 2, %s25
        %p252 = scmp.lt.s32.totalorder %s251, 1
        %s253 = scalar_select %p252, %s251, 1
        %s254 = smul.addr %s253, 4
        %s255 = scalar_lea.vmem %s3, %s254
        %s256 = smul.u32 2, %s25
        %s257 = smul.u32 2, %s24
        %s258 = smul.u32 2, %s25
        %p260 = scmp.eq.s32.totalorder %s25, 0
        // Predicated region
        $region37: #{gpt_forward.13} parent=35 // pred_check
          %p261 = pneg %p260
        $region38: #{gpt_forward.13} parent=35 // pred_check_branch
          %263 = sbr.rel (%p261) target = $region40
        $region39: #{gpt_forward.13} parent=35 // pred_region
          %v264 = vld [vmem:[%s249] sm:$0xf]
          %v265 = vld [vmem:[%s249 + $0x4] sm:$0xf]
          %v266 = vunpack.c.l.bf16 %v264
          %v267 = vunpack.c.l.bf16 %v265
          %v268 = vld [vmem:[%s1] sm:$0x1]
          %v269 = vld [vmem:[%s2] sm:$0x1]
          %vm270 = vcmask 523264
          %v271 = vsel %vm270, %v266, 0.0
          %272 = vadd.xlane.f32.xlu0 %v271
          %v273 = vpop.xlane.xlu0 %272
          %v274 = vsel %vm270, %v267, 0.0
          %275 = vadd.xlane.f32.xlu0 %v274
          %v276 = vpop.xlane.xlu0 %275
          %v277 = vrcp.pop 64.0
          %v278 = vmul.f32 %v273, %v277
          %v279 = vmul.f32 %v276, %v277
          %v280 = vsub.f32 %v266, %v278
          %v281 = vsub.f32 %v267, %v279
          %v282 = vmul.f32 %v280, %v280
          %v283 = vmul.f32 %v281, %v281
          %v284 = vsel %vm270, %v282, 0.0
          %285 = vadd.xlane.f32.xlu0 %v284
          %v286 = vpop.xlane.xlu0 %285
          %v287 = vsel %vm270, %v283, 0.0
          %288 = vadd.xlane.f32.xlu0 %v287
          %v289 = vpop.xlane.xlu0 %288
          %v290 = vmul.f32 %v286, %v277
          %v291 = vmul.f32 %v289, %v277
          %v292 = vadd.f32 %v290, 1e-05
          %v293 = vadd.f32 %v291, 1e-05
          %v294 = vrsqrt.pop %v292
          %v295 = vrsqrt.pop %v293
          %v296 = vmul.f32 %v280, %v294
          %v297 = vmul.f32 %v281, %v295
          %v299 = vlaneseq
          %v300 = vshrl.u32 %v299, 7
          %v301 = vsub.s32 0, %v300
          %v302 = vrot.slane %v268, %v301
          %v304 = vmul.f32 %v296, %v302
          %v305 = vmul.f32 %v297, %v302
          %v307 = vlaneseq
          %v308 = vshrl.u32 %v307, 7
          %v309 = vsub.s32 0, %v308
          %v310 = vrot.slane %v269, %v309
          %v312 = vadd.f32 %v304, %v310
          %v313 = vadd.f32 %v305, %v310
          %v314 = vpack.c.bf16 %v313, %v312
          %v316 = vunpack.c.l.b16 %v314
          %v317 = vunpack.c.h.b16 %v314
          %v318 = vpack.c.b16 %v316, %v316
          %v319 = vpack.c.b16 %v317, %v317
          %vm322 = vcmask 519168
          %323 = vst.msk [vmem:[#allocation2] sm:$0xf] %vm322, %v318
          %324 = vst.msk [vmem:[#allocation2 + $0x4] sm:$0xf] %vm322, %v319
        $region40: #{gpt_forward.13} parent=35 // pred_fallthru
          _
        %v325 = vld [vmem:[#allocation2] sm:$0xf]
        %v326 = vld [vmem:[#allocation2 + $0x4] sm:$0xf]
        %v327 = vld [vmem:[%s255] sm:$0xff]
        %v328 = vld [vmem:[%s255 + $0x8] sm:$0xff]
        %v329 = vld [vmem:[%s255 + $0x10] sm:$0xff]
        %v330 = vld [vmem:[%s255 + $0x18] sm:$0xff]
        %v331 = vld [vmem:[%s255 + $0x20] sm:$0xff]
        %v332 = vld [vmem:[%s255 + $0x28] sm:$0xff]
        %v333 = vld [vmem:[%s255 + $0x30] sm:$0xff]
        %v334 = vld [vmem:[%s255 + $0x38] sm:$0xff]
        %v337 = vunpack.c.l.b16 %v325
        %v338 = vunpack.c.l.b16 %v326
        %v339 = vpack.c.b16 %v338, %v337
        %v348 = vunpack.c.l.b16 %v327
        %v349 = vunpack.c.h.b16 %v327
        %v350 = vunpack.c.l.b16 %v328
        %v351 = vunpack.c.h.b16 %v328
        %v352 = vunpack.c.l.b16 %v329
        %v353 = vunpack.c.h.b16 %v329
        %v354 = vunpack.c.l.b16 %v330
        %v355 = vunpack.c.h.b16 %v330
        %v356 = vunpack.c.l.b16 %v331
        %v357 = vunpack.c.h.b16 %v331
        %v358 = vunpack.c.l.b16 %v332
        %v359 = vunpack.c.h.b16 %v332
        %v360 = vunpack.c.l.b16 %v333
        %v361 = vunpack.c.h.b16 %v333
        %v362 = vunpack.c.l.b16 %v334
        %v363 = vunpack.c.h.b16 %v334
        %v364 = vpack.c.b16 %v350, %v348
        %v365 = vpack.c.b16 %v351, %v349
        %v366 = vpack.c.b16 %v354, %v352
        %v367 = vpack.c.b16 %v355, %v353
        %v368 = vpack.c.b16 %v358, %v356
        %v369 = vpack.c.b16 %v359, %v357
        %v370 = vpack.c.b16 %v362, %v360
        %v371 = vpack.c.b16 %v363, %v361
        %vm380 = vcmask 523264
        %v382 = vsel %vm380, %v339, 0
        %384 = vmatprep.subr.bf16.mxu0 0
        %385 = vmatpush1.bf16.msra.mxu0 0
        %386 = vmatprep.subr.bf16.mxu0 0
        %387 = vmatpush1.bf16.msra.mxu0 0
        %388 = vmatprep.subr.bf16.mxu0 0
        %389 = vmatpush1.bf16.msra.mxu0 0
        %390 = vmatprep.subr.bf16.mxu0 0
        %391 = vmatpush1.bf16.msra.mxu0 0
        %392 = vmatprep.subr.bf16.mxu0 %v371
        %393 = vmatpush1.bf16.msra.mxu0 %v370
        %394 = vmatprep.subr.bf16.mxu0 %v369
        %395 = vmatpush1.bf16.msra.mxu0 %v368
        %396 = vmatprep.subr.bf16.mxu0 %v367
        %397 = vmatpush1.bf16.msra.mxu0 %v366
        %398 = vmatprep.subr.bf16.mxu0 %v365
        %399 = vmatpush1.bf16.msra.mxu0 %v364
        %400 = vmatprep.subr.bf16.mxu0 0
        %401 = vmatpush2.bf16.msra.mxu0 0
        %402 = vmatprep.subr.bf16.mxu0 0
        %403 = vmatpush2.bf16.msra.mxu0 0
        %404 = vmatprep.subr.bf16.mxu0 0
        %405 = vmatpush2.bf16.msra.mxu0 0
        %406 = vmatprep.subr.bf16.mxu0 0
        %407 = vmatpush2.bf16.msra.mxu0 0
        %408 = vmatprep.subr.bf16.mxu0 0
        %409 = vmatpush2.bf16.msra.mxu0 0
        %410 = vmatprep.subr.bf16.mxu0 0
        %411 = vmatpush2.bf16.msra.mxu0 0
        %412 = vmatprep.subr.bf16.mxu0 0
        %413 = vmatpush2.bf16.msra.mxu0 0
        %414 = vmatprep.subr.bf16.mxu0 0
        %415 = vmatpush2.bf16.msra.mxu0 0
        %416 = vmatprep.mubr.bf16.mxu0 0
        %417 = vmatmul.mubr.bf16.gmra.mxu0 %v382
        %v418 = vpop.f32.mrf.mxu0
        %v419 = vadd.f32 0.0, %v418
        %v420 = vpop.f32.mrf.mxu0
        %v421 = vadd.f32 0.0, %v420
        %v422 = vpop.f32.mrf.mxu0
        %v423 = vadd.f32 0.0, %v422
        %v424 = vpop.f32.mrf.mxu0
        %v425 = vadd.f32 0.0, %v424
        %426 = vdwg.mxu0
        %v427 = vpack.c.bf16 %v423, %v419
        %v428 = vpack.c.bf16 %v425, %v421
        %v431 = vunpack.c.l.b16 %v427
        %v432 = vunpack.c.l.b16 %v428
        %v433 = vunpack.c.h.b16 %v427
        %v434 = vunpack.c.h.b16 %v428
        %v435 = vpack.c.b16 %v432, %v431
        %v436 = vpack.c.b16 %v434, %v433
        %439 = vst [vmem:[%s240] sm:$0xff] %v435
        %440 = vst [vmem:[%s240 + $0x8] sm:$0xff] %v436
        %s441 = sand.u32 %s145, 1
        %s442 = scalar_lea.sflag [#allocation4], %s441
        %s443 = sand.u32 %s145, 1
        %s444 = smul.addr %s443, 16
        %s445 = scalar_lea.vmem [#allocation3], %s444
        // Predicated region
        $region41: #{gpt_forward.13} parent=35 // pred_check
          %p446 = pneg %p155
        $region42: #{gpt_forward.13} parent=35 // pred_check_branch
          %448 = sbr.rel (%p446) target = $region44
        $region43: #{gpt_forward.13} parent=35 // pred_region
          %s449 = smul.u32 2, %s24
          %s450 = smul.u32 2, %s25
          %s452 = ssub.s32 256, 256
          %453 = vsyncadd %s442, %s452
          %s454 = smul.addr %s449, 2
          %s455 = sadd.s32 %s450, %s454
          %s456 = smul.addr %s23, 4
          %s457 = sadd.s32 %s455, %s456
          %s458 = smul.addr %s457, 64
          %s459 = scalar_lea.hbm %s4, %s458
          %s460 = sshll.u32 %s445, 4
          %s461 = int_to_ptr.vmem [resolvable:$true] %s460
          %466 = dma.vmem_to_hbm [thread:$0]  %s461, 256, %s459, %s442, 128, 128, 8
        $region44: #{gpt_forward.13} parent=35 // pred_fallthru
          _
      $region36: #{gpt_forward.13} parent=5 // pred_fallthru
        _
      %p467 = scmp.le.s32.totalorder 2, %s13
      // Predicated region
      $region45: #{gpt_forward.13} parent=5 // pred_check
        %p468 = pneg %p467
      $region46: #{gpt_forward.13} parent=5 // pred_check_branch
        %470 = sbr.rel (%p468) target = $region48
      $region47: #{gpt_forward.13} parent=5 // pred_region
        %s471 = ssub.s32 %s13, 2
        // Predicated region
        $region49: #{gpt_forward.13} parent=47 // pred_check
          %p472 = pneg %p161
        $region50: #{gpt_forward.13} parent=47 // pred_check_branch
          %474 = sbr.rel (%p472) target = $region52
        $region51: #{gpt_forward.13} parent=47 // pred_region
          %s475 = sand.u32 %s146, 1
          %s476 = scalar_lea.sflag [#allocation4], %s475
          %s477 = sand.u32 %s146, 1
          %s478 = smul.addr %s477, 16
          %s479 = scalar_lea.vmem [#allocation3], %s478
          %480 = dma.done %s476, 256
        $region52: #{gpt_forward.13} parent=47 // pred_fallthru
          _
      $region48: #{gpt_forward.13} parent=5 // pred_fallthru
        _
    $region6: #{gpt_forward.13} parent=1 // loop_footer
      %s17 = sadd.s32 1, %s13
    $region7: #{gpt_forward.13} parent=1 // loop_footer_branch
      %12 = sbr.rel target = $region3
    $region8: #{gpt_forward.13} parent=1 // loop_exit
      _
    %481 = vsyncpa [#allocation4], 1
    %s482 = scalar_lea.sflag [#allocation4], 1
    %483 = vsyncpa %s482, 1

// kernel: gpt_forward.8
$region0: #{gpt_forward.8}
  #allocation0 [shape = 'u32[]', space=smem, size = 0x4, offset = 0x4, fixed_abs, tag = 'smem constant byte address 0x4 - core index']
  #allocation1 [shape = 'u32[144,128]{1,0:T(1,128)}', space=vmem, size = 0x12000, scoped, tag = 'internal scratch']
  %s0 = inlined_call_operand.vmem [shape: bf16[2,16,192], index: 0, kind: input, shape index: {}]
  %s1 = inlined_call_operand.vmem [shape: bf16[2,16,64], index: 1, kind: output, shape index: {}]
  %s2 = sld [smem:[#allocation0]]
  $region37: #{gpt_forward.8} parent=0
    _
  %s4 = ssub.s32 1, %s2
  %s5 = scalar_select 0, %s4, %s2
  loop: start=0, step=1, limit=4
  $region2: #{gpt_forward.8} parent=0 // loop_pre_header
    _
  $region3: #{gpt_forward.8} parent=0 // loop_header
    %s7 = sphi 0, %s11
    %p8 = scmp.ge.s32.totalorder %s7, 4
    %s17 = sphi 0, %s19
    %s20 = sphi 0, %s17
    %s21 = sphi 0, %s20
    %s37 = sphi 0, %s21
    %s43 = sphi 0, %s45
    %s46 = sphi 0, %s43
    %s47 = sphi 0, %s46
    %s63 = sphi 0, %s47
  $region4: #{gpt_forward.8} parent=0 // loop_header_branch
    %10 = sbr.rel (%p8) target = $region8
  $region5: #{gpt_forward.8} parent=0 // loop_body
    %s12 = ssub.s32 %s7, 1
    %s13 = ssub.s32 %s7, 2
    %s14 = sadd.s32 %s7, 1
    %s15 = ssub.s32 %s7, %s14
    %p16 = scmp.eq.s32.totalorder %s15, 0
    %s18 = sadd.s32 %s17, 1
    %s19 = scalar_select %p16, %s17, %s18
    %p22 = pneg %p16
    %p23 = scmp.eq.s32.totalorder %s7, 1
    %p24 = por %p22, %p23
    %p25 = scmp.ne.s32.totalorder %s17, %s20
    %p26 = scmp.eq.s32.totalorder %s7, 0
    %p27 = por %p25, %p26
    %p28 = scmp.ne.s32.totalorder %s17, %s20
    %p29 = scmp.eq.s32.totalorder %s12, 1
    %p30 = por %p28, %p29
    %p31 = scmp.ne.s32.totalorder %s20, %s21
    %p32 = scmp.eq.s32.totalorder %s12, 0
    %p33 = por %p31, %p32
    %p34 = scmp.ne.s32.totalorder %s20, %s21
    %p35 = scmp.eq.s32.totalorder %s13, 1
    %p36 = por %p34, %p35
    %p38 = scmp.ne.s32.totalorder %s21, %s37
    %p39 = scmp.eq.s32.totalorder %s13, 0
    %p40 = por %p38, %p39
    %s41 = ssub.s32 %s7, %s14
    %p42 = scmp.eq.s32.totalorder %s41, 0
    %s44 = sadd.s32 %s43, 1
    %s45 = scalar_select %p42, %s43, %s44
    %p48 = pneg %p42
    %p49 = scmp.eq.s32.totalorder %s7, 1
    %p50 = por %p48, %p49
    %p51 = scmp.ne.s32.totalorder %s43, %s46
    %p52 = scmp.eq.s32.totalorder %s7, 0
    %p53 = por %p51, %p52
    %p54 = scmp.ne.s32.totalorder %s43, %s46
    %p55 = scmp.eq.s32.totalorder %s12, 1
    %p56 = por %p54, %p55
    %p57 = scmp.ne.s32.totalorder %s46, %s47
    %p58 = scmp.eq.s32.totalorder %s12, 0
    %p59 = por %p57, %p58
    %p60 = scmp.ne.s32.totalorder %s46, %s47
    %p61 = scmp.eq.s32.totalorder %s13, 1
    %p62 = por %p60, %p61
    %p64 = scmp.ne.s32.totalorder %s47, %s63
    %p65 = scmp.eq.s32.totalorder %s13, 0
    %p66 = por %p64, %p65
    %p67 = scmp.le.s32.totalorder 1, %s7
    %p68 = scmp.lt.s32.totalorder %s7, 3
    %p69 = pnand %p67, %p68
    %p70 = pneg %p69
    // Predicated region
    $region9: #{gpt_forward.8} parent=5 // pred_check
      _
    $region10: #{gpt_forward.8} parent=5 // pred_check_branch
      %72 = sbr.rel (%p69) target = $region12
    $region11: #{gpt_forward.8} parent=5 // pred_region
      %s73 = ssub.s32 %s7, 1
    $region12: #{gpt_forward.8} parent=5 // pred_fallthru
      _
    %p74 = scmp.lt.s32.totalorder %s7, 2
    // Predicated region
    $region13: #{gpt_forward.8} parent=5 // pred_check
      %p75 = pneg %p74
    $region14: #{gpt_forward.8} parent=5 // pred_check_branch
      %77 = sbr.rel (%p75) target = $region16
    $region15: #{gpt_forward.8} parent=5 // pred_region
      // Predicated region
      $region17: #{gpt_forward.8} parent=15 // pred_check
        %p78 = pneg %p27
      $region18: #{gpt_forward.8} parent=15 // pred_check_branch
        %80 = sbr.rel (%p78) target = $region20
      $region19: #{gpt_forward.8} parent=15 // pred_region
        %p81 = scmp.lt.s32.totalorder %s7, 1
        %s82 = scalar_select %p81, %s7, 1
        %s83 = smul.addr %s82, 4
        %s84 = smul.addr %s83, 4
        %s85 = scalar_lea.vmem %s0, %s84
      $region20: #{gpt_forward.8} parent=15 // pred_fallthru
        _
    $region16: #{gpt_forward.8} parent=5 // pred_fallthru
      _
    %p86 = scmp.le.s32.totalorder 1, %s7
    %p87 = scmp.lt.s32.totalorder %s7, 3
    %p88 = pnand %p86, %p87
    %p89 = pneg %p88
    // Predicated region
    $region21: #{gpt_forward.8} parent=5 // pred_check
      _
    $region22: #{gpt_forward.8} parent=5 // pred_check_branch
      %91 = sbr.rel (%p88) target = $region24
    $region23: #{gpt_forward.8} parent=5 // pred_region
      %s92 = ssub.s32 %s7, 1
      %p93 = scmp.lt.s32.totalorder %s12, 1
      %s94 = scalar_select %p93, %s12, 1
      %s95 = smul.addr %s94, 4
      %s96 = smul.addr %s95, 4
      %s97 = scalar_lea.vmem %s0, %s96
      %p98 = pneg %p33
      %p99 = pneg %p30
      %p100 = pneg %p59
      %p101 = pneg %p56
      %p102 = scmp.lt.s32.totalorder %s12, 1
      %s103 = scalar_select %p102, %s12, 1
      %s104 = smul.addr %s103, 2
      %s105 = smul.addr %s104, 4
      %s106 = scalar_lea.vmem %s1, %s105
      %p107 = scmp.lt.s32.totalorder %s12, 1
      %s108 = scalar_select %p107, %s12, 1
      %s109 = smul.addr %s108, 4
      %s110 = smul.addr %s109, 4
      %s111 = scalar_lea.vmem %s0, %s110
      %p112 = scmp.lt.s32.totalorder %s12, 1
      %s113 = scalar_select %p112, %s12, 1
      %s114 = smul.addr %s113, 2
      %s115 = smul.addr %s114, 4
      %s116 = scalar_lea.vmem %s1, %s115
      %v118 = vld [vmem:[%s111] sm:$0xff]
      %v119 = vld [vmem:[%s111 + $0x8] sm:$0xff]
      %v120 = vlaneseq
      %v121 = vshrl.u32 %v120, 7
      %v122 = vadd.s32 %v121, 8
      %v123 = vlaneseq
      %v124 = vand.u32 %v123, 127
      %vm125 = vcmp.le.s32.totalorder %v124, %v121
      %vm126 = vcmp.le.s32.totalorder %v124, %v122
      %v129 = vunpack.c.l.b16 %v118
      %v130 = vunpack.c.l.b16 %v119
      %v131 = vpack.c.b16 %v130, %v129
      %132 = vrot.lane.b32.xlu0 %v131, 64
      %v133 = vpop.permute.xlu0 %132
      %vm134 = vcmask 130048
      %v136 = vsel %vm134, %v131, 0
      %v139 = vsel %vm134, %v133, 0
      %141 = vmatprep.subr.bf16.mxu0 0
      %142 = vmatpush1.bf16.xpose.msra.mxu0 0
      %143 = vmatprep.subr.bf16.mxu0 0
      %144 = vmatpush1.bf16.xpose.msra.mxu0 0
      %145 = vmatprep.subr.bf16.mxu0 0
      %146 = vmatpush1.bf16.xpose.msra.mxu0 0
      %147 = vmatprep.subr.bf16.mxu0 0
      %148 = vmatpush1.bf16.xpose.msra.mxu0 0
      %149 = vmatprep.subr.bf16.mxu0 0
      %150 = vmatpush1.bf16.xpose.msra.mxu0 0
      %151 = vmatprep.subr.bf16.mxu0 0
      %152 = vmatpush1.bf16.xpose.msra.mxu0 0
      %153 = vmatprep.subr.bf16.mxu0 0
      %154 = vmatpush1.bf16.xpose.msra.mxu0 0
      %155 = vmatprep.subr.bf16.mxu0 0
      %156 = vmatpush1.bf16.xpose.msra.mxu0 %v139
      %157 = vmatprep.subr.bf16.mxu0 0
      %158 = vmatpush2.bf16.xpose.msra.mxu0 0
      %159 = vmatprep.subr.bf16.mxu0 0
      %160 = vmatpush2.bf16.xpose.msra.mxu0 0
      %161 = vmatprep.subr.bf16.mxu0 0
      %162 = vmatpush2.bf16.xpose.msra.mxu0 0
      %163 = vmatprep.subr.bf16.mxu0 0
      %164 = vmatpush2.bf16.xpose.msra.mxu0 0
      %165 = vmatprep.subr.bf16.mxu0 0
      %166 = vmatpush2.bf16.xpose.msra.mxu0 0
      %167 = vmatprep.subr.bf16.mxu0 0
      %168 = vmatpush2.bf16.xpose.msra.mxu0 0
      %169 = vmatprep.subr.bf16.mxu0 0
      %170 = vmatpush2.bf16.xpose.msra.mxu0 0
      %171 = vmatprep.subr.bf16.mxu0 0
      %172 = vmatpush2.bf16.xpose.msra.mxu0 0
      %173 = vmatprep.mubr.bf16.mxu0 0
      %174 = vmatmul.mubr.bf16.gmra.mxu0 %v136
      %v175 = vpop.f32.mrf.mxu0
      %v176 = vadd.f32 0.0, %v175
      %v177 = vpop.f32.mrf.mxu0
      %v178 = vpop.f32.mrf.mxu0
      %v179 = vadd.f32 0.0, %v178
      %v180 = vpop.f32.mrf.mxu0
      %181 = vdwg.mxu0
      %v182 = vsel %vm125, %v176, -inf
      %v183 = vsel %vm126, %v179, -inf
      %v184 = vsel %vm134, %v182, -inf
      %185 = vmax.xlane.f32.xlu0 %v184
      %v186 = vpop.xlane.xlu0 %185
      %v187 = vsel %vm134, %v183, -inf
      %188 = vmax.xlane.f32.xlu0 %v187
      %v189 = vpop.xlane.xlu0 %188
      %v190 = vsub.f32 %v182, %v186
      %v191 = vsub.f32 %v183, %v189
      %v192 = vmul.f32 %v190, 1.442695
      %v193 = vpow.pop %v192
      %v194 = vmul.f32 %v191, 1.442695
      %v195 = vpow.pop %v194
      %v196 = vsel %vm134, %v193, 0.0
      %197 = vadd.xlane.f32.xlu0 %v196
      %v198 = vpop.xlane.xlu0 %197
      %v199 = vsel %vm134, %v195, 0.0
      %200 = vadd.xlane.f32.xlu0 %v199
      %v201 = vpop.xlane.xlu0 %200
      %v202 = vrcp.pop %v198
      %v203 = vrcp.pop %v201
      %v204 = vmul.f32 %v193, %v202
      %v205 = vmul.f32 %v195, %v203
      %v206 = vpack.c.bf16 %v205, %v204
      %v207 = vunpack.c.h.b16 %v118
      %v208 = vunpack.c.h.b16 %v119
      %v209 = vpack.c.b16 %v208, %v207
      %v212 = vsel %vm134, %v206, 0
      %214 = vmatprep.subr.bf16.mxu0 0
      %215 = vmatpush1.bf16.msra.mxu0 0
      %216 = vmatprep.subr.bf16.mxu0 0
      %217 = vmatpush1.bf16.msra.mxu0 0
      %218 = vmatprep.subr.bf16.mxu0 0
      %219 = vmatpush1.bf16.msra.mxu0 0
      %220 = vmatprep.subr.bf16.mxu0 0
      %221 = vmatpush1.bf16.msra.mxu0 0
      %222 = vmatprep.subr.bf16.mxu0 0
      %223 = vmatpush1.bf16.msra.mxu0 0
      %224 = vmatprep.subr.bf16.mxu0 0
      %225 = vmatpush1.bf16.msra.mxu0 0
      %226 = vmatprep.subr.bf16.mxu0 0
      %227 = vmatpush1.bf16.msra.mxu0 0
      %228 = vmatprep.subr.bf16.mxu0 0
      %229 = vmatpush1.bf16.msra.mxu0 %v209
      %230 = vmatprep.subr.bf16.mxu0 0
      %231 = vmatpush2.bf16.msra.mxu0 0
      %232 = vmatprep.subr.bf16.mxu0 0
      %233 = vmatpush2.bf16.msra.mxu0 0
      %234 = vmatprep.subr.bf16.mxu0 0
      %235 = vmatpush2.bf16.msra.mxu0 0
      %236 = vmatprep.subr.bf16.mxu0 0
      %237 = vmatpush2.bf16.msra.mxu0 0
      %238 = vmatprep.subr.bf16.mxu0 0
      %239 = vmatpush2.bf16.msra.mxu0 0
      %240 = vmatprep.subr.bf16.mxu0 0
      %241 = vmatpush2.bf16.msra.mxu0 0
      %242 = vmatprep.subr.bf16.mxu0 0
      %243 = vmatpush2.bf16.msra.mxu0 0
      %244 = vmatprep.subr.bf16.mxu0 0
      %245 = vmatpush2.bf16.msra.mxu0 0
      %246 = vmatprep.mubr.bf16.mxu0 0
      %247 = vmatmul.mubr.bf16.gmra.mxu0 %v212
      %v248 = vpop.f32.mrf.mxu0
      %v249 = vadd.f32 0.0, %v248
      %v250 = vpop.f32.mrf.mxu0
      %v251 = vpop.f32.mrf.mxu0
      %v252 = vadd.f32 0.0, %v251
      %v253 = vpop.f32.mrf.mxu0
      %254 = vdwg.mxu0
      %v255 = vpack.c.bf16 %v252, %v249
      %256 = vrot.lane.b32.xlu0 %v131, 112
      %v257 = vpop.permute.xlu0 %256
      %258 = vrot.lane.b32.xlu0 %v131, 48
      %v259 = vpop.permute.xlu0 %258
      %v261 = vsel %vm134, %v257, 0
      %v264 = vsel %vm134, %v259, 0
      %266 = vmatprep.subr.bf16.mxu0 0
      %267 = vmatpush1.bf16.xpose.msra.mxu0 0
      %268 = vmatprep.subr.bf16.mxu0 0
      %269 = vmatpush1.bf16.xpose.msra.mxu0 0
      %270 = vmatprep.subr.bf16.mxu0 0
      %271 = vmatpush1.bf16.xpose.msra.mxu0 0
      %272 = vmatprep.subr.bf16.mxu0 0
      %273 = vmatpush1.bf16.xpose.msra.mxu0 0
      %274 = vmatprep.subr.bf16.mxu0 0
      %275 = vmatpush1.bf16.xpose.msra.mxu0 0
      %276 = vmatprep.subr.bf16.mxu0 0
      %277 = vmatpush1.bf16.xpose.msra.mxu0 0
      %278 = vmatprep.subr.bf16.mxu0 0
      %279 = vmatpush1.bf16.xpose.msra.mxu0 0
      %280 = vmatprep.subr.bf16.mxu0 0
      %281 = vmatpush1.bf16.xpose.msra.mxu0 %v264
      %282 = vmatprep.subr.bf16.mxu0 0
      %283 = vmatpush2.bf16.xpose.msra.mxu0 0
      %284 = vmatprep.subr.bf16.mxu0 0
      %285 = vmatpush2.bf16.xpose.msra.mxu0 0
      %286 = vmatprep.subr.bf16.mxu0 0
      %287 = vmatpush2.bf16.xpose.msra.mxu0 0
      %288 = vmatprep.subr.bf16.mxu0 0
      %289 = vmatpush2.bf16.xpose.msra.mxu0 0
      %290 = vmatprep.subr.bf16.mxu0 0
      %291 = vmatpush2.bf16.xpose.msra.mxu0 0
      %292 = vmatprep.subr.bf16.mxu0 0
      %293 = vmatpush2.bf16.xpose.msra.mxu0 0
      %294 = vmatprep.subr.bf16.mxu0 0
      %295 = vmatpush2.bf16.xpose.msra.mxu0 0
      %296 = vmatprep.subr.bf16.mxu0 0
      %297 = vmatpush2.bf16.xpose.msra.mxu0 0
      %298 = vmatprep.mubr.bf16.mxu0 0
      %299 = vmatmul.mubr.bf16.gmra.mxu0 %v261
      %v300 = vpop.f32.mrf.mxu0
      %v301 = vadd.f32 0.0, %v300
      %v302 = vpop.f32.mrf.mxu0
      %v303 = vpop.f32.mrf.mxu0
      %v304 = vadd.f32 0.0, %v303
      %v305 = vpop.f32.mrf.mxu0
      %306 = vdwg.mxu0
      %v307 = vsel %vm125, %v301, -inf
      %v308 = vsel %vm126, %v304, -inf
      %v309 = vsel %vm134, %v307, -inf
      %310 = vmax.xlane.f32.xlu0 %v309
      %v311 = vpop.xlane.xlu0 %310
      %v312 = vsel %vm134, %v308, -inf
      %313 = vmax.xlane.f32.xlu0 %v312
      %v314 = vpop.xlane.xlu0 %313
      %v315 = vsub.f32 %v307, %v311
      %v316 = vsub.f32 %v308, %v314
      %v317 = vmul.f32 %v315, 1.442695
      %v318 = vpow.pop %v317
      %v319 = vmul.f32 %v316, 1.442695
      %v320 = vpow.pop %v319
      %v321 = vsel %vm134, %v318, 0.0
      %322 = vadd.xlane.f32.xlu0 %v321
      %v323 = vpop.xlane.xlu0 %322
      %v324 = vsel %vm134, %v320, 0.0
      %325 = vadd.xlane.f32.xlu0 %v324
      %v326 = vpop.xlane.xlu0 %325
      %v327 = vrcp.pop %v323
      %v328 = vrcp.pop %v326
      %v329 = vmul.f32 %v318, %v327
      %v330 = vmul.f32 %v320, %v328
      %v331 = vpack.c.bf16 %v330, %v329
      %332 = vrot.lane.b32.xlu0 %v209, 112
      %v333 = vpop.permute.xlu0 %332
      %v336 = vsel %vm134, %v331, 0
      %338 = vmatprep.subr.bf16.mxu0 0
      %339 = vmatpush1.bf16.msra.mxu0 0
      %340 = vmatprep.subr.bf16.mxu0 0
      %341 = vmatpush1.bf16.msra.mxu0 0
      %342 = vmatprep.subr.bf16.mxu0 0
      %343 = vmatpush1.bf16.msra.mxu0 0
      %344 = vmatprep.subr.bf16.mxu0 0
      %345 = vmatpush1.bf16.msra.mxu0 0
      %346 = vmatprep.subr.bf16.mxu0 0
      %347 = vmatpush1.bf16.msra.mxu0 0
      %348 = vmatprep.subr.bf16.mxu0 0
      %349 = vmatpush1.bf16.msra.mxu0 0
      %350 = vmatprep.subr.bf16.mxu0 0
      %351 = vmatpush1.bf16.msra.mxu0 0
      %352 = vmatprep.subr.bf16.mxu0 0
      %353 = vmatpush1.bf16.msra.mxu0 %v333
      %354 = vmatprep.subr.bf16.mxu0 0
      %355 = vmatpush2.bf16.msra.mxu0 0
      %356 = vmatprep.subr.bf16.mxu0 0
      %357 = vmatpush2.bf16.msra.mxu0 0
      %358 = vmatprep.subr.bf16.mxu0 0
      %359 = vmatpush2.bf16.msra.mxu0 0
      %360 = vmatprep.subr.bf16.mxu0 0
      %361 = vmatpush2.bf16.msra.mxu0 0
      %362 = vmatprep.subr.bf16.mxu0 0
      %363 = vmatpush2.bf16.msra.mxu0 0
      %364 = vmatprep.subr.bf16.mxu0 0
      %365 = vmatpush2.bf16.msra.mxu0 0
      %366 = vmatprep.subr.bf16.mxu0 0
      %367 = vmatpush2.bf16.msra.mxu0 0
      %368 = vmatprep.subr.bf16.mxu0 0
      %369 = vmatpush2.bf16.msra.mxu0 0
      %370 = vmatprep.mubr.bf16.mxu0 0
      %371 = vmatmul.mubr.bf16.gmra.mxu0 %v336
      %v372 = vpop.f32.mrf.mxu0
      %v373 = vadd.f32 0.0, %v372
      %v374 = vpop.f32.mrf.mxu0
      %v375 = vpop.f32.mrf.mxu0
      %v376 = vadd.f32 0.0, %v375
      %v377 = vpop.f32.mrf.mxu0
      %378 = vdwg.mxu0
      %v379 = vpack.c.bf16 %v376, %v373
      %380 = vrot.lane.b32.xlu0 %v131, 96
      %v381 = vpop.permute.xlu0 %380
      %382 = vrot.lane.b32.xlu0 %v131, 32
      %v383 = vpop.permute.xlu0 %382
      %v385 = vsel %vm134, %v381, 0
      %v388 = vsel %vm134, %v383, 0
      %390 = vmatprep.subr.bf16.mxu0 0
      %391 = vmatpush1.bf16.xpose.msra.mxu0 0
      %392 = vmatprep.subr.bf16.mxu0 0
      %393 = vmatpush1.bf16.xpose.msra.mxu0 0
      %394 = vmatprep.subr.bf16.mxu0 0
      %395 = vmatpush1.bf16.xpose.msra.mxu0 0
      %396 = vmatprep.subr.bf16.mxu0 0
      %397 = vmatpush1.bf16.xpose.msra.mxu0 0
      %398 = vmatprep.subr.bf16.mxu0 0
      %399 = vmatpush1.bf16.xpose.msra.mxu0 0
      %400 = vmatprep.subr.bf16.mxu0 0
      %401 = vmatpush1.bf16.xpose.msra.mxu0 0
      %402 = vmatprep.subr.bf16.mxu0 0
      %403 = vmatpush1.bf16.xpose.msra.mxu0 0
      %404 = vmatprep.subr.bf16.mxu0 0
      %405 = vmatpush1.bf16.xpose.msra.mxu0 %v388
      %406 = vmatprep.subr.bf16.mxu0 0
      %407 = vmatpush2.bf16.xpose.msra.mxu0 0
      %408 = vmatprep.subr.bf16.mxu0 0
      %409 = vmatpush2.bf16.xpose.msra.mxu0 0
      %410 = vmatprep.subr.bf16.mxu0 0
      %411 = vmatpush2.bf16.xpose.msra.mxu0 0
      %412 = vmatprep.subr.bf16.mxu0 0
      %413 = vmatpush2.bf16.xpose.msra.mxu0 0
      %414 = vmatprep.subr.bf16.mxu0 0
      %415 = vmatpush2.bf16.xpose.msra.mxu0 0
      %416 = vmatprep.subr.bf16.mxu0 0
      %417 = vmatpush2.bf16.xpose.msra.mxu0 0
      %418 = vmatprep.subr.bf16.mxu0 0
      %419 = vmatpush2.bf16.xpose.msra.mxu0 0
      %420 = vmatprep.subr.bf16.mxu0 0
      %421 = vmatpush2.bf16.xpose.msra.mxu0 0
      %422 = vmatprep.mubr.bf16.mxu0 0
      %423 = vmatmul.mubr.bf16.gmra.mxu0 %v385
      %v424 = vpop.f32.mrf.mxu0
      %v425 = vadd.f32 0.0, %v424
      %v426 = vpop.f32.mrf.mxu0
      %v427 = vpop.f32.mrf.mxu0
      %v428 = vadd.f32 0.0, %v427
      %v429 = vpop.f32.mrf.mxu0
      %430 = vdwg.mxu0
      %v431 = vsel %vm125, %v425, -inf
      %v432 = vsel %vm126, %v428, -inf
      %v433 = vsel %vm134, %v431, -inf
      %434 = vmax.xlane.f32.xlu0 %v433
      %v435 = vpop.xlane.xlu0 %434
      %v436 = vsel %vm134, %v432, -inf
      %437 = vmax.xlane.f32.xlu0 %v436
      %v438 = vpop.xlane.xlu0 %437
      %v439 = vsub.f32 %v431, %v435
      %v440 = vsub.f32 %v432, %v438
      %v441 = vmul.f32 %v439, 1.442695
      %v442 = vpow.pop %v441
      %v443 = vmul.f32 %v440, 1.442695
      %v444 = vpow.pop %v443
      %v445 = vsel %vm134, %v442, 0.0
      %446 = vadd.xlane.f32.xlu0 %v445
      %v447 = vpop.xlane.xlu0 %446
      %v448 = vsel %vm134, %v444, 0.0
      %449 = vadd.xlane.f32.xlu0 %v448
      %v450 = vpop.xlane.xlu0 %449
      %v451 = vrcp.pop %v447
      %v452 = vrcp.pop %v450
      %v453 = vmul.f32 %v442, %v451
      %v454 = vmul.f32 %v444, %v452
      %v455 = vpack.c.bf16 %v454, %v453
      %456 = vrot.lane.b32.xlu0 %v209, 96
      %v457 = vpop.permute.xlu0 %456
      %v460 = vsel %vm134, %v455, 0
      %462 = vmatprep.subr.bf16.mxu0 0
      %463 = vmatpush1.bf16.msra.mxu0 0
      %464 = vmatprep.subr.bf16.mxu0 0
      %465 = vmatpush1.bf16.msra.mxu0 0
      %466 = vmatprep.subr.bf16.mxu0 0
      %467 = vmatpush1.bf16.msra.mxu0 0
      %468 = vmatprep.subr.bf16.mxu0 0
      %469 = vmatpush1.bf16.msra.mxu0 0
      %470 = vmatprep.subr.bf16.mxu0 0
      %471 = vmatpush1.bf16.msra.mxu0 0
      %472 = vmatprep.subr.bf16.mxu0 0
      %473 = vmatpush1.bf16.msra.mxu0 0
      %474 = vmatprep.subr.bf16.mxu0 0
      %475 = vmatpush1.bf16.msra.mxu0 0
      %476 = vmatprep.subr.bf16.mxu0 0
      %477 = vmatpush1.bf16.msra.mxu0 %v457
      %478 = vmatprep.subr.bf16.mxu0 0
      %479 = vmatpush2.bf16.msra.mxu0 0
      %480 = vmatprep.subr.bf16.mxu0 0
      %481 = vmatpush2.bf16.msra.mxu0 0
      %482 = vmatprep.subr.bf16.mxu0 0
      %483 = vmatpush2.bf16.msra.mxu0 0
      %484 = vmatprep.subr.bf16.mxu0 0
      %485 = vmatpush2.bf16.msra.mxu0 0
      %486 = vmatprep.subr.bf16.mxu0 0
      %487 = vmatpush2.bf16.msra.mxu0 0
      %488 = vmatprep.subr.bf16.mxu0 0
      %489 = vmatpush2.bf16.msra.mxu0 0
      %490 = vmatprep.subr.bf16.mxu0 0
      %491 = vmatpush2.bf16.msra.mxu0 0
      %492 = vmatprep.subr.bf16.mxu0 0
      %493 = vmatpush2.bf16.msra.mxu0 0
      %494 = vmatprep.mubr.bf16.mxu0 0
      %495 = vmatmul.mubr.bf16.gmra.mxu0 %v460
      %v496 = vpop.f32.mrf.mxu0
      %v497 = vadd.f32 0.0, %v496
      %v498 = vpop.f32.mrf.mxu0
      %v499 = vpop.f32.mrf.mxu0
      %v500 = vadd.f32 0.0, %v499
      %v501 = vpop.f32.mrf.mxu0
      %502 = vdwg.mxu0
      %v503 = vpack.c.bf16 %v500, %v497
      %504 = vrot.lane.b32.xlu0 %v131, 80
      %v505 = vpop.permute.xlu0 %504
      %506 = vrot.lane.b32.xlu0 %v131, 16
      %v507 = vpop.permute.xlu0 %506
      %v509 = vsel %vm134, %v505, 0
      %v512 = vsel %vm134, %v507, 0
      %514 = vmatprep.subr.bf16.mxu0 0
      %515 = vmatpush1.bf16.xpose.msra.mxu0 0
      %516 = vmatprep.subr.bf16.mxu0 0
      %517 = vmatpush1.bf16.xpose.msra.mxu0 0
      %518 = vmatprep.subr.bf16.mxu0 0
      %519 = vmatpush1.bf16.xpose.msra.mxu0 0
      %520 = vmatprep.subr.bf16.mxu0 0
      %521 = vmatpush1.bf16.xpose.msra.mxu0 0
      %522 = vmatprep.subr.bf16.mxu0 0
      %523 = vmatpush1.bf16.xpose.msra.mxu0 0
      %524 = vmatprep.subr.bf16.mxu0 0
      %525 = vmatpush1.bf16.xpose.msra.mxu0 0
      %526 = vmatprep.subr.bf16.mxu0 0
      %527 = vmatpush1.bf16.xpose.msra.mxu0 0
      %528 = vmatprep.subr.bf16.mxu0 0
      %529 = vmatpush1.bf16.xpose.msra.mxu0 %v512
      %530 = vmatprep.subr.bf16.mxu0 0
      %531 = vmatpush2.bf16.xpose.msra.mxu0 0
      %532 = vmatprep.subr.bf16.mxu0 0
      %533 = vmatpush2.bf16.xpose.msra.mxu0 0
      %534 = vmatprep.subr.bf16.mxu0 0
      %535 = vmatpush2.bf16.xpose.msra.mxu0 0
      %536 = vmatprep.subr.bf16.mxu0 0
      %537 = vmatpush2.bf16.xpose.msra.mxu0 0
      %538 = vmatprep.subr.bf16.mxu0 0
      %539 = vmatpush2.bf16.xpose.msra.mxu0 0
      %540 = vmatprep.subr.bf16.mxu0 0
      %541 = vmatpush2.bf16.xpose.msra.mxu0 0
      %542 = vmatprep.subr.bf16.mxu0 0
      %543 = vmatpush2.bf16.xpose.msra.mxu0 0
      %544 = vmatprep.subr.bf16.mxu0 0
      %545 = vmatpush2.bf16.xpose.msra.mxu0 0
      %546 = vmatprep.mubr.bf16.mxu0 0
      %547 = vmatmul.mubr.bf16.gmra.mxu0 %v509
      %v548 = vpop.f32.mrf.mxu0
      %v549 = vadd.f32 0.0, %v548
      %v550 = vpop.f32.mrf.mxu0
      %v551 = vpop.f32.mrf.mxu0
      %v552 = vadd.f32 0.0, %v551
      %v553 = vpop.f32.mrf.mxu0
      %554 = vdwg.mxu0
      %v555 = vsel %vm125, %v549, -inf
      %v556 = vsel %vm126, %v552, -inf
      %v557 = vsel %vm134, %v555, -inf
      %558 = vmax.xlane.f32.xlu0 %v557
      %v559 = vpop.xlane.xlu0 %558
      %v560 = vsel %vm134, %v556, -inf
      %561 = vmax.xlane.f32.xlu0 %v560
      %v562 = vpop.xlane.xlu0 %561
      %v563 = vsub.f32 %v555, %v559
      %v564 = vsub.f32 %v556, %v562
      %v565 = vmul.f32 %v563, 1.442695
      %v566 = vpow.pop %v565
      %v567 = vmul.f32 %v564, 1.442695
      %v568 = vpow.pop %v567
      %v569 = vsel %vm134, %v566, 0.0
      %570 = vadd.xlane.f32.xlu0 %v569
      %v571 = vpop.xlane.xlu0 %570
      %v572 = vsel %vm134, %v568, 0.0
      %573 = vadd.xlane.f32.xlu0 %v572
      %v574 = vpop.xlane.xlu0 %573
      %v575 = vrcp.pop %v571
      %v576 = vrcp.pop %v574
      %v577 = vmul.f32 %v566, %v575
      %v578 = vmul.f32 %v568, %v576
      %v579 = vpack.c.bf16 %v578, %v577
      %580 = vrot.lane.b32.xlu0 %v209, 80
      %v581 = vpop.permute.xlu0 %580
      %v584 = vsel %vm134, %v579, 0
      %586 = vmatprep.subr.bf16.mxu0 0
      %587 = vmatpush1.bf16.msra.mxu0 0
      %588 = vmatprep.subr.bf16.mxu0 0
      %589 = vmatpush1.bf16.msra.mxu0 0
      %590 = vmatprep.subr.bf16.mxu0 0
      %591 = vmatpush1.bf16.msra.mxu0 0
      %592 = vmatprep.subr.bf16.mxu0 0
      %593 = vmatpush1.bf16.msra.mxu0 0
      %594 = vmatprep.subr.bf16.mxu0 0
      %595 = vmatpush1.bf16.msra.mxu0 0
      %596 = vmatprep.subr.bf16.mxu0 0
      %597 = vmatpush1.bf16.msra.mxu0 0
      %598 = vmatprep.subr.bf16.mxu0 0
      %599 = vmatpush1.bf16.msra.mxu0 0
      %600 = vmatprep.subr.bf16.mxu0 0
      %601 = vmatpush1.bf16.msra.mxu0 %v581
      %602 = vmatprep.subr.bf16.mxu0 0
      %603 = vmatpush2.bf16.msra.mxu0 0
      %604 = vmatprep.subr.bf16.mxu0 0
      %605 = vmatpush2.bf16.msra.mxu0 0
      %606 = vmatprep.subr.bf16.mxu0 0
      %607 = vmatpush2.bf16.msra.mxu0 0
      %608 = vmatprep.subr.bf16.mxu0 0
      %609 = vmatpush2.bf16.msra.mxu0 0
      %610 = vmatprep.subr.bf16.mxu0 0
      %611 = vmatpush2.bf16.msra.mxu0 0
      %612 = vmatprep.subr.bf16.mxu0 0
      %613 = vmatpush2.bf16.msra.mxu0 0
      %614 = vmatprep.subr.bf16.mxu0 0
      %615 = vmatpush2.bf16.msra.mxu0 0
      %616 = vmatprep.subr.bf16.mxu0 0
      %617 = vmatpush2.bf16.msra.mxu0 0
      %618 = vmatprep.mubr.bf16.mxu0 0
      %619 = vmatmul.mubr.bf16.gmra.mxu0 %v584
      %v620 = vpop.f32.mrf.mxu0
      %v621 = vadd.f32 0.0, %v620
      %v622 = vpop.f32.mrf.mxu0
      %v623 = vpop.f32.mrf.mxu0
      %v624 = vadd.f32 0.0, %v623
      %v625 = vpop.f32.mrf.mxu0
      %626 = vdwg.mxu0
      %v627 = vpack.c.bf16 %v624, %v621
      %629 = vrot.lane.b32.xlu0 %v379, 16
      %v630 = vpop.permute.xlu0 %629
      %632 = vrot.lane.b32.xlu0 %v503, 32
      %v633 = vpop.permute.xlu0 %632
      %635 = vrot.lane.b32.xlu0 %v627, 48
      %v636 = vpop.permute.xlu0 %635
      %v639 = vsel %vm134, %v255, %v630
      %vm640 = vcmask 261120
      %v642 = vsel %vm640, %v639, %v633
      %vm643 = vcmask 392192
      %v645 = vsel %vm643, %v642, %v636
      %v647 = vunpack.c.l.b16 %v645
      %v648 = vunpack.c.h.b16 %v645
      %v649 = vpack.c.b16 %v647, %v647
      %v650 = vpack.c.b16 %v648, %v648
      %vm653 = vcmask 519168
      %654 = vst.msk [vmem:[%s116] sm:$0xf] %vm653, %v649
      %655 = vst.msk [vmem:[%s116 + $0x4] sm:$0xf] %vm653, %v650
      %p656 = scmp.lt.s32.totalorder %s12, 1
      %s657 = scalar_select %p656, %s12, 1
      %s658 = smul.addr %s657, 2
      %s659 = smul.addr %s658, 4
      %s660 = scalar_lea.vmem %s1, %s659
      // Predicated region
      $region25: #{gpt_forward.8} parent=23 // pred_check
        %p661 = pneg %p56
      $region26: #{gpt_forward.8} parent=23 // pred_check_branch
        %663 = sbr.rel (%p661) target = $region28
      $region27: #{gpt_forward.8} parent=23 // pred_region
        _
      $region28: #{gpt_forward.8} parent=23 // pred_fallthru
        _
    $region24: #{gpt_forward.8} parent=5 // pred_fallthru
      _
    %p664 = scmp.le.s32.totalorder 2, %s7
    // Predicated region
    $region29: #{gpt_forward.8} parent=5 // pred_check
      %p665 = pneg %p664
    $region30: #{gpt_forward.8} parent=5 // pred_check_branch
      %667 = sbr.rel (%p665) target = $region32
    $region31: #{gpt_forward.8} parent=5 // pred_region
      %s668 = ssub.s32 %s7, 2
      // Predicated region
      $region33: #{gpt_forward.8} parent=31 // pred_check
        %p669 = pneg %p62
      $region34: #{gpt_forward.8} parent=31 // pred_check_branch
        %671 = sbr.rel (%p669) target = $region36
      $region35: #{gpt_forward.8} parent=31 // pred_region
        %p672 = scmp.lt.s32.totalorder %s13, 1
        %s673 = scalar_select %p672, %s13, 1
        %s674 = smul.addr %s673, 2
        %s675 = smul.addr %s674, 4
        %s676 = scalar_lea.vmem %s1, %s675
      $region36: #{gpt_forward.8} parent=31 // pred_fallthru
        _
    $region32: #{gpt_forward.8} parent=5 // pred_fallthru
      _
  $region6: #{gpt_forward.8} parent=0 // loop_footer
    %s11 = sadd.s32 1, %s7
  $region7: #{gpt_forward.8} parent=0 // loop_footer_branch
    %6 = sbr.rel target = $region3
  $region8: #{gpt_forward.8} parent=0 // loop_exit
    _

// kernel: gpt_forward.9
$region0: #{gpt_forward.9}
  #allocation0 [shape = 'u32[]', space=smem, size = 0x4, offset = 0x4, fixed_abs, tag = 'smem constant byte address 0x4 - core index']
  #allocation1 [shape = 'u32[144,128]{1,0:T(1,128)}', space=vmem, size = 0x12000, scoped, tag = 'internal scratch']
  #allocation2 [shape = 'f32[16,64]{1,0:T(8,128)}', space=vmem, size = 0x2000, scoped, tag = 'scratch operand']
  #allocation3 [shape = 'bf16[16,64]{1,0:T(8,128)(2,1)}', space=vmem, size = 0x1000, scoped, tag = 'scratch operand']
  #allocation4 [shape = 'f32[16,64]{1,0:T(8,128)}', space=vmem, size = 0x2000, scoped, tag = 'scratch operand']
  %s0 = inlined_call_operand.vmem [shape: bf16[2,16,64], index: 0, kind: input, shape index: {}]
  %s1 = inlined_call_operand.vmem [shape: bf16[2,16,64], index: 1, kind: input, shape index: {}]
  %s2 = inlined_call_operand.vmem [shape: bf16[64,64], index: 2, kind: input, shape index: {}]
  %s3 = inlined_call_operand.vmem [shape: f32[1,64], index: 3, kind: input, shape index: {}]
  %s4 = inlined_call_operand.vmem [shape: f32[1,64], index: 4, kind: input, shape index: {}]
  %s5 = inlined_call_operand.vmem [shape: f32[1,64], index: 5, kind: input, shape index: {}]
  %s6 = inlined_call_operand.vmem [shape: bf16[64,256], index: 6, kind: input, shape index: {}]
  %s7 = inlined_call_operand.vmem [shape: f32[1,256], index: 7, kind: input, shape index: {}]
  %s8 = inlined_call_operand.vmem [shape: bf16[256,64], index: 8, kind: input, shape index: {}]
  %s9 = inlined_call_operand.vmem [shape: f32[1,64], index: 9, kind: input, shape index: {}]
  %s10 = inlined_call_operand.vmem [shape: bf16[2,16,64], index: 10, kind: output, shape index: {}]
  %s11 = sld [smem:[#allocation0]]
  $region81: #{gpt_forward.9} parent=0
    _
  %s13 = ssub.s32 1, %s11
  %s14 = scalar_select 0, %s13, %s11
  loop: start=0, step=1, limit=4
  $region2: #{gpt_forward.9} parent=0 // loop_pre_header
    _
  $region3: #{gpt_forward.9} parent=0 // loop_header
    %s16 = sphi 0, %s20
    %p17 = scmp.ge.s32.totalorder %s16, 4
    %s23 = sphi 0, %s42
    %s24 = sphi 0, %s38
    %s25 = sphi 0, %s34
    %s26 = sphi 0, %s23
    %s27 = sphi 0, %s24
    %s28 = sphi 0, %s25
    %s29 = sphi 0, %s26
    %s30 = sphi 0, %s27
    %s31 = sphi 0, %s28
    %s47 = sphi 0, %s49
    %s50 = sphi 0, %s47
    %s51 = sphi 0, %s50
    %s67 = sphi 0, %s51
    %s75 = sphi 0, %s77
    %s78 = sphi 0, %s75
    %s79 = sphi 0, %s78
    %s95 = sphi 0, %s79
    %s99 = sphi 0, %s99
    %s101 = sphi 0, %s99
    %s102 = sphi 0, %s101
    %s116 = sphi 0, %s102
    %s120 = sphi 0, %s120
    %s122 = sphi 0, %s120
    %s123 = sphi 0, %s122
    %s137 = sphi 0, %s123
    %s141 = sphi 0, %s141
    %s143 = sphi 0, %s141
    %s144 = sphi 0, %s143
    %s158 = sphi 0, %s144
    %s162 = sphi 0, %s162
    %s164 = sphi 0, %s162
    %s165 = sphi 0, %s164
    %s179 = sphi 0, %s165
    %s185 = sphi 0, %s187
    %s188 = sphi 0, %s185
    %s189 = sphi 0, %s188
    %s205 = sphi 0, %s189
    %s211 = sphi 0, %s213
    %s214 = sphi 0, %s211
    %s215 = sphi 0, %s214
    %s231 = sphi 0, %s215
    %s237 = sphi 0, %s239
    %s240 = sphi 0, %s237
    %s241 = sphi 0, %s240
    %s257 = sphi 0, %s241
    %s261 = sphi 0, %s261
    %s263 = sphi 0, %s261
    %s264 = sphi 0, %s263
    %s278 = sphi 0, %s264
    %s286 = sphi 0, %s288
    %s289 = sphi 0, %s286
    %s290 = sphi 0, %s289
    %s306 = sphi 0, %s290
  $region4: #{gpt_forward.9} parent=0 // loop_header_branch
    %19 = sbr.rel (%p17) target = $region8
  $region5: #{gpt_forward.9} parent=0 // loop_body
    %s21 = ssub.s32 %s16, 1
    %s22 = ssub.s32 %s16, 2
    %s32 = sadd.s32 1, %s25
    %p33 = scmp.ge.s32.totalorder %s32, 1
    %s34 = scalar_select %p33, 0, %s32
    %s35 = sadd.s32 1, %s24
    %s36 = scalar_select %p33, %s35, %s24
    %p37 = scmp.ge.s32.totalorder %s36, 1
    %s38 = scalar_select %p37, 0, %s36
    %s39 = sadd.s32 1, %s23
    %s40 = scalar_select %p37, %s39, %s23
    %p41 = scmp.ge.s32.totalorder %s40, 2
    %s42 = scalar_select %p41, 0, %s40
    %s43 = ssub.s32 %s23, %s42
    %s44 = ssub.s32 %s24, %s38
    %s45 = sor.u32 %s43, %s44
    %p46 = scmp.eq.s32.totalorder %s45, 0
    %s48 = sadd.s32 %s47, 1
    %s49 = scalar_select %p46, %s47, %s48
    %p52 = pneg %p46
    %p53 = scmp.eq.s32.totalorder %s16, 1
    %p54 = por %p52, %p53
    %p55 = scmp.ne.s32.totalorder %s47, %s50
    %p56 = scmp.eq.s32.totalorder %s16, 0
    %p57 = por %p55, %p56
    %p58 = scmp.ne.s32.totalorder %s47, %s50
    %p59 = scmp.eq.s32.totalorder %s21, 1
    %p60 = por %p58, %p59
    %p61 = scmp.ne.s32.totalorder %s50, %s51
    %p62 = scmp.eq.s32.totalorder %s21, 0
    %p63 = por %p61, %p62
    %p64 = scmp.ne.s32.totalorder %s50, %s51
    %p65 = scmp.eq.s32.totalorder %s22, 1
    %p66 = por %p64, %p65
    %p68 = scmp.ne.s32.totalorder %s51, %s67
    %p69 = scmp.eq.s32.totalorder %s22, 0
    %p70 = por %p68, %p69
    %s71 = ssub.s32 %s23, %s42
    %s72 = ssub.s32 %s24, %s38
    %s73 = sor.u32 %s71, %s72
    %p74 = scmp.eq.s32.totalorder %s73, 0
    %s76 = sadd.s32 %s75, 1
    %s77 = scalar_select %p74, %s75, %s76
    %p80 = pneg %p74
    %p81 = scmp.eq.s32.totalorder %s16, 1
    %p82 = por %p80, %p81
    %p83 = scmp.ne.s32.totalorder %s75, %s78
    %p84 = scmp.eq.s32.totalorder %s16, 0
    %p85 = por %p83, %p84
    %p86 = scmp.ne.s32.totalorder %s75, %s78
    %p87 = scmp.eq.s32.totalorder %s21, 1
    %p88 = por %p86, %p87
    %p89 = scmp.ne.s32.totalorder %s78, %s79
    %p90 = scmp.eq.s32.totalorder %s21, 0
    %p91 = por %p89, %p90
    %p92 = scmp.ne.s32.totalorder %s78, %s79
    %p93 = scmp.eq.s32.totalorder %s22, 1
    %p94 = por %p92, %p93
    %p96 = scmp.ne.s32.totalorder %s79, %s95
    %p97 = scmp.eq.s32.totalorder %s22, 0
    %p98 = por %p96, %p97
    %s100 = sadd.s32 %s99, 1
    %p103 = scmp.eq.s32.totalorder %s16, 1
    %p104 = scmp.ne.s32.totalorder %s99, %s101
    %p105 = scmp.eq.s32.totalorder %s16, 0
    %p106 = por %p104, %p105
    %p107 = scmp.ne.s32.totalorder %s99, %s101
    %p108 = scmp.eq.s32.totalorder %s21, 1
    %p109 = por %p107, %p108
    %p110 = scmp.ne.s32.totalorder %s101, %s102
    %p111 = scmp.eq.s32.totalorder %s21, 0
    %p112 = por %p110, %p111
    %p113 = scmp.ne.s32.totalorder %s101, %s102
    %p114 = scmp.eq.s32.totalorder %s22, 1
    %p115 = por %p113, %p114
    %p117 = scmp.ne.s32.totalorder %s102, %s116
    %p118 = scmp.eq.s32.totalorder %s22, 0
    %p119 = por %p117, %p118
    %s121 = sadd.s32 %s120, 1
    %p124 = scmp.eq.s32.totalorder %s16, 1
    %p125 = scmp.ne.s32.totalorder %s120, %s122
    %p126 = scmp.eq.s32.totalorder %s16, 0
    %p127 = por %p125, %p126
    %p128 = scmp.ne.s32.totalorder %s120, %s122
    %p129 = scmp.eq.s32.totalorder %s21, 1
    %p130 = por %p128, %p129
    %p131 = scmp.ne.s32.totalorder %s122, %s123
    %p132 = scmp.eq.s32.totalorder %s21, 0
    %p133 = por %p131, %p132
    %p134 = scmp.ne.s32.totalorder %s122, %s123
    %p135 = scmp.eq.s32.totalorder %s22, 1
    %p136 = por %p134, %p135
    %p138 = scmp.ne.s32.totalorder %s123, %s137
    %p139 = scmp.eq.s32.totalorder %s22, 0
    %p140 = por %p138, %p139
    %s142 = sadd.s32 %s141, 1
    %p145 = scmp.eq.s32.totalorder %s16, 1
    %p146 = scmp.ne.s32.totalorder %s141, %s143
    %p147 = scmp.eq.s32.totalorder %s16, 0
    %p148 = por %p146, %p147
    %p149 = scmp.ne.s32.totalorder %s141, %s143
    %p150 = scmp.eq.s32.totalorder %s21, 1
    %p151 = por %p149, %p150
    %p152 = scmp.ne.s32.totalorder %s143, %s144
    %p153 = scmp.eq.s32.totalorder %s21, 0
    %p154 = por %p152, %p153
    %p155 = scmp.ne.s32.totalorder %s143, %s144
    %p156 = scmp.eq.s32.totalorder %s22, 1
    %p157 = por %p155, %p156
    %p159 = scmp.ne.s32.totalorder %s144, %s158
    %p160 = scmp.eq.s32.totalorder %s22, 0
    %p161 = por %p159, %p160
    %s163 = sadd.s32 %s162, 1
    %p166 = scmp.eq.s32.totalorder %s16, 1
    %p167 = scmp.ne.s32.totalorder %s162, %s164
    %p168 = scmp.eq.s32.totalorder %s16, 0
    %p169 = por %p167, %p168
    %p170 = scmp.ne.s32.totalorder %s162, %s164
    %p171 = scmp.eq.s32.totalorder %s21, 1
    %p172 = por %p170, %p171
    %p173 = scmp.ne.s32.totalorder %s164, %s165
    %p174 = scmp.eq.s32.totalorder %s21, 0
    %p175 = por %p173, %p174
    %p176 = scmp.ne.s32.totalorder %s164, %s165
    %p177 = scmp.eq.s32.totalorder %s22, 1
    %p178 = por %p176, %p177
    %p180 = scmp.ne.s32.totalorder %s165, %s179
    %p181 = scmp.eq.s32.totalorder %s22, 0
    %p182 = por %p180, %p181
    %s183 = ssub.s32 %s25, %s34
    %p184 = scmp.eq.s32.totalorder %s183, 0
    %s186 = sadd.s32 %s185, 1
    %s187 = scalar_select %p184, %s185, %s186
    %p190 = pneg %p184
    %p191 = scmp.eq.s32.totalorder %s16, 1
    %p192 = por %p190, %p191
    %p193 = scmp.ne.s32.totalorder %s185, %s188
    %p194 = scmp.eq.s32.totalorder %s16, 0
    %p195 = por %p193, %p194
    %p196 = scmp.ne.s32.totalorder %s185, %s188
    %p197 = scmp.eq.s32.totalorder %s21, 1
    %p198 = por %p196, %p197
    %p199 = scmp.ne.s32.totalorder %s188, %s189
    %p200 = scmp.eq.s32.totalorder %s21, 0
    %p201 = por %p199, %p200
    %p202 = scmp.ne.s32.totalorder %s188, %s189
    %p203 = scmp.eq.s32.totalorder %s22, 1
    %p204 = por %p202, %p203
    %p206 = scmp.ne.s32.totalorder %s189, %s205
    %p207 = scmp.eq.s32.totalorder %s22, 0
    %p208 = por %p206, %p207
    %s209 = ssub.s32 %s25, %s34
    %p210 = scmp.eq.s32.totalorder %s209, 0
    %s212 = sadd.s32 %s211, 1
    %s213 = scalar_select %p210, %s211, %s212
    %p216 = pneg %p210
    %p217 = scmp.eq.s32.totalorder %s16, 1
    %p218 = por %p216, %p217
    %p219 = scmp.ne.s32.totalorder %s211, %s214
    %p220 = scmp.eq.s32.totalorder %s16, 0
    %p221 = por %p219, %p220
    %p222 = scmp.ne.s32.totalorder %s211, %s214
    %p223 = scmp.eq.s32.totalorder %s21, 1
    %p224 = por %p222, %p223
    %p225 = scmp.ne.s32.totalorder %s214, %s215
    %p226 = scmp.eq.s32.totalorder %s21, 0
    %p227 = por %p225, %p226
    %p228 = scmp.ne.s32.totalorder %s214, %s215
    %p229 = scmp.eq.s32.totalorder %s22, 1
    %p230 = por %p228, %p229
    %p232 = scmp.ne.s32.totalorder %s215, %s231
    %p233 = scmp.eq.s32.totalorder %s22, 0
    %p234 = por %p232, %p233
    %s235 = ssub.s32 %s25, %s34
    %p236 = scmp.eq.s32.totalorder %s235, 0
    %s238 = sadd.s32 %s237, 1
    %s239 = scalar_select %p236, %s237, %s238
    %p242 = pneg %p236
    %p243 = scmp.eq.s32.totalorder %s16, 1
    %p244 = por %p242, %p243
    %p245 = scmp.ne.s32.totalorder %s237, %s240
    %p246 = scmp.eq.s32.totalorder %s16, 0
    %p247 = por %p245, %p246
    %p248 = scmp.ne.s32.totalorder %s237, %s240
    %p249 = scmp.eq.s32.totalorder %s21, 1
    %p250 = por %p248, %p249
    %p251 = scmp.ne.s32.totalorder %s240, %s241
    %p252 = scmp.eq.s32.totalorder %s21, 0
    %p253 = por %p251, %p252
    %p254 = scmp.ne.s32.totalorder %s240, %s241
    %p255 = scmp.eq.s32.totalorder %s22, 1
    %p256 = por %p254, %p255
    %p258 = scmp.ne.s32.totalorder %s241, %s257
    %p259 = scmp.eq.s32.totalorder %s22, 0
    %p260 = por %p258, %p259
    %s262 = sadd.s32 %s261, 1
    %p265 = scmp.eq.s32.totalorder %s16, 1
    %p266 = scmp.ne.s32.totalorder %s261, %s263
    %p267 = scmp.eq.s32.totalorder %s16, 0
    %p268 = por %p266, %p267
    %p269 = scmp.ne.s32.totalorder %s261, %s263
    %p270 = scmp.eq.s32.totalorder %s21, 1
    %p271 = por %p269, %p270
    %p272 = scmp.ne.s32.totalorder %s263, %s264
    %p273 = scmp.eq.s32.totalorder %s21, 0
    %p274 = por %p272, %p273
    %p275 = scmp.ne.s32.totalorder %s263, %s264
    %p276 = scmp.eq.s32.totalorder %s22, 1
    %p277 = por %p275, %p276
    %p279 = scmp.ne.s32.totalorder %s264, %s278
    %p280 = scmp.eq.s32.totalorder %s22, 0
    %p281 = por %p279, %p280
    %s282 = ssub.s32 %s23, %s42
    %s283 = ssub.s32 %s24, %s38
    %s284 = sor.u32 %s282, %s283
    %p285 = scmp.eq.s32.totalorder %s284, 0
    %s287 = sadd.s32 %s286, 1
    %s288 = scalar_select %p285, %s286, %s287
    %p291 = pneg %p285
    %p292 = scmp.eq.s32.totalorder %s16, 1
    %p293 = por %p291, %p292
    %p294 = scmp.ne.s32.totalorder %s286, %s289
    %p295 = scmp.eq.s32.totalorder %s16, 0
    %p296 = por %p294, %p295
    %p297 = scmp.ne.s32.totalorder %s286, %s289
    %p298 = scmp.eq.s32.totalorder %s21, 1
    %p299 = por %p297, %p298
    %p300 = scmp.ne.s32.totalorder %s289, %s290
    %p301 = scmp.eq.s32.totalorder %s21, 0
    %p302 = por %p300, %p301
    %p303 = scmp.ne.s32.totalorder %s289, %s290
    %p304 = scmp.eq.s32.totalorder %s22, 1
    %p305 = por %p303, %p304
    %p307 = scmp.ne.s32.totalorder %s290, %s306
    %p308 = scmp.eq.s32.totalorder %s22, 0
    %p309 = por %p307, %p308
    %p310 = scmp.le.s32.totalorder 1, %s16
    %p311 = scmp.lt.s32.totalorder %s16, 3
    %p312 = pnand %p310, %p311
    %p313 = pneg %p312
    // Predicated region
    $region9: #{gpt_forward.9} parent=5 // pred_check
      _
    $region10: #{gpt_forward.9} parent=5 // pred_check_branch
      %315 = sbr.rel (%p312) target = $region12
    $region11: #{gpt_forward.9} parent=5 // pred_region
      %s316 = ssub.s32 %s16, 1
      // Predicated region
      $region13: #{gpt_forward.9} parent=11 // pred_check
        %p317 = pneg %p112
      $region14: #{gpt_forward.9} parent=11 // pred_check_branch
        %319 = sbr.rel (%p317) target = $region16
      $region15: #{gpt_forward.9} parent=11 // pred_region
        _
      $region16: #{gpt_forward.9} parent=11 // pred_fallthru
        _
      // Predicated region
      $region17: #{gpt_forward.9} parent=11 // pred_check
        %p320 = pneg %p133
      $region18: #{gpt_forward.9} parent=11 // pred_check_branch
        %322 = sbr.rel (%p320) target = $region20
      $region19: #{gpt_forward.9} parent=11 // pred_region
        _
      $region20: #{gpt_forward.9} parent=11 // pred_fallthru
        _
      // Predicated region
      $region21: #{gpt_forward.9} parent=11 // pred_check
        %p323 = pneg %p154
      $region22: #{gpt_forward.9} parent=11 // pred_check_branch
        %325 = sbr.rel (%p323) target = $region24
      $region23: #{gpt_forward.9} parent=11 // pred_region
        _
      $region24: #{gpt_forward.9} parent=11 // pred_fallthru
        _
      // Predicated region
      $region25: #{gpt_forward.9} parent=11 // pred_check
        %p326 = pneg %p175
      $region26: #{gpt_forward.9} parent=11 // pred_check_branch
        %328 = sbr.rel (%p326) target = $region28
      $region27: #{gpt_forward.9} parent=11 // pred_region
        _
      $region28: #{gpt_forward.9} parent=11 // pred_fallthru
        _
      // Predicated region
      $region29: #{gpt_forward.9} parent=11 // pred_check
        %p329 = pneg %p201
      $region30: #{gpt_forward.9} parent=11 // pred_check_branch
        %331 = sbr.rel (%p329) target = $region32
      $region31: #{gpt_forward.9} parent=11 // pred_region
        %s332 = smul.u32 2, %s28
        %p333 = scmp.lt.s32.totalorder %s332, 1
        %s334 = scalar_select %p333, %s332, 1
        %s335 = smul.addr %s334, 4
        %s336 = scalar_lea.vmem %s6, %s335
        %s337 = smul.u32 2, %s28
      $region32: #{gpt_forward.9} parent=11 // pred_fallthru
        _
      // Predicated region
      $region33: #{gpt_forward.9} parent=11 // pred_check
        %p338 = pneg %p227
      $region34: #{gpt_forward.9} parent=11 // pred_check_branch
        %340 = sbr.rel (%p338) target = $region36
      $region35: #{gpt_forward.9} parent=11 // pred_region
        %s341 = smul.u32 2, %s28
        %p342 = scmp.lt.s32.totalorder %s341, 1
        %s343 = scalar_select %p342, %s341, 1
        %s344 = scalar_lea.vmem %s7, %s343
        %s345 = smul.u32 2, %s28
      $region36: #{gpt_forward.9} parent=11 // pred_fallthru
        _
      // Predicated region
      $region37: #{gpt_forward.9} parent=11 // pred_check
        %p346 = pneg %p253
      $region38: #{gpt_forward.9} parent=11 // pred_check_branch
        %348 = sbr.rel (%p346) target = $region40
      $region39: #{gpt_forward.9} parent=11 // pred_region
        %s349 = smul.u32 32, %s28
        %p350 = scmp.lt.s32.totalorder %s349, 31
        %s351 = scalar_select %p350, %s349, 31
        %s352 = smul.addr %s351, 4
        %s353 = scalar_lea.vmem %s8, %s352
        %s354 = smul.u32 32, %s28
      $region40: #{gpt_forward.9} parent=11 // pred_fallthru
        _
      // Predicated region
      $region41: #{gpt_forward.9} parent=11 // pred_check
        %p355 = pneg %p274
      $region42: #{gpt_forward.9} parent=11 // pred_check_branch
        %357 = sbr.rel (%p355) target = $region44
      $region43: #{gpt_forward.9} parent=11 // pred_region
        _
      $region44: #{gpt_forward.9} parent=11 // pred_fallthru
        _
    $region12: #{gpt_forward.9} parent=5 // pred_fallthru
      _
    %p358 = scmp.lt.s32.totalorder %s16, 2
    // Predicated region
    $region45: #{gpt_forward.9} parent=5 // pred_check
      %p359 = pneg %p358
    $region46: #{gpt_forward.9} parent=5 // pred_check_branch
      %361 = sbr.rel (%p359) target = $region48
    $region47: #{gpt_forward.9} parent=5 // pred_region
      // Predicated region
      $region49: #{gpt_forward.9} parent=47 // pred_check
        %p362 = pneg %p57
      $region50: #{gpt_forward.9} parent=47 // pred_check_branch
        %364 = sbr.rel (%p362) target = $region52
      $region51: #{gpt_forward.9} parent=47 // pred_region
        %s365 = smul.u32 2, %s24
        %p366 = scmp.lt.s32.totalorder %s23, 1
        %s367 = scalar_select %p366, %s23, 1
        %p368 = scmp.lt.s32.totalorder %s365, 1
        %s369 = scalar_select %p368, %s365, 1
        %s370 = smul.addr %s367, 2
        %s371 = sadd.s32 %s369, %s370
        %s372 = smul.addr %s371, 4
        %s373 = scalar_lea.vmem %s0, %s372
        %s374 = smul.u32 2, %s24
      $region52: #{gpt_forward.9} parent=47 // pred_fallthru
        _
      // Predicated region
      $region53: #{gpt_forward.9} parent=47 // pred_check
        %p375 = pneg %p85
      $region54: #{gpt_forward.9} parent=47 // pred_check_branch
        %377 = sbr.rel (%p375) target = $region56
      $region55: #{gpt_forward.9} parent=47 // pred_region
        %s378 = smul.u32 2, %s24
        %p379 = scmp.lt.s32.totalorder %s23, 1
        %s380 = scalar_select %p379, %s23, 1
        %p381 = scmp.lt.s32.totalorder %s378, 1
        %s382 = scalar_select %p381, %s378, 1
        %s383 = smul.addr %s380, 2
        %s384 = sadd.s32 %s382, %s383
        %s385 = smul.addr %s384, 4
        %s386 = scalar_lea.vmem %s1, %s385
        %s387 = smul.u32 2, %s24
      $region56: #{gpt_forward.9} parent=47 // pred_fallthru
        _
    $region48: #{gpt_forward.9} parent=5 // pred_fallthru
      _
    %p388 = scmp.le.s32.totalorder 1, %s16
    %p389 = scmp.lt.s32.totalorder %s16, 3
    %p390 = pnand %p388, %p389
    %p391 = pneg %p390
    // Predicated region
    $region57: #{gpt_forward.9} parent=5 // pred_check
      _
    $region58: #{gpt_forward.9} parent=5 // pred_check_branch
      %393 = sbr.rel (%p390) target = $region60
    $region59: #{gpt_forward.9} parent=5 // pred_region
      %s394 = ssub.s32 %s16, 1
      %s395 = smul.u32 2, %s27
      %p396 = scmp.lt.s32.totalorder %s26, 1
      %s397 = scalar_select %p396, %s26, 1
      %p398 = scmp.lt.s32.totalorder %s395, 1
      %s399 = scalar_select %p398, %s395, 1
      %s400 = smul.addr %s397, 2
      %s401 = sadd.s32 %s399, %s400
      %s402 = smul.addr %s401, 4
      %s403 = scalar_lea.vmem %s0, %s402
      %p404 = pneg %p63
      %p405 = pneg %p60
      %s406 = smul.u32 2, %s27
      %p407 = scmp.lt.s32.totalorder %s26, 1
      %s408 = scalar_select %p407, %s26, 1
      %p409 = scmp.lt.s32.totalorder %s406, 1
      %s410 = scalar_select %p409, %s406, 1
      %s411 = smul.addr %s408, 2
      %s412 = sadd.s32 %s410, %s411
      %s413 = smul.addr %s412, 4
      %s414 = scalar_lea.vmem %s1, %s413
      %p415 = pneg %p91
      %p416 = pneg %p88
      %p417 = pneg %p112
      %p418 = pneg %p109
      %p419 = pneg %p133
      %p420 = pneg %p130
      %p421 = pneg %p154
      %p422 = pneg %p151
      %p423 = pneg %p175
      %p424 = pneg %p172
      %s425 = smul.u32 2, %s28
      %p426 = scmp.lt.s32.totalorder %s425, 1
      %s427 = scalar_select %p426, %s425, 1
      %s428 = smul.addr %s427, 4
      %s429 = scalar_lea.vmem %s6, %s428
      %p430 = pneg %p201
      %p431 = pneg %p198
      %s432 = smul.u32 2, %s28
      %p433 = scmp.lt.s32.totalorder %s432, 1
      %s434 = scalar_select %p433, %s432, 1
      %s435 = scalar_lea.vmem %s7, %s434
      %p436 = pneg %p227
      %p437 = pneg %p224
      %s438 = smul.u32 32, %s28
      %p439 = scmp.lt.s32.totalorder %s438, 31
      %s440 = scalar_select %p439, %s438, 31
      %s441 = smul.addr %s440, 4
      %s442 = scalar_lea.vmem %s8, %s441
      %p443 = pneg %p253
      %p444 = pneg %p250
      %p445 = pneg %p274
      %p446 = pneg %p271
      %p447 = pneg %p302
      %p448 = pneg %p299
      %s449 = smul.u32 2, %s27
      %p450 = scmp.lt.s32.totalorder %s26, 1
      %s451 = scalar_select %p450, %s26, 1
      %p452 = scmp.lt.s32.totalorder %s449, 1
      %s453 = scalar_select %p452, %s449, 1
      %s454 = smul.addr %s451, 2
      %s455 = sadd.s32 %s453, %s454
      %s456 = smul.addr %s455, 4
      %s457 = scalar_lea.vmem %s10, %s456
      %s458 = smul.u32 2, %s27
      %p459 = scmp.lt.s32.totalorder %s26, 1
      %s460 = scalar_select %p459, %s26, 1
      %p461 = scmp.lt.s32.totalorder %s458, 1
      %s462 = scalar_select %p461, %s458, 1
      %s463 = smul.addr %s460, 2
      %s464 = sadd.s32 %s462, %s463
      %s465 = smul.addr %s464, 4
      %s466 = scalar_lea.vmem %s0, %s465
      %s467 = smul.u32 2, %s27
      %s468 = smul.u32 2, %s27
      %p469 = scmp.lt.s32.totalorder %s26, 1
      %s470 = scalar_select %p469, %s26, 1
      %p471 = scmp.lt.s32.totalorder %s468, 1
      %s472 = scalar_select %p471, %s468, 1
      %s473 = smul.addr %s470, 2
      %s474 = sadd.s32 %s472, %s473
      %s475 = smul.addr %s474, 4
      %s476 = scalar_lea.vmem %s1, %s475
      %s477 = smul.u32 2, %s27
      %s478 = smul.u32 2, %s28
      %p479 = scmp.lt.s32.totalorder %s478, 1
      %s480 = scalar_select %p479, %s478, 1
      %s481 = smul.addr %s480, 4
      %s482 = scalar_lea.vmem %s6, %s481
      %s483 = smul.u32 2, %s28
      %s484 = smul.u32 2, %s28
      %p485 = scmp.lt.s32.totalorder %s484, 1
      %s486 = scalar_select %p485, %s484, 1
      %s487 = scalar_lea.vmem %s7, %s486
      %s488 = smul.u32 2, %s28
      %s489 = smul.u32 32, %s28
      %p490 = scmp.lt.s32.totalorder %s489, 31
      %s491 = scalar_select %p490, %s489, 31
      %s492 = smul.addr %s491, 4
      %s493 = scalar_lea.vmem %s8, %s492
      %s494 = smul.u32 32, %s28
      %s495 = smul.u32 2, %s27
      %p496 = scmp.lt.s32.totalorder %s26, 1
      %s497 = scalar_select %p496, %s26, 1
      %p498 = scmp.lt.s32.totalorder %s495, 1
      %s499 = scalar_select %p498, %s495, 1
      %s500 = smul.addr %s497, 2
      %s501 = sadd.s32 %s499, %s500
      %s502 = smul.addr %s501, 4
      %s503 = scalar_lea.vmem %s10, %s502
      %s504 = smul.u32 2, %s27
      %p506 = scmp.eq.s32.totalorder %s28, 0
      // Predicated region
      $region61: #{gpt_forward.9} parent=59 // pred_check
        %p507 = pneg %p506
      $region62: #{gpt_forward.9} parent=59 // pred_check_branch
        %509 = sbr.rel (%p507) target = $region64
      $region63: #{gpt_forward.9} parent=59 // pred_region
        %v510 = vld [vmem:[%s466] sm:$0xf]
        %v511 = vld [vmem:[%s466 + $0x4] sm:$0xf]
        %v512 = vunpack.c.l.bf16 %v510
        %v513 = vunpack.c.l.bf16 %v511
        %v514 = vld [vmem:[%s476] sm:$0xf]
        %v515 = vld [vmem:[%s476 + $0x4] sm:$0xf]
        %v516 = vld [vmem:[%s2] sm:$0xf]
        %v517 = vld [vmem:[%s2 + $0x4] sm:$0xf]
        %v518 = vld [vmem:[%s2 + $0x8] sm:$0xf]
        %v519 = vld [vmem:[%s2 + $0xc] sm:$0xf]
        %v520 = vld [vmem:[%s2 + $0x10] sm:$0xf]
        %v521 = vld [vmem:[%s2 + $0x14] sm:$0xf]
        %v522 = vld [vmem:[%s2 + $0x18] sm:$0xf]
        %v523 = vld [vmem:[%s2 + $0x1c] sm:$0xf]
        %v524 = vld [vmem:[%s3] sm:$0x1]
        %v526 = vlaneseq
        %v527 = vshrl.u32 %v526, 7
        %v528 = vsub.s32 0, %v527
        %v529 = vrot.slane %v524, %v528
        %v533 = vunpack.c.l.b16 %v514
        %v534 = vunpack.c.l.b16 %v515
        %v535 = vpack.c.b16 %v534, %v533
        %v544 = vunpack.c.l.b16 %v516
        %v545 = vunpack.c.l.b16 %v517
        %v546 = vunpack.c.l.b16 %v518
        %v547 = vunpack.c.l.b16 %v519
        %v548 = vunpack.c.l.b16 %v520
        %v549 = vunpack.c.l.b16 %v521
        %v550 = vunpack.c.l.b16 %v522
        %v551 = vunpack.c.l.b16 %v523
        %v552 = vpack.c.b16 %v545, %v544
        %v553 = vpack.c.b16 %v547, %v546
        %v554 = vpack.c.b16 %v549, %v548
        %v555 = vpack.c.b16 %v551, %v550
        %vm560 = vcmask 523264
        %v562 = vsel %vm560, %v535, 0
        %564 = vmatprep.subr.bf16.mxu0 0
        %565 = vmatpush1.bf16.msra.mxu0 0
        %566 = vmatprep.subr.bf16.mxu0 0
        %567 = vmatpush1.bf16.msra.mxu0 0
        %568 = vmatprep.subr.bf16.mxu0 0
        %569 = vmatpush1.bf16.msra.mxu0 0
        %570 = vmatprep.subr.bf16.mxu0 0
        %571 = vmatpush1.bf16.msra.mxu0 0
        %572 = vmatprep.subr.bf16.mxu0 0
        %573 = vmatpush1.bf16.msra.mxu0 %v555
        %574 = vmatprep.subr.bf16.mxu0 0
        %575 = vmatpush1.bf16.msra.mxu0 %v554
        %576 = vmatprep.subr.bf16.mxu0 0
        %577 = vmatpush1.bf16.msra.mxu0 %v553
        %578 = vmatprep.subr.bf16.mxu0 0
        %579 = vmatpush1.bf16.msra.mxu0 %v552
        %580 = vmatprep.subr.bf16.mxu0 0
        %581 = vmatpush2.bf16.msra.mxu0 0
        %582 = vmatprep.subr.bf16.mxu0 0
        %583 = vmatpush2.bf16.msra.mxu0 0
        %584 = vmatprep.subr.bf16.mxu0 0
        %585 = vmatpush2.bf16.msra.mxu0 0
        %586 = vmatprep.subr.bf16.mxu0 0
        %587 = vmatpush2.bf16.msra.mxu0 0
        %588 = vmatprep.subr.bf16.mxu0 0
        %589 = vmatpush2.bf16.msra.mxu0 0
        %590 = vmatprep.subr.bf16.mxu0 0
        %591 = vmatpush2.bf16.msra.mxu0 0
        %592 = vmatprep.subr.bf16.mxu0 0
        %593 = vmatpush2.bf16.msra.mxu0 0
        %594 = vmatprep.subr.bf16.mxu0 0
        %595 = vmatpush2.bf16.msra.mxu0 0
        %596 = vmatprep.mubr.bf16.mxu0 0
        %597 = vmatmul.mubr.bf16.gmra.mxu0 %v562
        %v598 = vpop.f32.mrf.mxu0
        %v599 = vadd.f32 %v529, %v598
        %v600 = vpop.f32.mrf.mxu0
        %v601 = vpop.f32.mrf.mxu0
        %v602 = vadd.f32 %v529, %v601
        %v603 = vpop.f32.mrf.mxu0
        %604 = vdwg.mxu0
        %v605 = vadd.f32 %v512, %v599
        %v606 = vadd.f32 %v513, %v602
        %607 = vst.msk [vmem:[#allocation2] sm:$0xff] %vm560, %v605
        %608 = vst.msk [vmem:[#allocation2 + $0x8] sm:$0xff] %vm560, %v606
        %v609 = vld [vmem:[%s4] sm:$0x1]
        %v610 = vld [vmem:[%s5] sm:$0x1]
        %v611 = vsel %vm560, %v605, 0.0
        %612 = vadd.xlane.f32.xlu0 %v611
        %v613 = vpop.xlane.xlu0 %612
        %v614 = vsel %vm560, %v606, 0.0
        %615 = vadd.xlane.f32.xlu0 %v614
        %v616 = vpop.xlane.xlu0 %615
        %v617 = vrcp.pop 64.0
        %v618 = vmul.f32 %v613, %v617
        %v619 = vmul.f32 %v616, %v617
        %v620 = vsub.f32 %v605, %v618
        %v621 = vsub.f32 %v606, %v619
        %v622 = vmul.f32 %v620, %v620
        %v623 = vmul.f32 %v621, %v621
        %v624 = vsel %vm560, %v622, 0.0
        %625 = vadd.xlane.f32.xlu0 %v624
        %v626 = vpop.xlane.xlu0 %625
        %v627 = vsel %vm560, %v623, 0.0
        %628 = vadd.xlane.f32.xlu0 %v627
        %v629 = vpop.xlane.xlu0 %628
        %v630 = vmul.f32 %v626, %v617
        %v631 = vmul.f32 %v629, %v617
        %v632 = vadd.f32 %v630, 1e-05
        %v633 = vadd.f32 %v631, 1e-05
        %v634 = vrsqrt.pop %v632
        %v635 = vrsqrt.pop %v633
        %v636 = vmul.f32 %v620, %v634
        %v637 = vmul.f32 %v621, %v635
        %v639 = vlaneseq
        %v640 = vshrl.u32 %v639, 7
        %v641 = vsub.s32 0, %v640
        %v642 = vrot.slane %v609, %v641
        %v644 = vmul.f32 %v636, %v642
        %v645 = vmul.f32 %v637, %v642
        %v647 = vlaneseq
        %v648 = vshrl.u32 %v647, 7
        %v649 = vsub.s32 0, %v648
        %v650 = vrot.slane %v610, %v649
        %v652 = vadd.f32 %v644, %v650
        %v653 = vadd.f32 %v645, %v650
        %v654 = vpack.c.bf16 %v653, %v652
        %v656 = vunpack.c.l.b16 %v654
        %v657 = vunpack.c.h.b16 %v654
        %v658 = vpack.c.b16 %v656, %v656
        %v659 = vpack.c.b16 %v657, %v657
        %vm662 = vcmask 519168
        %663 = vst.msk [vmem:[#allocation3] sm:$0xf] %vm662, %v658
        %664 = vst.msk [vmem:[#allocation3 + $0x4] sm:$0xf] %vm662, %v659
        %665 = vst.msk [vmem:[#allocation4] sm:$0xff] %vm560, 0.0
        %666 = vst.msk [vmem:[#allocation4 + $0x8] sm:$0xff] %vm560, 0.0
      $region64: #{gpt_forward.9} parent=59 // pred_fallthru
        _
      %v667 = vld [vmem:[#allocation3] sm:$0xf]
      %v668 = vld [vmem:[#allocation3 + $0x4] sm:$0xf]
      %v669 = vld [vmem:[%s482] sm:$0xff]
      %v670 = vld [vmem:[%s482 + $0x8] sm:$0xff]
      %v671 = vld [vmem:[%s482 + $0x10] sm:$0xff]
      %v672 = vld [vmem:[%s482 + $0x18] sm:$0xff]
      %v673 = vld [vmem:[%s482 + $0x20] sm:$0xff]
      %v674 = vld [vmem:[%s482 + $0x28] sm:$0xff]
      %v675 = vld [vmem:[%s482 + $0x30] sm:$0xff]
      %v676 = vld [vmem:[%s482 + $0x38] sm:$0xff]
      %v677 = vld [vmem:[%s487] sm:$0x3]
      %v679 = vlaneseq
      %v680 = vshrl.u32 %v679, 7
      %v681 = vsub.s32 0, %v680
      %v682 = vrot.slane %v677, %v681
      %v683 = vlaneseq
      %v684 = vshrl.u32 %v683, 7
      %v685 = vsub.s32 1, %v684
      %v686 = vrot.slane %v677, %v685
      %v691 = vunpack.c.l.b16 %v667
      %v692 = vunpack.c.l.b16 %v668
      %v693 = vpack.c.b16 %v692, %v691
      %v702 = vunpack.c.l.b16 %v669
      %v703 = vunpack.c.h.b16 %v669
      %v704 = vunpack.c.l.b16 %v670
      %v705 = vunpack.c.h.b16 %v670
      %v706 = vunpack.c.l.b16 %v671
      %v707 = vunpack.c.h.b16 %v671
      %v708 = vunpack.c.l.b16 %v672
      %v709 = vunpack.c.h.b16 %v672
      %v710 = vunpack.c.l.b16 %v673
      %v711 = vunpack.c.h.b16 %v673
      %v712 = vunpack.c.l.b16 %v674
      %v713 = vunpack.c.h.b16 %v674
      %v714 = vunpack.c.l.b16 %v675
      %v715 = vunpack.c.h.b16 %v675
      %v716 = vunpack.c.l.b16 %v676
      %v717 = vunpack.c.h.b16 %v676
      %v718 = vpack.c.b16 %v704, %v702
      %v719 = vpack.c.b16 %v705, %v703
      %v720 = vpack.c.b16 %v708, %v706
      %v721 = vpack.c.b16 %v709, %v707
      %v722 = vpack.c.b16 %v712, %v710
      %v723 = vpack.c.b16 %v713, %v711
      %v724 = vpack.c.b16 %v716, %v714
      %v725 = vpack.c.b16 %v717, %v715
      %vm734 = vcmask 523264
      %v736 = vsel %vm734, %v693, 0
      %738 = vmatprep.subr.bf16.mxu0 0
      %739 = vmatpush1.bf16.msra.mxu0 0
      %740 = vmatprep.subr.bf16.mxu0 0
      %741 = vmatpush1.bf16.msra.mxu0 0
      %742 = vmatprep.subr.bf16.mxu0 0
      %743 = vmatpush1.bf16.msra.mxu0 0
      %744 = vmatprep.subr.bf16.mxu0 0
      %745 = vmatpush1.bf16.msra.mxu0 0
      %746 = vmatprep.subr.bf16.mxu0 %v725
      %747 = vmatpush1.bf16.msra.mxu0 %v724
      %748 = vmatprep.subr.bf16.mxu0 %v723
      %749 = vmatpush1.bf16.msra.mxu0 %v722
      %750 = vmatprep.subr.bf16.mxu0 %v721
      %751 = vmatpush1.bf16.msra.mxu0 %v720
      %752 = vmatprep.subr.bf16.mxu0 %v719
      %753 = vmatpush1.bf16.msra.mxu0 %v718
      %754 = vmatprep.subr.bf16.mxu0 0
      %755 = vmatpush2.bf16.msra.mxu0 0
      %756 = vmatprep.subr.bf16.mxu0 0
      %757 = vmatpush2.bf16.msra.mxu0 0
      %758 = vmatprep.subr.bf16.mxu0 0
      %759 = vmatpush2.bf16.msra.mxu0 0
      %760 = vmatprep.subr.bf16.mxu0 0
      %761 = vmatpush2.bf16.msra.mxu0 0
      %762 = vmatprep.subr.bf16.mxu0 0
      %763 = vmatpush2.bf16.msra.mxu0 0
      %764 = vmatprep.subr.bf16.mxu0 0
      %765 = vmatpush2.bf16.msra.mxu0 0
      %766 = vmatprep.subr.bf16.mxu0 0
      %767 = vmatpush2.bf16.msra.mxu0 0
      %768 = vmatprep.subr.bf16.mxu0 0
      %769 = vmatpush2.bf16.msra.mxu0 0
      %770 = vmatprep.mubr.bf16.mxu0 0
      %771 = vmatmul.mubr.bf16.gmra.mxu0 %v736
      %v772 = vpop.f32.mrf.mxu0
      %v773 = vadd.f32 %v682, %v772
      %v774 = vpop.f32.mrf.mxu0
      %v775 = vadd.f32 %v686, %v774
      %v776 = vpop.f32.mrf.mxu0
      %v777 = vadd.f32 %v682, %v776
      %v778 = vpop.f32.mrf.mxu0
      %v779 = vadd.f32 %v686, %v778
      %780 = vdwg.mxu0
      %v781 = vmul.f32 %v773, 0.5
      %v782 = vmul.f32 %v775, 0.5
      %v783 = vmul.f32 %v777, 0.5
      %v784 = vmul.f32 %v779, 0.5
      %v785 = vmul.f32 %v773, 0.044715
      %v786 = vmul.f32 %v775, 0.044715
      %v787 = vmul.f32 %v777, 0.044715
      %v788 = vmul.f32 %v779, 0.044715
      %v789 = vmul.f32 %v785, %v773
      %v790 = vmul.f32 %v786, %v775
      %v791 = vmul.f32 %v787, %v777
      %v792 = vmul.f32 %v788, %v779
      %v793 = vmul.f32 %v789, %v773
      %v794 = vmul.f32 %v790, %v775
      %v795 = vmul.f32 %v791, %v777
      %v796 = vmul.f32 %v792, %v779
      %v797 = vadd.f32 %v773, %v793
      %v798 = vadd.f32 %v775, %v794
      %v799 = vadd.f32 %v777, %v795
      %v800 = vadd.f32 %v779, %v796
      %v801 = vmul.f32 %v797, 0.7978846
      %v802 = vmul.f32 %v798, 0.7978846
      %v803 = vmul.f32 %v799, 0.7978846
      %v804 = vmul.f32 %v800, 0.7978846
      %v805 = vtanh.pop %v801
      %v806 = vtanh.pop %v802
      %v807 = vtanh.pop %v803
      %v808 = vtanh.pop %v804
      %v809 = vadd.f32 %v805, 1.0
      %v810 = vadd.f32 %v806, 1.0
      %v811 = vadd.f32 %v807, 1.0
      %v812 = vadd.f32 %v808, 1.0
      %v813 = vmul.f32 %v781, %v809
      %v814 = vmul.f32 %v782, %v810
      %v815 = vmul.f32 %v783, %v811
      %v816 = vmul.f32 %v784, %v812
      %v817 = vld [vmem:[#allocation4] sm:$0xff]
      %v818 = vld [vmem:[#allocation4 + $0x8] sm:$0xff]
      %v819 = vpack.c.bf16 %v815, %v813
      %v820 = vpack.c.bf16 %v816, %v814
      %v821 = vld [vmem:[%s493] sm:$0xf]
      %v822 = vld [vmem:[%s493 + $0x4] sm:$0xf]
      %v823 = vld [vmem:[%s493 + $0x8] sm:$0xf]
      %v824 = vld [vmem:[%s493 + $0xc] sm:$0xf]
      %v825 = vld [vmem:[%s493 + $0x10] sm:$0xf]
      %v826 = vld [vmem:[%s493 + $0x14] sm:$0xf]
      %v827 = vld [vmem:[%s493 + $0x18] sm:$0xf]
      %v828 = vld [vmem:[%s493 + $0x1c] sm:$0xf]
      %v829 = vld [vmem:[%s493 + $0x20] sm:$0xf]
      %v830 = vld [vmem:[%s493 + $0x24] sm:$0xf]
      %v831 = vld [vmem:[%s493 + $0x28] sm:$0xf]
      %v832 = vld [vmem:[%s493 + $0x2c] sm:$0xf]
      %v833 = vld [vmem:[%s493 + $0x30] sm:$0xf]
      %v834 = vld [vmem:[%s493 + $0x34] sm:$0xf]
      %v835 = vld [vmem:[%s493 + $0x38] sm:$0xf]
      %v836 = vld [vmem:[%s493 + $0x3c] sm:$0xf]
      %v837 = vld [vmem:[%s493 + $0x40] sm:$0xf]
      %v838 = vld [vmem:[%s493 + $0x44] sm:$0xf]
      %v839 = vld [vmem:[%s493 + $0x48] sm:$0xf]
      %v840 = vld [vmem:[%s493 + $0x4c] sm:$0xf]
      %v841 = vld [vmem:[%s493 + $0x50] sm:$0xf]
      %v842 = vld [vmem:[%s493 + $0x54] sm:$0xf]
      %v843 = vld [vmem:[%s493 + $0x58] sm:$0xf]
      %v844 = vld [vmem:[%s493 + $0x5c] sm:$0xf]
      %v845 = vld [vmem:[%s493 + $0x60] sm:$0xf]
      %v846 = vld [vmem:[%s493 + $0x64] sm:$0xf]
      %v847 = vld [vmem:[%s493 + $0x68] sm:$0xf]
      %v848 = vld [vmem:[%s493 + $0x6c] sm:$0xf]
      %v849 = vld [vmem:[%s493 + $0x70] sm:$0xf]
      %v850 = vld [vmem:[%s493 + $0x74] sm:$0xf]
      %v851 = vld [vmem:[%s493 + $0x78] sm:$0xf]
      %v852 = vld [vmem:[%s493 + $0x7c] sm:$0xf]
      %v885 = vunpack.c.l.b16 %v821
      %v886 = vunpack.c.l.b16 %v822
      %v887 = vunpack.c.l.b16 %v823
      %v888 = vunpack.c.l.b16 %v824
      %v889 = vunpack.c.l.b16 %v825
      %v890 = vunpack.c.l.b16 %v826
      %v891 = vunpack.c.l.b16 %v827
      %v892 = vunpack.c.l.b16 %v828
      %v893 = vunpack.c.l.b16 %v829
      %v894 = vunpack.c.l.b16 %v830
      %v895 = vunpack.c.l.b16 %v831
      %v896 = vunpack.c.l.b16 %v832
      %v897 = vunpack.c.l.b16 %v833
      %v898 = vunpack.c.l.b16 %v834
      %v899 = vunpack.c.l.b16 %v835
      %v900 = vunpack.c.l.b16 %v836
      %v901 = vunpack.c.l.b16 %v837
      %v902 = vunpack.c.l.b16 %v838
      %v903 = vunpack.c.l.b16 %v839
      %v904 = vunpack.c.l.b16 %v840
      %v905 = vunpack.c.l.b16 %v841
      %v906 = vunpack.c.l.b16 %v842
      %v907 = vunpack.c.l.b16 %v843
      %v908 = vunpack.c.l.b16 %v844
      %v909 = vunpack.c.l.b16 %v845
      %v910 = vunpack.c.l.b16 %v846
      %v911 = vunpack.c.l.b16 %v847
      %v912 = vunpack.c.l.b16 %v848
      %v913 = vunpack.c.l.b16 %v849
      %v914 = vunpack.c.l.b16 %v850
      %v915 = vunpack.c.l.b16 %v851
      %v916 = vunpack.c.l.b16 %v852
      %v917 = vpack.c.b16 %v886, %v885
      %v918 = vpack.c.b16 %v888, %v887
      %v919 = vpack.c.b16 %v890, %v889
      %v920 = vpack.c.b16 %v892, %v891
      %v921 = vpack.c.b16 %v894, %v893
      %v922 = vpack.c.b16 %v896, %v895
      %v923 = vpack.c.b16 %v898, %v897
      %v924 = vpack.c.b16 %v900, %v899
      %v925 = vpack.c.b16 %v902, %v901
      %v926 = vpack.c.b16 %v904, %v903
      %v927 = vpack.c.b16 %v906, %v905
      %v928 = vpack.c.b16 %v908, %v907
      %v929 = vpack.c.b16 %v910, %v909
      %v930 = vpack.c.b16 %v912, %v911
      %v931 = vpack.c.b16 %v914, %v913
      %v932 = vpack.c.b16 %v916, %v915
      %949 = vmatprep.subr.bf16.mxu0 0
      %950 = vmatpush1.bf16.msra.mxu0 %v924
      %951 = vmatprep.subr.bf16.mxu0 0
      %952 = vmatpush1.bf16.msra.mxu0 %v923
      %953 = vmatprep.subr.bf16.mxu0 0
      %954 = vmatpush1.bf16.msra.mxu0 %v922
      %955 = vmatprep.subr.bf16.mxu0 0
      %956 = vmatpush1.bf16.msra.mxu0 %v921
      %957 = vmatprep.subr.bf16.mxu0 0
      %958 = vmatpush1.bf16.msra.mxu0 %v920
      %959 = vmatprep.subr.bf16.mxu0 0
      %960 = vmatpush1.bf16.msra.mxu0 %v919
      %961 = vmatprep.subr.bf16.mxu0 0
      %962 = vmatpush1.bf16.msra.mxu0 %v918
      %963 = vmatprep.subr.bf16.mxu0 0
      %964 = vmatpush1.bf16.msra.mxu0 %v917
      %965 = vmatprep.subr.bf16.mxu0 0
      %966 = vmatpush2.bf16.msra.mxu0 %v932
      %967 = vmatprep.subr.bf16.mxu0 0
      %968 = vmatpush2.bf16.msra.mxu0 %v931
      %969 = vmatprep.subr.bf16.mxu0 0
      %970 = vmatpush2.bf16.msra.mxu0 %v930
      %971 = vmatprep.subr.bf16.mxu0 0
      %972 = vmatpush2.bf16.msra.mxu0 %v929
      %973 = vmatprep.subr.bf16.mxu0 0
      %974 = vmatpush2.bf16.msra.mxu0 %v928
      %975 = vmatprep.subr.bf16.mxu0 0
      %976 = vmatpush2.bf16.msra.mxu0 %v927
      %977 = vmatprep.subr.bf16.mxu0 0
      %978 = vmatpush2.bf16.msra.mxu0 %v926
      %979 = vmatprep.subr.bf16.mxu0 0
      %980 = vmatpush2.bf16.msra.mxu0 %v925
      %981 = vmatprep.mubr.bf16.mxu0 %v820
      %982 = vmatmul.mubr.bf16.gmra.mxu0 %v819
      %v983 = vpop.f32.mrf.mxu0
      %v984 = vadd.f32 0.0, %v983
      %v985 = vpop.f32.mrf.mxu0
      %v986 = vpop.f32.mrf.mxu0
      %v987 = vadd.f32 0.0, %v986
      %v988 = vpop.f32.mrf.mxu0
      %989 = vdwg.mxu0
      %v990 = vadd.f32 %v817, %v984
      %v991 = vadd.f32 %v818, %v987
      %992 = vst.msk [vmem:[#allocation4] sm:$0xff] %vm734, %v990
      %993 = vst.msk [vmem:[#allocation4 + $0x8] sm:$0xff] %vm734, %v991
      // Predicated region
      $region65: #{gpt_forward.9} parent=59 // pred_check
        %p994 = pneg %p506
      $region66: #{gpt_forward.9} parent=59 // pred_check_branch
        %996 = sbr.rel (%p994) target = $region68
      $region67: #{gpt_forward.9} parent=59 // pred_region
        %v997 = vld [vmem:[#allocation2] sm:$0xff]
        %v998 = vld [vmem:[#allocation2 + $0x8] sm:$0xff]
        %v999 = vld [vmem:[#allocation4] sm:$0xff]
        %v1000 = vld [vmem:[#allocation4 + $0x8] sm:$0xff]
        %v1001 = vadd.f32 %v997, %v999
        %v1002 = vadd.f32 %v998, %v1000
        %v1003 = vld [vmem:[%s9] sm:$0x1]
        %v1005 = vlaneseq
        %v1006 = vshrl.u32 %v1005, 7
        %v1007 = vsub.s32 0, %v1006
        %v1008 = vrot.slane %v1003, %v1007
        %v1010 = vadd.f32 %v1001, %v1008
        %v1011 = vadd.f32 %v1002, %v1008
        %v1012 = vpack.c.bf16 %v1011, %v1010
        %v1014 = vunpack.c.l.b16 %v1012
        %v1015 = vunpack.c.h.b16 %v1012
        %v1016 = vpack.c.b16 %v1014, %v1014
        %v1017 = vpack.c.b16 %v1015, %v1015
        %vm1020 = vcmask 519168
        %1021 = vst.msk [vmem:[%s503] sm:$0xf] %vm1020, %v1016
        %1022 = vst.msk [vmem:[%s503 + $0x4] sm:$0xf] %vm1020, %v1017
      $region68: #{gpt_forward.9} parent=59 // pred_fallthru
        _
      %s1023 = smul.u32 2, %s27
      %p1024 = scmp.lt.s32.totalorder %s26, 1
      %s1025 = scalar_select %p1024, %s26, 1
      %p1026 = scmp.lt.s32.totalorder %s1023, 1
      %s1027 = scalar_select %p1026, %s1023, 1
      %s1028 = smul.addr %s1025, 2
      %s1029 = sadd.s32 %s1027, %s1028
      %s1030 = smul.addr %s1029, 4
      %s1031 = scalar_lea.vmem %s10, %s1030
      // Predicated region
      $region69: #{gpt_forward.9} parent=59 // pred_check
        %p1032 = pneg %p299
      $region70: #{gpt_forward.9} parent=59 // pred_check_branch
        %1034 = sbr.rel (%p1032) target = $region72
      $region71: #{gpt_forward.9} parent=59 // pred_region
        %s1035 = smul.u32 2, %s27
      $region72: #{gpt_forward.9} parent=59 // pred_fallthru
        _
    $region60: #{gpt_forward.9} parent=5 // pred_fallthru
      _
    %p1036 = scmp.le.s32.totalorder 2, %s16
    // Predicated region
    $region73: #{gpt_forward.9} parent=5 // pred_check
      %p1037 = pneg %p1036
    $region74: #{gpt_forward.9} parent=5 // pred_check_branch
      %1039 = sbr.rel (%p1037) target = $region76
    $region75: #{gpt_forward.9} parent=5 // pred_region
      %s1040 = ssub.s32 %s16, 2
      // Predicated region
      $region77: #{gpt_forward.9} parent=75 // pred_check
        %p1041 = pneg %p305
      $region78: #{gpt_forward.9} parent=75 // pred_check_branch
        %1043 = sbr.rel (%p1041) target = $region80
      $region79: #{gpt_forward.9} parent=75 // pred_region
        %s1044 = smul.u32 2, %s30
        %p1045 = scmp.lt.s32.totalorder %s29, 1
        %s1046 = scalar_select %p1045, %s29, 1
        %p1047 = scmp.lt.s32.totalorder %s1044, 1
        %s1048 = scalar_select %p1047, %s1044, 1
        %s1049 = smul.addr %s1046, 2
        %s1050 = sadd.s32 %s1048, %s1049
        %s1051 = smul.addr %s1050, 4
        %s1052 = scalar_lea.vmem %s10, %s1051
      $region80: #{gpt_forward.9} parent=75 // pred_fallthru
        _
    $region76: #{gpt_forward.9} parent=5 // pred_fallthru
      _
  $region6: #{gpt_forward.9} parent=0 // loop_footer
    %s20 = sadd.s32 1, %s16
  $region7: #{gpt_forward.9} parent=0 // loop_footer_branch
    %15 = sbr.rel target = $region3
  $region8: #{gpt_forward.9} parent=0 // loop_exit
    _

</llo_original>
